<compile_context>
chip_gen: v7x
topology: tpu7x:2x2x1
jax: 0.10.0
libtpu: 0.0.40
codegen_flags: <defaults>
</compile_context>

<pallas_src>
import numpy as np
import jax
import jax.numpy as jnp
from jax.experimental import pallas as pl
from jax.experimental.pallas import tpu as pltpu

# ---- model hyper-parameters (small, consistent with the module) -------------
OBS_DIM = 16
ACT_DIM = 4
BATCH = 32                      # a few "environments"/samples -> batch-tiled grid
TILE_B = 8                      # per-grid-step batch tile (sublane aligned)
HIDDEN = 256                    # subnet_fc hidden width
N_BLOCKS = 4                    # 4 coupling/permute pairs
CLAMP = 2.0                     # GINCouplingBlock clamp
SPLIT = OBS_DIM // 2            # split_len1 == split_len2 (obs_dim even)
COND = OBS_DIM + ACT_DIM        # condition = cat([obs, action])
N_SUB = 2 * N_BLOCKS            # total subnets (2 per block)


def _atan_f32(x):
    """float32 arctan (cephes atanf: range reduction + odd polynomial).

    Built from mul/add/abs/where + pl.reciprocal so it lowers cleanly in Mosaic; the two
    range-reduction divisions run on the (otherwise idle) EUP approximate path.
    """
    sign = jnp.where(x < 0.0, -1.0, 1.0)
    ax = jnp.abs(x)
    big = ax > 2.414213562373095          # tan(3*pi/8)
    mid = jnp.logical_and(jnp.logical_not(big), ax > 0.4142135623730951)  # tan(pi/8)
    denom = jnp.where(big, ax, ax + 1.0)  # big branch: ax > 2.41, never ~0
    rden = pl.reciprocal(denom, approx=True)
    t = jnp.where(big, -rden, jnp.where(mid, (ax - 1.0) * rden, ax))
    y0 = jnp.where(big, np.float32(np.pi / 2),
                   jnp.where(mid, np.float32(np.pi / 4), np.float32(0.0)))
    z = t * t
    p = ((((8.05374449538e-2 * z - 1.38776856032e-1) * z
           + 1.99777106478e-1) * z - 3.33329491539e-1) * z) * t + t
    return sign * (y0 + p)


# ---- the Pallas kernel: full INN forward for one batch tile ------------------
def inv_world_fwd_kernel(
    ctx_ref, obs_ref, act_ref,
    w1x0_ref, w1y_ref, afold_ref, bfold_ref,
    w2_ref, b2_ref, cpw_obs_ref, cpw_act_ref, cpb_ref,
    pt_ref, pb_ref,
    out_ref,
    cond_sc,
):
    f32 = jnp.float32
    bf16 = jnp.bfloat16

    obs = obs_ref[...]                                     # (TB, 16) f32
    act = act_ref[...]                                     # (TB, 4)  f32

    # Condition projection (first-Linear cond rows + bias) for ALL 8 subnets in one wide
    # MXU pass, parked in VMEM scratch so it doesn't pin 16 vregs across the body.
    cond_sc[...] = (
        jnp.dot(obs.astype(bf16), cpw_obs_ref[...], preferred_element_type=f32)
        + jnp.dot(act.astype(bf16), cpw_act_ref[...], preferred_element_type=f32)
        + cpb_ref[...])

    def coupling_half(x_keep, h_drive, idx):
        # subnet(cat([drive, cond])): drive part of the first Linear is h_drive (already a
        # matmul result), cond part + bias come from cond_sc.  Second Linear's s/t columns
        # are fused into one (HIDDEN, 2*SPLIT) weight.
        h = jnp.maximum(h_drive + cond_sc[:, pl.ds(idx * HIDDEN, HIDDEN)], 0.0)
        a = (jnp.dot(h.astype(bf16), w2_ref[idx], preferred_element_type=f32)
             + b2_ref[idx])                                # (TB, 2*SPLIT), cols = [s | t]
        s, t = a[:, :SPLIT], a[:, SPLIT:]
        s = CLAMP * (0.636 * _atan_f32(s))                 # clamp * f_clamp(s), FrEIA ATAN
        s = s - jnp.mean(s, axis=1, keepdims=True)         # GIN: volume preserving
        return jnp.exp(s) * x_keep + t

    x_full = ctx_ref[...].astype(f32)                      # (TB, 16)
    x1, x2 = x_full[:, :SPLIT], x_full[:, SPLIT:]

    # Block-0 subnet2 drive: zero-padded (16, 256) weight takes the FULL state,
    # so no cross-lane slice of the state sits on the critical path.
    drive_h = jnp.dot(x_full, w1x0_ref[...], preferred_element_type=f32)

    for k in range(N_BLOCKS):
        # _coupling1: y1 from x1, driven by subnet2(cat([x2, cond]))
        y1 = coupling_half(x1, drive_h, 2 * k + 1)
        # _coupling2: y2 from x2, driven by subnet1(cat([y1, cond]))
        y2 = coupling_half(
            x2, jnp.dot(y1, w1y_ref[k], preferred_element_type=f32), 2 * k)

        if k < N_BLOCKS - 1:
            # Next block's subnet2 drive with PermuteRandom folded into the weights:
            #   x2' @ W1x = (y1 @ Pt_k[:, S:] + y2 @ Pb_k[:, S:]) @ W1x = y1 @ A_k + y2 @ B_k
            drive_h = (jnp.dot(y1, afold_ref[k], preferred_element_type=f32)
                       + jnp.dot(y2, bfold_ref[k], preferred_element_type=f32))

        # PermuteRandom(seed=k): [y1, y2] @ P_k.  For k < last this only feeds the keep
        # operands of the next block, so it overlaps with the folded drive matmul above.
        x_full = (jnp.dot(y1, pt_ref[k], preferred_element_type=f32)
                  + jnp.dot(y2, pb_ref[k], preferred_element_type=f32))
        if k < N_BLOCKS - 1:
            x1, x2 = x_full[:, :SPLIT], x_full[:, SPLIT:]

    # residual: next_obs = INN(context) + obs
    out_ref[...] = x_full + obs


def inv_world_model_forward(obs, action, context, kernel_params):
    B = obs.shape[0]
    assert B % TILE_B == 0
    n_tiles = B // TILE_B

    def resident(p):
        # Weight tensors: constant block index -> DMA'd once, VMEM-resident across steps.
        nd = p.ndim
        return pl.BlockSpec(p.shape, lambda i, _nd=nd: (0,) * _nd)

    def tile2d(d):
        return pl.BlockSpec((TILE_B, d), lambda i: (i, 0))

    out = pl.pallas_call(
        inv_world_fwd_kernel,
        out_shape=jax.ShapeDtypeStruct((B, OBS_DIM), jnp.float32),
        grid=(n_tiles,),
        in_specs=[tile2d(OBS_DIM), tile2d(OBS_DIM), tile2d(ACT_DIM)]
                 + [resident(p) for p in kernel_params],
        out_specs=tile2d(OBS_DIM),
        scratch_shapes=[pltpu.VMEM((TILE_B, N_SUB * HIDDEN), jnp.float32)],
        compiler_params=pltpu.CompilerParams(dimension_semantics=("parallel",)),
    )(context, obs, action, *kernel_params)
    return out


# ---- deterministic parameter construction ------------------------------------
def init_raw_params(key):
    """Per-block subnet weights, same shapes as subnet_fc(Linear, ReLU, Linear)."""
    keys = jax.random.split(key, N_BLOCKS * 2 * 4)
    ki = 0
    raw = []
    for _ in range(N_BLOCKS):
        blk = {}
        for name in ("subnet1", "subnet2"):
            W1 = 0.05 * jax.random.normal(keys[ki], (SPLIT + COND, HIDDEN), jnp.float32); ki += 1
            b1 = 0.05 * jax.random.normal(keys[ki], (HIDDEN,), jnp.float32); ki += 1
            W2 = 0.05 * jax.random.normal(keys[ki], (HIDDEN, 2 * SPLIT), jnp.float32); ki += 1
            b2 = 0.05 * jax.random.normal(keys[ki], (2 * SPLIT,), jnp.float32); ki += 1
            blk[name] = (W1, b1, W2, b2)
        raw.append(blk)
    return raw


def make_permutations():
    """PermuteRandom(seed=k) as top/bottom matmul halves of P_k (x_perm = x @ P_k)."""
    perms, pt, pb = [], [], []
    for k in range(N_BLOCKS):
        np.random.seed(k)
        perm = np.random.permutation(OBS_DIM)
        perms.append(perm)
        P = np.eye(OBS_DIM, dtype=np.float32)[:, perm]
        pt.append(P[:SPLIT, :])
        pb.append(P[SPLIT:, :])
    return perms, np.stack(pt, 0), np.stack(pb, 0)


def pack_params_for_kernel(raw, pt_np, pb_np):
    """Pack / pre-fold weights for the kernel.  Subnet idx = 2*k + {0: subnet1, 1: subnet2}."""
    bf16 = jnp.bfloat16
    S = SPLIT
    w1x = []                                   # per-subnet drive rows of the first Linear
    cpw_obs_cols, cpw_act_cols, cpb_cols, w2, b2 = [], [], [], [], []
    for k in range(N_BLOCKS):
        for name in ("subnet1", "subnet2"):
            W1, B1, W2, B2 = raw[k][name]
            w1x.append(np.asarray(W1[:S]))                 # (SPLIT, HIDDEN)
            Wc = np.asarray(W1[S:])                        # cond rows: [obs | act]
            cpw_obs_cols.append(Wc[:OBS_DIM])
            cpw_act_cols.append(Wc[OBS_DIM:])
            cpb_cols.append(np.asarray(B1)[None, :])
            w2.append(np.asarray(W2))                      # (HIDDEN, 2*SPLIT), cols [s | t]
            b2.append(np.asarray(B2)[None, :])

    # Block-0 subnet2 drive weight, zero-padded so the full (B,16) state is the MXU LHS.
    w1x0 = np.zeros((OBS_DIM, HIDDEN), np.float32)
    w1x0[S:, :] = w1x[1]

    # Per-block subnet1 drive weight (drive = y1).
    w1y = np.stack([w1x[2 * k] for k in range(N_BLOCKS)], 0)          # (4, S, HIDDEN)

    # PermuteRandom folded into the NEXT block's subnet2 drive weight.
    afold = np.stack([pt_np[k][:, S:] @ w1x[2 * (k + 1) + 1]
                      for k in range(N_BLOCKS - 1)], 0)                # (3, S, HIDDEN)
    bfold = np.stack([pb_np[k][:, S:] @ w1x[2 * (k + 1) + 1]
                      for k in range(N_BLOCKS - 1)], 0)                # (3, S, HIDDEN)

    w2 = jnp.asarray(np.stack(w2, 0)).astype(bf16)                     # (8, 256, 16)  bf16
    b2 = jnp.asarray(np.stack(b2, 0))                                  # (8, 1, 16)    f32
    cpw_obs = jnp.asarray(np.concatenate(cpw_obs_cols, 1)).astype(bf16)  # (16, 2048)  bf16
    cpw_act = jnp.asarray(np.concatenate(cpw_act_cols, 1)).astype(bf16)  # (4, 2048)   bf16
    cpb = jnp.asarray(np.concatenate(cpb_cols, 1))                     # (1, 2048)     f32

    return (jnp.asarray(w1x0), jnp.asarray(w1y),
            jnp.asarray(afold), jnp.asarray(bfold),
            w2, b2, cpw_obs, cpw_act, cpb,
            jnp.asarray(pt_np), jnp.asarray(pb_np))


# ---- pure-JAX reference (mirrors the PyTorch forward, full f32) ---------------
def reference_forward(obs, action, context, raw, perms):
    cond = jnp.concatenate([obs, action], axis=-1)
    x = context

    def subnet(u, p):
        W1, b1, W2, b2 = p
        h = jnp.maximum(u @ W1 + b1, 0.0)
        return h @ W2 + b2

    for k in range(N_BLOCKS):
        x1, x2 = x[:, :SPLIT], x[:, SPLIT:]
        a2 = subnet(jnp.concatenate([x2, cond], -1), raw[k]["subnet2"])
        s2, t2 = a2[:, :SPLIT], a2[:, SPLIT:]
        s2 = CLAMP * (0.636 * jnp.arctan(s2))
        s2 = s2 - s2.mean(1, keepdims=True)
        y1 = jnp.exp(s2) * x1 + t2
        a1 = subnet(jnp.concatenate([y1, cond], -1), raw[k]["subnet1"])
        s1, t1 = a1[:, :SPLIT], a1[:, SPLIT:]
        s1 = CLAMP * (0.636 * jnp.arctan(s1))
        s1 = s1 - s1.mean(1, keepdims=True)
        y2 = jnp.exp(s1) * x2 + t1
        x = jnp.concatenate([y1, y2], axis=-1)[:, perms[k]]
    return x + obs


if __name__ == "__main__":
    key = jax.random.PRNGKey(0)
    k_obs, k_act, k_ctx, k_par = jax.random.split(key, 4)
    obs = jax.random.normal(k_obs, (BATCH, OBS_DIM), jnp.float32)
    action = jax.random.normal(k_act, (BATCH, ACT_DIM), jnp.float32)
    context = jax.random.normal(k_ctx, (BATCH, OBS_DIM), jnp.float32)

    raw = init_raw_params(k_par)
    perms, pt_np, pb_np = make_permutations()
    kernel_params = pack_params_for_kernel(raw, pt_np, pb_np)

    out = jax.block_until_ready(inv_world_model_forward(obs, action, context, kernel_params))
    ref = jax.block_until_ready(reference_forward(obs, action, context, raw, perms))
    np.testing.assert_allclose(np.asarray(out), np.asarray(ref), rtol=2e-2, atol=2e-2)
    print("KERNEL_OK")
</pallas_src>

<mosaic_0001>
module attributes {stable_mosaic.version = 11 : i64} {
  func.func @inv_world_fwd_kernel(%arg0: i32, %arg1: memref<8x16xf32, #tpu.memory_space<vmem>>, %arg2: memref<8x16xf32, #tpu.memory_space<vmem>>, %arg3: memref<8x4xf32, #tpu.memory_space<vmem>>, %arg4: memref<16x256xf32, #tpu.memory_space<vmem>>, %arg5: memref<4x8x256xf32, #tpu.memory_space<vmem>>, %arg6: memref<3x8x256xf32, #tpu.memory_space<vmem>>, %arg7: memref<3x8x256xf32, #tpu.memory_space<vmem>>, %arg8: memref<8x256x16xbf16, #tpu.memory_space<vmem>>, %arg9: memref<8x1x16xf32, #tpu.memory_space<vmem>>, %arg10: memref<16x2048xbf16, #tpu.memory_space<vmem>>, %arg11: memref<4x2048xbf16, #tpu.memory_space<vmem>>, %arg12: memref<1x2048xf32, #tpu.memory_space<vmem>>, %arg13: memref<4x8x16xf32, #tpu.memory_space<vmem>>, %arg14: memref<4x8x16xf32, #tpu.memory_space<vmem>>, %arg15: memref<8x16xf32, #tpu.memory_space<vmem>>, %arg16: memref<8x2048xf32, #tpu.memory_space<vmem>>) attributes {dimension_semantics = [#tpu.dimension_semantics<parallel>], iteration_bounds = array<i64: 4>, scalar_prefetch = 0 : i64, scratch_operands = 1 : i64, tpu.core_type = #tpu.core_type<tc>, window_params = [{transform_indices = @transform_0, window_bounds = array<i64: 8, 16>}, {transform_indices = @transform_1, window_bounds = array<i64: 8, 16>}, {transform_indices = @transform_2, window_bounds = array<i64: 8, 4>}, {pipeline_mode = #tpu.pipeline_mode<synchronous>, transform_indices = @transform_3, window_bounds = array<i64: 16, 256>}, {pipeline_mode = #tpu.pipeline_mode<synchronous>, transform_indices = @transform_4, window_bounds = array<i64: 4, 8, 256>}, {pipeline_mode = #tpu.pipeline_mode<synchronous>, transform_indices = @transform_5, window_bounds = array<i64: 3, 8, 256>}, {pipeline_mode = #tpu.pipeline_mode<synchronous>, transform_indices = @transform_6, window_bounds = array<i64: 3, 8, 256>}, {pipeline_mode = #tpu.pipeline_mode<synchronous>, transform_indices = @transform_7, window_bounds = array<i64: 8, 256, 16>}, {pipeline_mode = #tpu.pipeline_mode<synchronous>, transform_indices = @transform_8, window_bounds = array<i64: 8, 1, 16>}, {pipeline_mode = #tpu.pipeline_mode<synchronous>, transform_indices = @transform_9, window_bounds = array<i64: 16, 2048>}, {pipeline_mode = #tpu.pipeline_mode<synchronous>, transform_indices = @transform_10, window_bounds = array<i64: 4, 2048>}, {pipeline_mode = #tpu.pipeline_mode<synchronous>, transform_indices = @transform_11, window_bounds = array<i64: 1, 2048>}, {pipeline_mode = #tpu.pipeline_mode<synchronous>, transform_indices = @transform_12, window_bounds = array<i64: 4, 8, 16>}, {pipeline_mode = #tpu.pipeline_mode<synchronous>, transform_indices = @transform_13, window_bounds = array<i64: 4, 8, 16>}, {transform_indices = @transform_14, window_bounds = array<i64: 8, 16>}]} {
    %c0 = arith.constant 0 : index
    %c0_0 = arith.constant 0 : index
    %0 = vector.load %arg2[%c0, %c0_0] : memref<8x16xf32, #tpu.memory_space<vmem>>, vector<8x16xf32>
    %c0_1 = arith.constant 0 : index
    %c0_2 = arith.constant 0 : index
    %1 = vector.load %arg3[%c0_1, %c0_2] : memref<8x4xf32, #tpu.memory_space<vmem>>, vector<8x4xf32>
    %2 = arith.truncf %0 : vector<8x16xf32> to vector<8x16xbf16>
    %c0_3 = arith.constant 0 : index
    %c0_4 = arith.constant 0 : index
    %3 = vector.load %arg10[%c0_3, %c0_4] : memref<16x2048xbf16, #tpu.memory_space<vmem>>, vector<16x2048xbf16>
    %cst = arith.constant dense<0.000000e+00> : vector<8x2048xf32>
    %4 = tpu.matmul %2, %3, %cst {dimension_numbers = #tpu.dot_dimension_numbers<[1], [0], [0], [1], [0, 0, 1, 1], [], []>} : vector<8x16xbf16>, vector<16x2048xbf16>, vector<8x2048xf32> -> vector<8x2048xf32>
    %5 = arith.truncf %1 : vector<8x4xf32> to vector<8x4xbf16>
    %c0_5 = arith.constant 0 : index
    %c0_6 = arith.constant 0 : index
    %6 = vector.load %arg11[%c0_5, %c0_6] : memref<4x2048xbf16, #tpu.memory_space<vmem>>, vector<4x2048xbf16>
    %cst_7 = arith.constant dense<0.000000e+00> : vector<8x2048xf32>
    %7 = tpu.matmul %5, %6, %cst_7 {dimension_numbers = #tpu.dot_dimension_numbers<[1], [0], [0], [1], [0, 0, 1, 1], [], []>} : vector<8x4xbf16>, vector<4x2048xbf16>, vector<8x2048xf32> -> vector<8x2048xf32>
    %8 = arith.addf %4, %7 : vector<8x2048xf32>
    %c0_8 = arith.constant 0 : index
    %c0_9 = arith.constant 0 : index
    %9 = vector.load %arg12[%c0_8, %c0_9] : memref<1x2048xf32, #tpu.memory_space<vmem>>, vector<1x2048xf32>
    %10 = vector.broadcast %9 : vector<1x2048xf32> to vector<8x2048xf32>
    %11 = arith.addf %8, %10 : vector<8x2048xf32>
    %c0_10 = arith.constant 0 : index
    %c0_11 = arith.constant 0 : index
    %12 = vector.load %arg16[%c0_10, %c0_11] : memref<8x2048xf32, #tpu.memory_space<vmem>>, vector<8x2048xf32>
    tpu.vector_store %arg16[%c0_10, %c0_11], %11 {strides = array<i32>} : memref<8x2048xf32, #tpu.memory_space<vmem>>, vector<8x2048xf32>,
    %c0_12 = arith.constant 0 : index
    %c0_13 = arith.constant 0 : index
    %13 = vector.load %arg1[%c0_12, %c0_13] : memref<8x16xf32, #tpu.memory_space<vmem>>, vector<8x16xf32>
    %14 = vector.extract_strided_slice %13 {offsets = [0, 0], sizes = [8, 8], strides = [1, 1]} : vector<8x16xf32> to vector<8x8xf32>
    %15 = vector.extract_strided_slice %13 {offsets = [0, 8], sizes = [8, 8], strides = [1, 1]} : vector<8x16xf32> to vector<8x8xf32>
    %c0_14 = arith.constant 0 : index
    %c0_15 = arith.constant 0 : index
    %16 = vector.load %arg4[%c0_14, %c0_15] : memref<16x256xf32, #tpu.memory_space<vmem>>, vector<16x256xf32>
    %cst_16 = arith.constant dense<0.000000e+00> : vector<8x256xf32>
    %17 = tpu.matmul %13, %16, %cst_16 {dimension_numbers = #tpu.dot_dimension_numbers<[1], [0], [0], [1], [0, 0, 1, 1], [], []>} : vector<8x16xf32>, vector<16x256xf32>, vector<8x256xf32> -> vector<8x256xf32>
    %c0_17 = arith.constant 0 : index
    %c256 = arith.constant 256 : index
    %18 = vector.load %arg16[%c0_17, %c256] : memref<8x2048xf32, #tpu.memory_space<vmem>>, vector<8x256xf32>
    %19 = arith.addf %17, %18 : vector<8x256xf32>
    %cst_18 = arith.constant 0.000000e+00 : f32
    %20 = vector.broadcast %cst_18 : f32 to vector<8x256xf32>
    %21 = arith.maximumf %19, %20 : vector<8x256xf32>
    %22 = arith.truncf %21 : vector<8x256xf32> to vector<8x256xbf16>
    %c1 = arith.constant 1 : index
    %c0_19 = arith.constant 0 : index
    %c0_20 = arith.constant 0 : index
    %23 = vector.load %arg8[%c1, %c0_19, %c0_20] : memref<8x256x16xbf16, #tpu.memory_space<vmem>>, vector<1x256x16xbf16>
    %24 = vector.shape_cast %23 : vector<1x256x16xbf16> to vector<256x16xbf16>
    %cst_21 = arith.constant dense<0.000000e+00> : vector<8x16xf32>
    %25 = tpu.matmul %22, %24, %cst_21 {dimension_numbers = #tpu.dot_dimension_numbers<[1], [0], [0], [1], [0, 0, 1, 1], [], []>} : vector<8x256xbf16>, vector<256x16xbf16>, vector<8x16xf32> -> vector<8x16xf32>
    %c1_22 = arith.constant 1 : index
    %c0_23 = arith.constant 0 : index
    %c0_24 = arith.constant 0 : index
    %26 = vector.load %arg9[%c1_22, %c0_23, %c0_24] : memref<8x1x16xf32, #tpu.memory_space<vmem>>, vector<1x1x16xf32>
    %27 = vector.shape_cast %26 : vector<1x1x16xf32> to vector<1x16xf32>
    %28 = vector.broadcast %27 : vector<1x16xf32> to vector<8x16xf32>
    %29 = arith.addf %25, %28 : vector<8x16xf32>
    %30 = vector.extract_strided_slice %29 {offsets = [0, 0], sizes = [8, 8], strides = [1, 1]} : vector<8x16xf32> to vector<8x8xf32>
    %31 = vector.extract_strided_slice %29 {offsets = [0, 8], sizes = [8, 8], strides = [1, 1]} : vector<8x16xf32> to vector<8x8xf32>
    %cst_25 = arith.constant 0.000000e+00 : f32
    %32 = vector.broadcast %cst_25 : f32 to vector<8x8xf32>
    %33 = arith.cmpf olt, %30, %32 : vector<8x8xf32>
    %cst_26 = arith.constant -1.000000e+00 : f32
    %cst_27 = arith.constant 1.000000e+00 : f32
    %34 = vector.broadcast %cst_26 : f32 to vector<8x8xf32>
    %35 = vector.broadcast %cst_27 : f32 to vector<8x8xf32>
    %36 = arith.select %33, %34, %35 : vector<8x8xi1>, vector<8x8xf32>
    %37 = math.absf %30 : vector<8x8xf32>
    %cst_28 = arith.constant 2.41421366 : f32
    %38 = vector.broadcast %cst_28 : f32 to vector<8x8xf32>
    %39 = arith.cmpf ogt, %37, %38 : vector<8x8xf32>
    %cst_29 = arith.constant dense<true> : vector<8x8xi1>
    %40 = arith.xori %39, %cst_29 : vector<8x8xi1>
    %cst_30 = arith.constant 0.414213568 : f32
    %41 = vector.broadcast %cst_30 : f32 to vector<8x8xf32>
    %42 = arith.cmpf ogt, %37, %41 : vector<8x8xf32>
    %43 = arith.andi %40, %42 : vector<8x8xi1>
    %cst_31 = arith.constant 1.000000e+00 : f32
    %44 = vector.broadcast %cst_31 : f32 to vector<8x8xf32>
    %45 = arith.addf %37, %44 : vector<8x8xf32>
    %46 = arith.select %39, %37, %45 : vector<8x8xi1>, vector<8x8xf32>
    %47 = tpu.reciprocal %46 {approx = true} : vector<8x8xf32> -> vector<8x8xf32>
    %cst_32 = arith.constant 0.000000e+00 : f32
    %48 = vector.broadcast %cst_32 : f32 to vector<8x8xf32>
    %49 = arith.subf %48, %47 : vector<8x8xf32>
    %cst_33 = arith.constant 1.000000e+00 : f32
    %50 = vector.broadcast %cst_33 : f32 to vector<8x8xf32>
    %51 = arith.subf %37, %50 : vector<8x8xf32>
    %52 = arith.mulf %51, %47 : vector<8x8xf32>
    %53 = arith.select %43, %52, %37 : vector<8x8xi1>, vector<8x8xf32>
    %54 = arith.select %39, %49, %53 : vector<8x8xi1>, vector<8x8xf32>
    %cst_34 = arith.constant 0.785398185 : f32
    %cst_35 = arith.constant 0.000000e+00 : f32
    %55 = vector.broadcast %cst_34 : f32 to vector<8x8xf32>
    %56 = vector.broadcast %cst_35 : f32 to vector<8x8xf32>
    %57 = arith.select %43, %55, %56 : vector<8x8xi1>, vector<8x8xf32>
    %cst_36 = arith.constant 1.57079637 : f32
    %58 = vector.broadcast %cst_36 : f32 to vector<8x8xf32>
    %59 = arith.select %39, %58, %57 : vector<8x8xi1>, vector<8x8xf32>
    %60 = arith.mulf %54, %54 : vector<8x8xf32>
    %cst_37 = arith.constant 0.0805374458 : f32
    %61 = vector.broadcast %cst_37 : f32 to vector<8x8xf32>
    %62 = arith.mulf %61, %60 : vector<8x8xf32>
    %cst_38 = arith.constant 0.138776854 : f32
    %63 = vector.broadcast %cst_38 : f32 to vector<8x8xf32>
    %64 = arith.subf %62, %63 : vector<8x8xf32>
    %65 = arith.mulf %64, %60 : vector<8x8xf32>
    %cst_39 = arith.constant 0.199777111 : f32
    %66 = vector.broadcast %cst_39 : f32 to vector<8x8xf32>
    %67 = arith.addf %65, %66 : vector<8x8xf32>
    %68 = arith.mulf %67, %60 : vector<8x8xf32>
    %cst_40 = arith.constant 0.333329499 : f32
    %69 = vector.broadcast %cst_40 : f32 to vector<8x8xf32>
    %70 = arith.subf %68, %69 : vector<8x8xf32>
    %71 = arith.mulf %70, %60 : vector<8x8xf32>
    %72 = arith.mulf %71, %54 : vector<8x8xf32>
    %73 = arith.addf %72, %54 : vector<8x8xf32>
    %74 = arith.addf %59, %73 : vector<8x8xf32>
    %75 = arith.mulf %36, %74 : vector<8x8xf32>
    %cst_41 = arith.constant 0.635999977 : f32
    %76 = vector.broadcast %cst_41 : f32 to vector<8x8xf32>
    %77 = arith.mulf %76, %75 : vector<8x8xf32>
    %cst_42 = arith.constant 2.000000e+00 : f32
    %78 = vector.broadcast %cst_42 : f32 to vector<8x8xf32>
    %79 = arith.mulf %78, %77 : vector<8x8xf32>
    %cst_43 = arith.constant dense<0.000000e+00> : vector<8xf32>
    %80 = vector.multi_reduction <add>, %79, %cst_43 [1] : vector<8x8xf32> to vector<8xf32>
    %81 = vector.shape_cast %80 : vector<8xf32> to vector<8x1xf32>
    %cst_44 = arith.constant 8.000000e+00 : f32
    %82 = vector.broadcast %cst_44 : f32 to vector<8x1xf32>
    %83 = arith.divf %81, %82 : vector<8x1xf32>
    %84 = vector.broadcast %83 : vector<8x1xf32> to vector<8x8xf32>
    %85 = arith.subf %79, %84 : vector<8x8xf32>
    %86 = math.exp %85 : vector<8x8xf32>
    %87 = arith.mulf %86, %14 : vector<8x8xf32>
    %88 = arith.addf %87, %31 : vector<8x8xf32>
    %c0_45 = arith.constant 0 : index
    %c0_46 = arith.constant 0 : index
    %c0_47 = arith.constant 0 : index
    %89 = vector.load %arg5[%c0_45, %c0_46, %c0_47] : memref<4x8x256xf32, #tpu.memory_space<vmem>>, vector<1x8x256xf32>
    %90 = vector.shape_cast %89 : vector<1x8x256xf32> to vector<8x256xf32>
    %cst_48 = arith.constant dense<0.000000e+00> : vector<8x256xf32>
    %91 = tpu.matmul %88, %90, %cst_48 {dimension_numbers = #tpu.dot_dimension_numbers<[1], [0], [0], [1], [0, 0, 1, 1], [], []>} : vector<8x8xf32>, vector<8x256xf32>, vector<8x256xf32> -> vector<8x256xf32>
    %c0_49 = arith.constant 0 : index
    %c0_50 = arith.constant 0 : index
    %92 = vector.load %arg16[%c0_49, %c0_50] : memref<8x2048xf32, #tpu.memory_space<vmem>>, vector<8x256xf32>
    %93 = arith.addf %91, %92 : vector<8x256xf32>
    %cst_51 = arith.constant 0.000000e+00 : f32
    %94 = vector.broadcast %cst_51 : f32 to vector<8x256xf32>
    %95 = arith.maximumf %93, %94 : vector<8x256xf32>
    %96 = arith.truncf %95 : vector<8x256xf32> to vector<8x256xbf16>
    %c0_52 = arith.constant 0 : index
    %c0_53 = arith.constant 0 : index
    %c0_54 = arith.constant 0 : index
    %97 = vector.load %arg8[%c0_52, %c0_53, %c0_54] : memref<8x256x16xbf16, #tpu.memory_space<vmem>>, vector<1x256x16xbf16>
    %98 = vector.shape_cast %97 : vector<1x256x16xbf16> to vector<256x16xbf16>
    %cst_55 = arith.constant dense<0.000000e+00> : vector<8x16xf32>
    %99 = tpu.matmul %96, %98, %cst_55 {dimension_numbers = #tpu.dot_dimension_numbers<[1], [0], [0], [1], [0, 0, 1, 1], [], []>} : vector<8x256xbf16>, vector<256x16xbf16>, vector<8x16xf32> -> vector<8x16xf32>
    %c0_56 = arith.constant 0 : index
    %c0_57 = arith.constant 0 : index
    %c0_58 = arith.constant 0 : index
    %100 = vector.load %arg9[%c0_56, %c0_57, %c0_58] : memref<8x1x16xf32, #tpu.memory_space<vmem>>, vector<1x1x16xf32>
    %101 = vector.shape_cast %100 : vector<1x1x16xf32> to vector<1x16xf32>
    %102 = vector.broadcast %101 : vector<1x16xf32> to vector<8x16xf32>
    %103 = arith.addf %99, %102 : vector<8x16xf32>
    %104 = vector.extract_strided_slice %103 {offsets = [0, 0], sizes = [8, 8], strides = [1, 1]} : vector<8x16xf32> to vector<8x8xf32>
    %105 = vector.extract_strided_slice %103 {offsets = [0, 8], sizes = [8, 8], strides = [1, 1]} : vector<8x16xf32> to vector<8x8xf32>
    %cst_59 = arith.constant 0.000000e+00 : f32
    %106 = vector.broadcast %cst_59 : f32 to vector<8x8xf32>
    %107 = arith.cmpf olt, %104, %106 : vector<8x8xf32>
    %cst_60 = arith.constant -1.000000e+00 : f32
    %cst_61 = arith.constant 1.000000e+00 : f32
    %108 = vector.broadcast %cst_60 : f32 to vector<8x8xf32>
    %109 = vector.broadcast %cst_61 : f32 to vector<8x8xf32>
    %110 = arith.select %107, %108, %109 : vector<8x8xi1>, vector<8x8xf32>
    %111 = math.absf %104 : vector<8x8xf32>
    %cst_62 = arith.constant 2.41421366 : f32
    %112 = vector.broadcast %cst_62 : f32 to vector<8x8xf32>
    %113 = arith.cmpf ogt, %111, %112 : vector<8x8xf32>
    %cst_63 = arith.constant dense<true> : vector<8x8xi1>
    %114 = arith.xori %113, %cst_63 : vector<8x8xi1>
    %cst_64 = arith.constant 0.414213568 : f32
    %115 = vector.broadcast %cst_64 : f32 to vector<8x8xf32>
    %116 = arith.cmpf ogt, %111, %115 : vector<8x8xf32>
    %117 = arith.andi %114, %116 : vector<8x8xi1>
    %cst_65 = arith.constant 1.000000e+00 : f32
    %118 = vector.broadcast %cst_65 : f32 to vector<8x8xf32>
    %119 = arith.addf %111, %118 : vector<8x8xf32>
    %120 = arith.select %113, %111, %119 : vector<8x8xi1>, vector<8x8xf32>
    %121 = tpu.reciprocal %120 {approx = true} : vector<8x8xf32> -> vector<8x8xf32>
    %cst_66 = arith.constant 0.000000e+00 : f32
    %122 = vector.broadcast %cst_66 : f32 to vector<8x8xf32>
    %123 = arith.subf %122, %121 : vector<8x8xf32>
    %cst_67 = arith.constant 1.000000e+00 : f32
    %124 = vector.broadcast %cst_67 : f32 to vector<8x8xf32>
    %125 = arith.subf %111, %124 : vector<8x8xf32>
    %126 = arith.mulf %125, %121 : vector<8x8xf32>
    %127 = arith.select %117, %126, %111 : vector<8x8xi1>, vector<8x8xf32>
    %128 = arith.select %113, %123, %127 : vector<8x8xi1>, vector<8x8xf32>
    %cst_68 = arith.constant 0.785398185 : f32
    %cst_69 = arith.constant 0.000000e+00 : f32
    %129 = vector.broadcast %cst_68 : f32 to vector<8x8xf32>
    %130 = vector.broadcast %cst_69 : f32 to vector<8x8xf32>
    %131 = arith.select %117, %129, %130 : vector<8x8xi1>, vector<8x8xf32>
    %cst_70 = arith.constant 1.57079637 : f32
    %132 = vector.broadcast %cst_70 : f32 to vector<8x8xf32>
    %133 = arith.select %113, %132, %131 : vector<8x8xi1>, vector<8x8xf32>
    %134 = arith.mulf %128, %128 : vector<8x8xf32>
    %cst_71 = arith.constant 0.0805374458 : f32
    %135 = vector.broadcast %cst_71 : f32 to vector<8x8xf32>
    %136 = arith.mulf %135, %134 : vector<8x8xf32>
    %cst_72 = arith.constant 0.138776854 : f32
    %137 = vector.broadcast %cst_72 : f32 to vector<8x8xf32>
    %138 = arith.subf %136, %137 : vector<8x8xf32>
    %139 = arith.mulf %138, %134 : vector<8x8xf32>
    %cst_73 = arith.constant 0.199777111 : f32
    %140 = vector.broadcast %cst_73 : f32 to vector<8x8xf32>
    %141 = arith.addf %139, %140 : vector<8x8xf32>
    %142 = arith.mulf %141, %134 : vector<8x8xf32>
    %cst_74 = arith.constant 0.333329499 : f32
    %143 = vector.broadcast %cst_74 : f32 to vector<8x8xf32>
    %144 = arith.subf %142, %143 : vector<8x8xf32>
    %145 = arith.mulf %144, %134 : vector<8x8xf32>
    %146 = arith.mulf %145, %128 : vector<8x8xf32>
    %147 = arith.addf %146, %128 : vector<8x8xf32>
    %148 = arith.addf %133, %147 : vector<8x8xf32>
    %149 = arith.mulf %110, %148 : vector<8x8xf32>
    %cst_75 = arith.constant 0.635999977 : f32
    %150 = vector.broadcast %cst_75 : f32 to vector<8x8xf32>
    %151 = arith.mulf %150, %149 : vector<8x8xf32>
    %cst_76 = arith.constant 2.000000e+00 : f32
    %152 = vector.broadcast %cst_76 : f32 to vector<8x8xf32>
    %153 = arith.mulf %152, %151 : vector<8x8xf32>
    %cst_77 = arith.constant dense<0.000000e+00> : vector<8xf32>
    %154 = vector.multi_reduction <add>, %153, %cst_77 [1] : vector<8x8xf32> to vector<8xf32>
    %155 = vector.shape_cast %154 : vector<8xf32> to vector<8x1xf32>
    %cst_78 = arith.constant 8.000000e+00 : f32
    %156 = vector.broadcast %cst_78 : f32 to vector<8x1xf32>
    %157 = arith.divf %155, %156 : vector<8x1xf32>
    %158 = vector.broadcast %157 : vector<8x1xf32> to vector<8x8xf32>
    %159 = arith.subf %153, %158 : vector<8x8xf32>
    %160 = math.exp %159 : vector<8x8xf32>
    %161 = arith.mulf %160, %15 : vector<8x8xf32>
    %162 = arith.addf %161, %105 : vector<8x8xf32>
    %c0_79 = arith.constant 0 : index
    %c0_80 = arith.constant 0 : index
    %c0_81 = arith.constant 0 : index
    %163 = vector.load %arg6[%c0_79, %c0_80, %c0_81] : memref<3x8x256xf32, #tpu.memory_space<vmem>>, vector<1x8x256xf32>
    %164 = vector.shape_cast %163 : vector<1x8x256xf32> to vector<8x256xf32>
    %cst_82 = arith.constant dense<0.000000e+00> : vector<8x256xf32>
    %165 = tpu.matmul %88, %164, %cst_82 {dimension_numbers = #tpu.dot_dimension_numbers<[1], [0], [0], [1], [0, 0, 1, 1], [], []>} : vector<8x8xf32>, vector<8x256xf32>, vector<8x256xf32> -> vector<8x256xf32>
    %c0_83 = arith.constant 0 : index
    %c0_84 = arith.constant 0 : index
    %c0_85 = arith.constant 0 : index
    %166 = vector.load %arg7[%c0_83, %c0_84, %c0_85] : memref<3x8x256xf32, #tpu.memory_space<vmem>>, vector<1x8x256xf32>
    %167 = vector.shape_cast %166 : vector<1x8x256xf32> to vector<8x256xf32>
    %cst_86 = arith.constant dense<0.000000e+00> : vector<8x256xf32>
    %168 = tpu.matmul %162, %167, %cst_86 {dimension_numbers = #tpu.dot_dimension_numbers<[1], [0], [0], [1], [0, 0, 1, 1], [], []>} : vector<8x8xf32>, vector<8x256xf32>, vector<8x256xf32> -> vector<8x256xf32>
    %169 = arith.addf %165, %168 : vector<8x256xf32>
    %c0_87 = arith.constant 0 : index
    %c0_88 = arith.constant 0 : index
    %c0_89 = arith.constant 0 : index
    %170 = vector.load %arg13[%c0_87, %c0_88, %c0_89] : memref<4x8x16xf32, #tpu.memory_space<vmem>>, vector<1x8x16xf32>
    %171 = vector.shape_cast %170 : vector<1x8x16xf32> to vector<8x16xf32>
    %cst_90 = arith.constant dense<0.000000e+00> : vector<8x16xf32>
    %172 = tpu.matmul %88, %171, %cst_90 {dimension_numbers = #tpu.dot_dimension_numbers<[1], [0], [0], [1], [0, 0, 1, 1], [], []>} : vector<8x8xf32>, vector<8x16xf32>, vector<8x16xf32> -> vector<8x16xf32>
    %c0_91 = arith.constant 0 : index
    %c0_92 = arith.constant 0 : index
    %c0_93 = arith.constant 0 : index
    %173 = vector.load %arg14[%c0_91, %c0_92, %c0_93] : memref<4x8x16xf32, #tpu.memory_space<vmem>>, vector<1x8x16xf32>
    %174 = vector.shape_cast %173 : vector<1x8x16xf32> to vector<8x16xf32>
    %cst_94 = arith.constant dense<0.000000e+00> : vector<8x16xf32>
    %175 = tpu.matmul %162, %174, %cst_94 {dimension_numbers = #tpu.dot_dimension_numbers<[1], [0], [0], [1], [0, 0, 1, 1], [], []>} : vector<8x8xf32>, vector<8x16xf32>, vector<8x16xf32> -> vector<8x16xf32>
    %176 = arith.addf %172, %175 : vector<8x16xf32>
    %177 = vector.extract_strided_slice %176 {offsets = [0, 0], sizes = [8, 8], strides = [1, 1]} : vector<8x16xf32> to vector<8x8xf32>
    %178 = vector.extract_strided_slice %176 {offsets = [0, 8], sizes = [8, 8], strides = [1, 1]} : vector<8x16xf32> to vector<8x8xf32>
    %c0_95 = arith.constant 0 : index
    %c768 = arith.constant 768 : index
    %179 = vector.load %arg16[%c0_95, %c768] : memref<8x2048xf32, #tpu.memory_space<vmem>>, vector<8x256xf32>
    %180 = arith.addf %169, %179 : vector<8x256xf32>
    %cst_96 = arith.constant 0.000000e+00 : f32
    %181 = vector.broadcast %cst_96 : f32 to vector<8x256xf32>
    %182 = arith.maximumf %180, %181 : vector<8x256xf32>
    %183 = arith.truncf %182 : vector<8x256xf32> to vector<8x256xbf16>
    %c3 = arith.constant 3 : index
    %c0_97 = arith.constant 0 : index
    %c0_98 = arith.constant 0 : index
    %184 = vector.load %arg8[%c3, %c0_97, %c0_98] : memref<8x256x16xbf16, #tpu.memory_space<vmem>>, vector<1x256x16xbf16>
    %185 = vector.shape_cast %184 : vector<1x256x16xbf16> to vector<256x16xbf16>
    %cst_99 = arith.constant dense<0.000000e+00> : vector<8x16xf32>
    %186 = tpu.matmul %183, %185, %cst_99 {dimension_numbers = #tpu.dot_dimension_numbers<[1], [0], [0], [1], [0, 0, 1, 1], [], []>} : vector<8x256xbf16>, vector<256x16xbf16>, vector<8x16xf32> -> vector<8x16xf32>
    %c3_100 = arith.constant 3 : index
    %c0_101 = arith.constant 0 : index
    %c0_102 = arith.constant 0 : index
    %187 = vector.load %arg9[%c3_100, %c0_101, %c0_102] : memref<8x1x16xf32, #tpu.memory_space<vmem>>, vector<1x1x16xf32>
    %188 = vector.shape_cast %187 : vector<1x1x16xf32> to vector<1x16xf32>
    %189 = vector.broadcast %188 : vector<1x16xf32> to vector<8x16xf32>
    %190 = arith.addf %186, %189 : vector<8x16xf32>
    %191 = vector.extract_strided_slice %190 {offsets = [0, 0], sizes = [8, 8], strides = [1, 1]} : vector<8x16xf32> to vector<8x8xf32>
    %192 = vector.extract_strided_slice %190 {offsets = [0, 8], sizes = [8, 8], strides = [1, 1]} : vector<8x16xf32> to vector<8x8xf32>
    %cst_103 = arith.constant 0.000000e+00 : f32
    %193 = vector.broadcast %cst_103 : f32 to vector<8x8xf32>
    %194 = arith.cmpf olt, %191, %193 : vector<8x8xf32>
    %cst_104 = arith.constant -1.000000e+00 : f32
    %cst_105 = arith.constant 1.000000e+00 : f32
    %195 = vector.broadcast %cst_104 : f32 to vector<8x8xf32>
    %196 = vector.broadcast %cst_105 : f32 to vector<8x8xf32>
    %197 = arith.select %194, %195, %196 : vector<8x8xi1>, vector<8x8xf32>
    %198 = math.absf %191 : vector<8x8xf32>
    %cst_106 = arith.constant 2.41421366 : f32
    %199 = vector.broadcast %cst_106 : f32 to vector<8x8xf32>
    %200 = arith.cmpf ogt, %198, %199 : vector<8x8xf32>
    %cst_107 = arith.constant dense<true> : vector<8x8xi1>
    %201 = arith.xori %200, %cst_107 : vector<8x8xi1>
    %cst_108 = arith.constant 0.414213568 : f32
    %202 = vector.broadcast %cst_108 : f32 to vector<8x8xf32>
    %203 = arith.cmpf ogt, %198, %202 : vector<8x8xf32>
    %204 = arith.andi %201, %203 : vector<8x8xi1>
    %cst_109 = arith.constant 1.000000e+00 : f32
    %205 = vector.broadcast %cst_109 : f32 to vector<8x8xf32>
    %206 = arith.addf %198, %205 : vector<8x8xf32>
    %207 = arith.select %200, %198, %206 : vector<8x8xi1>, vector<8x8xf32>
    %208 = tpu.reciprocal %207 {approx = true} : vector<8x8xf32> -> vector<8x8xf32>
    %cst_110 = arith.constant 0.000000e+00 : f32
    %209 = vector.broadcast %cst_110 : f32 to vector<8x8xf32>
    %210 = arith.subf %209, %208 : vector<8x8xf32>
    %cst_111 = arith.constant 1.000000e+00 : f32
    %211 = vector.broadcast %cst_111 : f32 to vector<8x8xf32>
    %212 = arith.subf %198, %211 : vector<8x8xf32>
    %213 = arith.mulf %212, %208 : vector<8x8xf32>
    %214 = arith.select %204, %213, %198 : vector<8x8xi1>, vector<8x8xf32>
    %215 = arith.select %200, %210, %214 : vector<8x8xi1>, vector<8x8xf32>
    %cst_112 = arith.constant 0.785398185 : f32
    %cst_113 = arith.constant 0.000000e+00 : f32
    %216 = vector.broadcast %cst_112 : f32 to vector<8x8xf32>
    %217 = vector.broadcast %cst_113 : f32 to vector<8x8xf32>
    %218 = arith.select %204, %216, %217 : vector<8x8xi1>, vector<8x8xf32>
    %cst_114 = arith.constant 1.57079637 : f32
    %219 = vector.broadcast %cst_114 : f32 to vector<8x8xf32>
    %220 = arith.select %200, %219, %218 : vector<8x8xi1>, vector<8x8xf32>
    %221 = arith.mulf %215, %215 : vector<8x8xf32>
    %cst_115 = arith.constant 0.0805374458 : f32
    %222 = vector.broadcast %cst_115 : f32 to vector<8x8xf32>
    %223 = arith.mulf %222, %221 : vector<8x8xf32>
    %cst_116 = arith.constant 0.138776854 : f32
    %224 = vector.broadcast %cst_116 : f32 to vector<8x8xf32>
    %225 = arith.subf %223, %224 : vector<8x8xf32>
    %226 = arith.mulf %225, %221 : vector<8x8xf32>
    %cst_117 = arith.constant 0.199777111 : f32
    %227 = vector.broadcast %cst_117 : f32 to vector<8x8xf32>
    %228 = arith.addf %226, %227 : vector<8x8xf32>
    %229 = arith.mulf %228, %221 : vector<8x8xf32>
    %cst_118 = arith.constant 0.333329499 : f32
    %230 = vector.broadcast %cst_118 : f32 to vector<8x8xf32>
    %231 = arith.subf %229, %230 : vector<8x8xf32>
    %232 = arith.mulf %231, %221 : vector<8x8xf32>
    %233 = arith.mulf %232, %215 : vector<8x8xf32>
    %234 = arith.addf %233, %215 : vector<8x8xf32>
    %235 = arith.addf %220, %234 : vector<8x8xf32>
    %236 = arith.mulf %197, %235 : vector<8x8xf32>
    %cst_119 = arith.constant 0.635999977 : f32
    %237 = vector.broadcast %cst_119 : f32 to vector<8x8xf32>
    %238 = arith.mulf %237, %236 : vector<8x8xf32>
    %cst_120 = arith.constant 2.000000e+00 : f32
    %239 = vector.broadcast %cst_120 : f32 to vector<8x8xf32>
    %240 = arith.mulf %239, %238 : vector<8x8xf32>
    %cst_121 = arith.constant dense<0.000000e+00> : vector<8xf32>
    %241 = vector.multi_reduction <add>, %240, %cst_121 [1] : vector<8x8xf32> to vector<8xf32>
    %242 = vector.shape_cast %241 : vector<8xf32> to vector<8x1xf32>
    %cst_122 = arith.constant 8.000000e+00 : f32
    %243 = vector.broadcast %cst_122 : f32 to vector<8x1xf32>
    %244 = arith.divf %242, %243 : vector<8x1xf32>
    %245 = vector.broadcast %244 : vector<8x1xf32> to vector<8x8xf32>
    %246 = arith.subf %240, %245 : vector<8x8xf32>
    %247 = math.exp %246 : vector<8x8xf32>
    %248 = arith.mulf %247, %177 : vector<8x8xf32>
    %249 = arith.addf %248, %192 : vector<8x8xf32>
    %c1_123 = arith.constant 1 : index
    %c0_124 = arith.constant 0 : index
    %c0_125 = arith.constant 0 : index
    %250 = vector.load %arg5[%c1_123, %c0_124, %c0_125] : memref<4x8x256xf32, #tpu.memory_space<vmem>>, vector<1x8x256xf32>
    %251 = vector.shape_cast %250 : vector<1x8x256xf32> to vector<8x256xf32>
    %cst_126 = arith.constant dense<0.000000e+00> : vector<8x256xf32>
    %252 = tpu.matmul %249, %251, %cst_126 {dimension_numbers = #tpu.dot_dimension_numbers<[1], [0], [0], [1], [0, 0, 1, 1], [], []>} : vector<8x8xf32>, vector<8x256xf32>, vector<8x256xf32> -> vector<8x256xf32>
    %c0_127 = arith.constant 0 : index
    %c512 = arith.constant 512 : index
    %253 = vector.load %arg16[%c0_127, %c512] : memref<8x2048xf32, #tpu.memory_space<vmem>>, vector<8x256xf32>
    %254 = arith.addf %252, %253 : vector<8x256xf32>
    %cst_128 = arith.constant 0.000000e+00 : f32
    %255 = vector.broadcast %cst_128 : f32 to vector<8x256xf32>
    %256 = arith.maximumf %254, %255 : vector<8x256xf32>
    %257 = arith.truncf %256 : vector<8x256xf32> to vector<8x256xbf16>
    %c2 = arith.constant 2 : index
    %c0_129 = arith.constant 0 : index
    %c0_130 = arith.constant 0 : index
    %258 = vector.load %arg8[%c2, %c0_129, %c0_130] : memref<8x256x16xbf16, #tpu.memory_space<vmem>>, vector<1x256x16xbf16>
    %259 = vector.shape_cast %258 : vector<1x256x16xbf16> to vector<256x16xbf16>
    %cst_131 = arith.constant dense<0.000000e+00> : vector<8x16xf32>
    %260 = tpu.matmul %257, %259, %cst_131 {dimension_numbers = #tpu.dot_dimension_numbers<[1], [0], [0], [1], [0, 0, 1, 1], [], []>} : vector<8x256xbf16>, vector<256x16xbf16>, vector<8x16xf32> -> vector<8x16xf32>
    %c2_132 = arith.constant 2 : index
    %c0_133 = arith.constant 0 : index
    %c0_134 = arith.constant 0 : index
    %261 = vector.load %arg9[%c2_132, %c0_133, %c0_134] : memref<8x1x16xf32, #tpu.memory_space<vmem>>, vector<1x1x16xf32>
    %262 = vector.shape_cast %261 : vector<1x1x16xf32> to vector<1x16xf32>
    %263 = vector.broadcast %262 : vector<1x16xf32> to vector<8x16xf32>
    %264 = arith.addf %260, %263 : vector<8x16xf32>
    %265 = vector.extract_strided_slice %264 {offsets = [0, 0], sizes = [8, 8], strides = [1, 1]} : vector<8x16xf32> to vector<8x8xf32>
    %266 = vector.extract_strided_slice %264 {offsets = [0, 8], sizes = [8, 8], strides = [1, 1]} : vector<8x16xf32> to vector<8x8xf32>
    %cst_135 = arith.constant 0.000000e+00 : f32
    %267 = vector.broadcast %cst_135 : f32 to vector<8x8xf32>
    %268 = arith.cmpf olt, %265, %267 : vector<8x8xf32>
    %cst_136 = arith.constant -1.000000e+00 : f32
    %cst_137 = arith.constant 1.000000e+00 : f32
    %269 = vector.broadcast %cst_136 : f32 to vector<8x8xf32>
    %270 = vector.broadcast %cst_137 : f32 to vector<8x8xf32>
    %271 = arith.select %268, %269, %270 : vector<8x8xi1>, vector<8x8xf32>
    %272 = math.absf %265 : vector<8x8xf32>
    %cst_138 = arith.constant 2.41421366 : f32
    %273 = vector.broadcast %cst_138 : f32 to vector<8x8xf32>
    %274 = arith.cmpf ogt, %272, %273 : vector<8x8xf32>
    %cst_139 = arith.constant dense<true> : vector<8x8xi1>
    %275 = arith.xori %274, %cst_139 : vector<8x8xi1>
    %cst_140 = arith.constant 0.414213568 : f32
    %276 = vector.broadcast %cst_140 : f32 to vector<8x8xf32>
    %277 = arith.cmpf ogt, %272, %276 : vector<8x8xf32>
    %278 = arith.andi %275, %277 : vector<8x8xi1>
    %cst_141 = arith.constant 1.000000e+00 : f32
    %279 = vector.broadcast %cst_141 : f32 to vector<8x8xf32>
    %280 = arith.addf %272, %279 : vector<8x8xf32>
    %281 = arith.select %274, %272, %280 : vector<8x8xi1>, vector<8x8xf32>
    %282 = tpu.reciprocal %281 {approx = true} : vector<8x8xf32> -> vector<8x8xf32>
    %cst_142 = arith.constant 0.000000e+00 : f32
    %283 = vector.broadcast %cst_142 : f32 to vector<8x8xf32>
    %284 = arith.subf %283, %282 : vector<8x8xf32>
    %cst_143 = arith.constant 1.000000e+00 : f32
    %285 = vector.broadcast %cst_143 : f32 to vector<8x8xf32>
    %286 = arith.subf %272, %285 : vector<8x8xf32>
    %287 = arith.mulf %286, %282 : vector<8x8xf32>
    %288 = arith.select %278, %287, %272 : vector<8x8xi1>, vector<8x8xf32>
    %289 = arith.select %274, %284, %288 : vector<8x8xi1>, vector<8x8xf32>
    %cst_144 = arith.constant 0.785398185 : f32
    %cst_145 = arith.constant 0.000000e+00 : f32
    %290 = vector.broadcast %cst_144 : f32 to vector<8x8xf32>
    %291 = vector.broadcast %cst_145 : f32 to vector<8x8xf32>
    %292 = arith.select %278, %290, %291 : vector<8x8xi1>, vector<8x8xf32>
    %cst_146 = arith.constant 1.57079637 : f32
    %293 = vector.broadcast %cst_146 : f32 to vector<8x8xf32>
    %294 = arith.select %274, %293, %292 : vector<8x8xi1>, vector<8x8xf32>
    %295 = arith.mulf %289, %289 : vector<8x8xf32>
    %cst_147 = arith.constant 0.0805374458 : f32
    %296 = vector.broadcast %cst_147 : f32 to vector<8x8xf32>
    %297 = arith.mulf %296, %295 : vector<8x8xf32>
    %cst_148 = arith.constant 0.138776854 : f32
    %298 = vector.broadcast %cst_148 : f32 to vector<8x8xf32>
    %299 = arith.subf %297, %298 : vector<8x8xf32>
    %300 = arith.mulf %299, %295 : vector<8x8xf32>
    %cst_149 = arith.constant 0.199777111 : f32
    %301 = vector.broadcast %cst_149 : f32 to vector<8x8xf32>
    %302 = arith.addf %300, %301 : vector<8x8xf32>
    %303 = arith.mulf %302, %295 : vector<8x8xf32>
    %cst_150 = arith.constant 0.333329499 : f32
    %304 = vector.broadcast %cst_150 : f32 to vector<8x8xf32>
    %305 = arith.subf %303, %304 : vector<8x8xf32>
    %306 = arith.mulf %305, %295 : vector<8x8xf32>
    %307 = arith.mulf %306, %289 : vector<8x8xf32>
    %308 = arith.addf %307, %289 : vector<8x8xf32>
    %309 = arith.addf %294, %308 : vector<8x8xf32>
    %310 = arith.mulf %271, %309 : vector<8x8xf32>
    %cst_151 = arith.constant 0.635999977 : f32
    %311 = vector.broadcast %cst_151 : f32 to vector<8x8xf32>
    %312 = arith.mulf %311, %310 : vector<8x8xf32>
    %cst_152 = arith.constant 2.000000e+00 : f32
    %313 = vector.broadcast %cst_152 : f32 to vector<8x8xf32>
    %314 = arith.mulf %313, %312 : vector<8x8xf32>
    %cst_153 = arith.constant dense<0.000000e+00> : vector<8xf32>
    %315 = vector.multi_reduction <add>, %314, %cst_153 [1] : vector<8x8xf32> to vector<8xf32>
    %316 = vector.shape_cast %315 : vector<8xf32> to vector<8x1xf32>
    %cst_154 = arith.constant 8.000000e+00 : f32
    %317 = vector.broadcast %cst_154 : f32 to vector<8x1xf32>
    %318 = arith.divf %316, %317 : vector<8x1xf32>
    %319 = vector.broadcast %318 : vector<8x1xf32> to vector<8x8xf32>
    %320 = arith.subf %314, %319 : vector<8x8xf32>
    %321 = math.exp %320 : vector<8x8xf32>
    %322 = arith.mulf %321, %178 : vector<8x8xf32>
    %323 = arith.addf %322, %266 : vector<8x8xf32>
    %c1_155 = arith.constant 1 : index
    %c0_156 = arith.constant 0 : index
    %c0_157 = arith.constant 0 : index
    %324 = vector.load %arg6[%c1_155, %c0_156, %c0_157] : memref<3x8x256xf32, #tpu.memory_space<vmem>>, vector<1x8x256xf32>
    %325 = vector.shape_cast %324 : vector<1x8x256xf32> to vector<8x256xf32>
    %cst_158 = arith.constant dense<0.000000e+00> : vector<8x256xf32>
    %326 = tpu.matmul %249, %325, %cst_158 {dimension_numbers = #tpu.dot_dimension_numbers<[1], [0], [0], [1], [0, 0, 1, 1], [], []>} : vector<8x8xf32>, vector<8x256xf32>, vector<8x256xf32> -> vector<8x256xf32>
    %c1_159 = arith.constant 1 : index
    %c0_160 = arith.constant 0 : index
    %c0_161 = arith.constant 0 : index
    %327 = vector.load %arg7[%c1_159, %c0_160, %c0_161] : memref<3x8x256xf32, #tpu.memory_space<vmem>>, vector<1x8x256xf32>
    %328 = vector.shape_cast %327 : vector<1x8x256xf32> to vector<8x256xf32>
    %cst_162 = arith.constant dense<0.000000e+00> : vector<8x256xf32>
    %329 = tpu.matmul %323, %328, %cst_162 {dimension_numbers = #tpu.dot_dimension_numbers<[1], [0], [0], [1], [0, 0, 1, 1], [], []>} : vector<8x8xf32>, vector<8x256xf32>, vector<8x256xf32> -> vector<8x256xf32>
    %330 = arith.addf %326, %329 : vector<8x256xf32>
    %c1_163 = arith.constant 1 : index
    %c0_164 = arith.constant 0 : index
    %c0_165 = arith.constant 0 : index
    %331 = vector.load %arg13[%c1_163, %c0_164, %c0_165] : memref<4x8x16xf32, #tpu.memory_space<vmem>>, vector<1x8x16xf32>
    %332 = vector.shape_cast %331 : vector<1x8x16xf32> to vector<8x16xf32>
    %cst_166 = arith.constant dense<0.000000e+00> : vector<8x16xf32>
    %333 = tpu.matmul %249, %332, %cst_166 {dimension_numbers = #tpu.dot_dimension_numbers<[1], [0], [0], [1], [0, 0, 1, 1], [], []>} : vector<8x8xf32>, vector<8x16xf32>, vector<8x16xf32> -> vector<8x16xf32>
    %c1_167 = arith.constant 1 : index
    %c0_168 = arith.constant 0 : index
    %c0_169 = arith.constant 0 : index
    %334 = vector.load %arg14[%c1_167, %c0_168, %c0_169] : memref<4x8x16xf32, #tpu.memory_space<vmem>>, vector<1x8x16xf32>
    %335 = vector.shape_cast %334 : vector<1x8x16xf32> to vector<8x16xf32>
    %cst_170 = arith.constant dense<0.000000e+00> : vector<8x16xf32>
    %336 = tpu.matmul %323, %335, %cst_170 {dimension_numbers = #tpu.dot_dimension_numbers<[1], [0], [0], [1], [0, 0, 1, 1], [], []>} : vector<8x8xf32>, vector<8x16xf32>, vector<8x16xf32> -> vector<8x16xf32>
    %337 = arith.addf %333, %336 : vector<8x16xf32>
    %338 = vector.extract_strided_slice %337 {offsets = [0, 0], sizes = [8, 8], strides = [1, 1]} : vector<8x16xf32> to vector<8x8xf32>
    %339 = vector.extract_strided_slice %337 {offsets = [0, 8], sizes = [8, 8], strides = [1, 1]} : vector<8x16xf32> to vector<8x8xf32>
    %c0_171 = arith.constant 0 : index
    %c1280 = arith.constant 1280 : index
    %340 = vector.load %arg16[%c0_171, %c1280] : memref<8x2048xf32, #tpu.memory_space<vmem>>, vector<8x256xf32>
    %341 = arith.addf %330, %340 : vector<8x256xf32>
    %cst_172 = arith.constant 0.000000e+00 : f32
    %342 = vector.broadcast %cst_172 : f32 to vector<8x256xf32>
    %343 = arith.maximumf %341, %342 : vector<8x256xf32>
    %344 = arith.truncf %343 : vector<8x256xf32> to vector<8x256xbf16>
    %c5 = arith.constant 5 : index
    %c0_173 = arith.constant 0 : index
    %c0_174 = arith.constant 0 : index
    %345 = vector.load %arg8[%c5, %c0_173, %c0_174] : memref<8x256x16xbf16, #tpu.memory_space<vmem>>, vector<1x256x16xbf16>
    %346 = vector.shape_cast %345 : vector<1x256x16xbf16> to vector<256x16xbf16>
    %cst_175 = arith.constant dense<0.000000e+00> : vector<8x16xf32>
    %347 = tpu.matmul %344, %346, %cst_175 {dimension_numbers = #tpu.dot_dimension_numbers<[1], [0], [0], [1], [0, 0, 1, 1], [], []>} : vector<8x256xbf16>, vector<256x16xbf16>, vector<8x16xf32> -> vector<8x16xf32>
    %c5_176 = arith.constant 5 : index
    %c0_177 = arith.constant 0 : index
    %c0_178 = arith.constant 0 : index
    %348 = vector.load %arg9[%c5_176, %c0_177, %c0_178] : memref<8x1x16xf32, #tpu.memory_space<vmem>>, vector<1x1x16xf32>
    %349 = vector.shape_cast %348 : vector<1x1x16xf32> to vector<1x16xf32>
    %350 = vector.broadcast %349 : vector<1x16xf32> to vector<8x16xf32>
    %351 = arith.addf %347, %350 : vector<8x16xf32>
    %352 = vector.extract_strided_slice %351 {offsets = [0, 0], sizes = [8, 8], strides = [1, 1]} : vector<8x16xf32> to vector<8x8xf32>
    %353 = vector.extract_strided_slice %351 {offsets = [0, 8], sizes = [8, 8], strides = [1, 1]} : vector<8x16xf32> to vector<8x8xf32>
    %cst_179 = arith.constant 0.000000e+00 : f32
    %354 = vector.broadcast %cst_179 : f32 to vector<8x8xf32>
    %355 = arith.cmpf olt, %352, %354 : vector<8x8xf32>
    %cst_180 = arith.constant -1.000000e+00 : f32
    %cst_181 = arith.constant 1.000000e+00 : f32
    %356 = vector.broadcast %cst_180 : f32 to vector<8x8xf32>
    %357 = vector.broadcast %cst_181 : f32 to vector<8x8xf32>
    %358 = arith.select %355, %356, %357 : vector<8x8xi1>, vector<8x8xf32>
    %359 = math.absf %352 : vector<8x8xf32>
    %cst_182 = arith.constant 2.41421366 : f32
    %360 = vector.broadcast %cst_182 : f32 to vector<8x8xf32>
    %361 = arith.cmpf ogt, %359, %360 : vector<8x8xf32>
    %cst_183 = arith.constant dense<true> : vector<8x8xi1>
    %362 = arith.xori %361, %cst_183 : vector<8x8xi1>
    %cst_184 = arith.constant 0.414213568 : f32
    %363 = vector.broadcast %cst_184 : f32 to vector<8x8xf32>
    %364 = arith.cmpf ogt, %359, %363 : vector<8x8xf32>
    %365 = arith.andi %362, %364 : vector<8x8xi1>
    %cst_185 = arith.constant 1.000000e+00 : f32
    %366 = vector.broadcast %cst_185 : f32 to vector<8x8xf32>
    %367 = arith.addf %359, %366 : vector<8x8xf32>
    %368 = arith.select %361, %359, %367 : vector<8x8xi1>, vector<8x8xf32>
    %369 = tpu.reciprocal %368 {approx = true} : vector<8x8xf32> -> vector<8x8xf32>
    %cst_186 = arith.constant 0.000000e+00 : f32
    %370 = vector.broadcast %cst_186 : f32 to vector<8x8xf32>
    %371 = arith.subf %370, %369 : vector<8x8xf32>
    %cst_187 = arith.constant 1.000000e+00 : f32
    %372 = vector.broadcast %cst_187 : f32 to vector<8x8xf32>
    %373 = arith.subf %359, %372 : vector<8x8xf32>
    %374 = arith.mulf %373, %369 : vector<8x8xf32>
    %375 = arith.select %365, %374, %359 : vector<8x8xi1>, vector<8x8xf32>
    %376 = arith.select %361, %371, %375 : vector<8x8xi1>, vector<8x8xf32>
    %cst_188 = arith.constant 0.785398185 : f32
    %cst_189 = arith.constant 0.000000e+00 : f32
    %377 = vector.broadcast %cst_188 : f32 to vector<8x8xf32>
    %378 = vector.broadcast %cst_189 : f32 to vector<8x8xf32>
    %379 = arith.select %365, %377, %378 : vector<8x8xi1>, vector<8x8xf32>
    %cst_190 = arith.constant 1.57079637 : f32
    %380 = vector.broadcast %cst_190 : f32 to vector<8x8xf32>
    %381 = arith.select %361, %380, %379 : vector<8x8xi1>, vector<8x8xf32>
    %382 = arith.mulf %376, %376 : vector<8x8xf32>
    %cst_191 = arith.constant 0.0805374458 : f32
    %383 = vector.broadcast %cst_191 : f32 to vector<8x8xf32>
    %384 = arith.mulf %383, %382 : vector<8x8xf32>
    %cst_192 = arith.constant 0.138776854 : f32
    %385 = vector.broadcast %cst_192 : f32 to vector<8x8xf32>
    %386 = arith.subf %384, %385 : vector<8x8xf32>
    %387 = arith.mulf %386, %382 : vector<8x8xf32>
    %cst_193 = arith.constant 0.199777111 : f32
    %388 = vector.broadcast %cst_193 : f32 to vector<8x8xf32>
    %389 = arith.addf %387, %388 : vector<8x8xf32>
    %390 = arith.mulf %389, %382 : vector<8x8xf32>
    %cst_194 = arith.constant 0.333329499 : f32
    %391 = vector.broadcast %cst_194 : f32 to vector<8x8xf32>
    %392 = arith.subf %390, %391 : vector<8x8xf32>
    %393 = arith.mulf %392, %382 : vector<8x8xf32>
    %394 = arith.mulf %393, %376 : vector<8x8xf32>
    %395 = arith.addf %394, %376 : vector<8x8xf32>
    %396 = arith.addf %381, %395 : vector<8x8xf32>
    %397 = arith.mulf %358, %396 : vector<8x8xf32>
    %cst_195 = arith.constant 0.635999977 : f32
    %398 = vector.broadcast %cst_195 : f32 to vector<8x8xf32>
    %399 = arith.mulf %398, %397 : vector<8x8xf32>
    %cst_196 = arith.constant 2.000000e+00 : f32
    %400 = vector.broadcast %cst_196 : f32 to vector<8x8xf32>
    %401 = arith.mulf %400, %399 : vector<8x8xf32>
    %cst_197 = arith.constant dense<0.000000e+00> : vector<8xf32>
    %402 = vector.multi_reduction <add>, %401, %cst_197 [1] : vector<8x8xf32> to vector<8xf32>
    %403 = vector.shape_cast %402 : vector<8xf32> to vector<8x1xf32>
    %cst_198 = arith.constant 8.000000e+00 : f32
    %404 = vector.broadcast %cst_198 : f32 to vector<8x1xf32>
    %405 = arith.divf %403, %404 : vector<8x1xf32>
    %406 = vector.broadcast %405 : vector<8x1xf32> to vector<8x8xf32>
    %407 = arith.subf %401, %406 : vector<8x8xf32>
    %408 = math.exp %407 : vector<8x8xf32>
    %409 = arith.mulf %408, %338 : vector<8x8xf32>
    %410 = arith.addf %409, %353 : vector<8x8xf32>
    %c2_199 = arith.constant 2 : index
    %c0_200 = arith.constant 0 : index
    %c0_201 = arith.constant 0 : index
    %411 = vector.load %arg5[%c2_199, %c0_200, %c0_201] : memref<4x8x256xf32, #tpu.memory_space<vmem>>, vector<1x8x256xf32>
    %412 = vector.shape_cast %411 : vector<1x8x256xf32> to vector<8x256xf32>
    %cst_202 = arith.constant dense<0.000000e+00> : vector<8x256xf32>
    %413 = tpu.matmul %410, %412, %cst_202 {dimension_numbers = #tpu.dot_dimension_numbers<[1], [0], [0], [1], [0, 0, 1, 1], [], []>} : vector<8x8xf32>, vector<8x256xf32>, vector<8x256xf32> -> vector<8x256xf32>
    %c0_203 = arith.constant 0 : index
    %c1024 = arith.constant 1024 : index
    %414 = vector.load %arg16[%c0_203, %c1024] : memref<8x2048xf32, #tpu.memory_space<vmem>>, vector<8x256xf32>
    %415 = arith.addf %413, %414 : vector<8x256xf32>
    %cst_204 = arith.constant 0.000000e+00 : f32
    %416 = vector.broadcast %cst_204 : f32 to vector<8x256xf32>
    %417 = arith.maximumf %415, %416 : vector<8x256xf32>
    %418 = arith.truncf %417 : vector<8x256xf32> to vector<8x256xbf16>
    %c4 = arith.constant 4 : index
    %c0_205 = arith.constant 0 : index
    %c0_206 = arith.constant 0 : index
    %419 = vector.load %arg8[%c4, %c0_205, %c0_206] : memref<8x256x16xbf16, #tpu.memory_space<vmem>>, vector<1x256x16xbf16>
    %420 = vector.shape_cast %419 : vector<1x256x16xbf16> to vector<256x16xbf16>
    %cst_207 = arith.constant dense<0.000000e+00> : vector<8x16xf32>
    %421 = tpu.matmul %418, %420, %cst_207 {dimension_numbers = #tpu.dot_dimension_numbers<[1], [0], [0], [1], [0, 0, 1, 1], [], []>} : vector<8x256xbf16>, vector<256x16xbf16>, vector<8x16xf32> -> vector<8x16xf32>
    %c4_208 = arith.constant 4 : index
    %c0_209 = arith.constant 0 : index
    %c0_210 = arith.constant 0 : index
    %422 = vector.load %arg9[%c4_208, %c0_209, %c0_210] : memref<8x1x16xf32, #tpu.memory_space<vmem>>, vector<1x1x16xf32>
    %423 = vector.shape_cast %422 : vector<1x1x16xf32> to vector<1x16xf32>
    %424 = vector.broadcast %423 : vector<1x16xf32> to vector<8x16xf32>
    %425 = arith.addf %421, %424 : vector<8x16xf32>
    %426 = vector.extract_strided_slice %425 {offsets = [0, 0], sizes = [8, 8], strides = [1, 1]} : vector<8x16xf32> to vector<8x8xf32>
    %427 = vector.extract_strided_slice %425 {offsets = [0, 8], sizes = [8, 8], strides = [1, 1]} : vector<8x16xf32> to vector<8x8xf32>
    %cst_211 = arith.constant 0.000000e+00 : f32
    %428 = vector.broadcast %cst_211 : f32 to vector<8x8xf32>
    %429 = arith.cmpf olt, %426, %428 : vector<8x8xf32>
    %cst_212 = arith.constant -1.000000e+00 : f32
    %cst_213 = arith.constant 1.000000e+00 : f32
    %430 = vector.broadcast %cst_212 : f32 to vector<8x8xf32>
    %431 = vector.broadcast %cst_213 : f32 to vector<8x8xf32>
    %432 = arith.select %429, %430, %431 : vector<8x8xi1>, vector<8x8xf32>
    %433 = math.absf %426 : vector<8x8xf32>
    %cst_214 = arith.constant 2.41421366 : f32
    %434 = vector.broadcast %cst_214 : f32 to vector<8x8xf32>
    %435 = arith.cmpf ogt, %433, %434 : vector<8x8xf32>
    %cst_215 = arith.constant dense<true> : vector<8x8xi1>
    %436 = arith.xori %435, %cst_215 : vector<8x8xi1>
    %cst_216 = arith.constant 0.414213568 : f32
    %437 = vector.broadcast %cst_216 : f32 to vector<8x8xf32>
    %438 = arith.cmpf ogt, %433, %437 : vector<8x8xf32>
    %439 = arith.andi %436, %438 : vector<8x8xi1>
    %cst_217 = arith.constant 1.000000e+00 : f32
    %440 = vector.broadcast %cst_217 : f32 to vector<8x8xf32>
    %441 = arith.addf %433, %440 : vector<8x8xf32>
    %442 = arith.select %435, %433, %441 : vector<8x8xi1>, vector<8x8xf32>
    %443 = tpu.reciprocal %442 {approx = true} : vector<8x8xf32> -> vector<8x8xf32>
    %cst_218 = arith.constant 0.000000e+00 : f32
    %444 = vector.broadcast %cst_218 : f32 to vector<8x8xf32>
    %445 = arith.subf %444, %443 : vector<8x8xf32>
    %cst_219 = arith.constant 1.000000e+00 : f32
    %446 = vector.broadcast %cst_219 : f32 to vector<8x8xf32>
    %447 = arith.subf %433, %446 : vector<8x8xf32>
    %448 = arith.mulf %447, %443 : vector<8x8xf32>
    %449 = arith.select %439, %448, %433 : vector<8x8xi1>, vector<8x8xf32>
    %450 = arith.select %435, %445, %449 : vector<8x8xi1>, vector<8x8xf32>
    %cst_220 = arith.constant 0.785398185 : f32
    %cst_221 = arith.constant 0.000000e+00 : f32
    %451 = vector.broadcast %cst_220 : f32 to vector<8x8xf32>
    %452 = vector.broadcast %cst_221 : f32 to vector<8x8xf32>
    %453 = arith.select %439, %451, %452 : vector<8x8xi1>, vector<8x8xf32>
    %cst_222 = arith.constant 1.57079637 : f32
    %454 = vector.broadcast %cst_222 : f32 to vector<8x8xf32>
    %455 = arith.select %435, %454, %453 : vector<8x8xi1>, vector<8x8xf32>
    %456 = arith.mulf %450, %450 : vector<8x8xf32>
    %cst_223 = arith.constant 0.0805374458 : f32
    %457 = vector.broadcast %cst_223 : f32 to vector<8x8xf32>
    %458 = arith.mulf %457, %456 : vector<8x8xf32>
    %cst_224 = arith.constant 0.138776854 : f32
    %459 = vector.broadcast %cst_224 : f32 to vector<8x8xf32>
    %460 = arith.subf %458, %459 : vector<8x8xf32>
    %461 = arith.mulf %460, %456 : vector<8x8xf32>
    %cst_225 = arith.constant 0.199777111 : f32
    %462 = vector.broadcast %cst_225 : f32 to vector<8x8xf32>
    %463 = arith.addf %461, %462 : vector<8x8xf32>
    %464 = arith.mulf %463, %456 : vector<8x8xf32>
    %cst_226 = arith.constant 0.333329499 : f32
    %465 = vector.broadcast %cst_226 : f32 to vector<8x8xf32>
    %466 = arith.subf %464, %465 : vector<8x8xf32>
    %467 = arith.mulf %466, %456 : vector<8x8xf32>
    %468 = arith.mulf %467, %450 : vector<8x8xf32>
    %469 = arith.addf %468, %450 : vector<8x8xf32>
    %470 = arith.addf %455, %469 : vector<8x8xf32>
    %471 = arith.mulf %432, %470 : vector<8x8xf32>
    %cst_227 = arith.constant 0.635999977 : f32
    %472 = vector.broadcast %cst_227 : f32 to vector<8x8xf32>
    %473 = arith.mulf %472, %471 : vector<8x8xf32>
    %cst_228 = arith.constant 2.000000e+00 : f32
    %474 = vector.broadcast %cst_228 : f32 to vector<8x8xf32>
    %475 = arith.mulf %474, %473 : vector<8x8xf32>
    %cst_229 = arith.constant dense<0.000000e+00> : vector<8xf32>
    %476 = vector.multi_reduction <add>, %475, %cst_229 [1] : vector<8x8xf32> to vector<8xf32>
    %477 = vector.shape_cast %476 : vector<8xf32> to vector<8x1xf32>
    %cst_230 = arith.constant 8.000000e+00 : f32
    %478 = vector.broadcast %cst_230 : f32 to vector<8x1xf32>
    %479 = arith.divf %477, %478 : vector<8x1xf32>
    %480 = vector.broadcast %479 : vector<8x1xf32> to vector<8x8xf32>
    %481 = arith.subf %475, %480 : vector<8x8xf32>
    %482 = math.exp %481 : vector<8x8xf32>
    %483 = arith.mulf %482, %339 : vector<8x8xf32>
    %484 = arith.addf %483, %427 : vector<8x8xf32>
    %c2_231 = arith.constant 2 : index
    %c0_232 = arith.constant 0 : index
    %c0_233 = arith.constant 0 : index
    %485 = vector.load %arg6[%c2_231, %c0_232, %c0_233] : memref<3x8x256xf32, #tpu.memory_space<vmem>>, vector<1x8x256xf32>
    %486 = vector.shape_cast %485 : vector<1x8x256xf32> to vector<8x256xf32>
    %cst_234 = arith.constant dense<0.000000e+00> : vector<8x256xf32>
    %487 = tpu.matmul %410, %486, %cst_234 {dimension_numbers = #tpu.dot_dimension_numbers<[1], [0], [0], [1], [0, 0, 1, 1], [], []>} : vector<8x8xf32>, vector<8x256xf32>, vector<8x256xf32> -> vector<8x256xf32>
    %c2_235 = arith.constant 2 : index
    %c0_236 = arith.constant 0 : index
    %c0_237 = arith.constant 0 : index
    %488 = vector.load %arg7[%c2_235, %c0_236, %c0_237] : memref<3x8x256xf32, #tpu.memory_space<vmem>>, vector<1x8x256xf32>
    %489 = vector.shape_cast %488 : vector<1x8x256xf32> to vector<8x256xf32>
    %cst_238 = arith.constant dense<0.000000e+00> : vector<8x256xf32>
    %490 = tpu.matmul %484, %489, %cst_238 {dimension_numbers = #tpu.dot_dimension_numbers<[1], [0], [0], [1], [0, 0, 1, 1], [], []>} : vector<8x8xf32>, vector<8x256xf32>, vector<8x256xf32> -> vector<8x256xf32>
    %491 = arith.addf %487, %490 : vector<8x256xf32>
    %c2_239 = arith.constant 2 : index
    %c0_240 = arith.constant 0 : index
    %c0_241 = arith.constant 0 : index
    %492 = vector.load %arg13[%c2_239, %c0_240, %c0_241] : memref<4x8x16xf32, #tpu.memory_space<vmem>>, vector<1x8x16xf32>
    %493 = vector.shape_cast %492 : vector<1x8x16xf32> to vector<8x16xf32>
    %cst_242 = arith.constant dense<0.000000e+00> : vector<8x16xf32>
    %494 = tpu.matmul %410, %493, %cst_242 {dimension_numbers = #tpu.dot_dimension_numbers<[1], [0], [0], [1], [0, 0, 1, 1], [], []>} : vector<8x8xf32>, vector<8x16xf32>, vector<8x16xf32> -> vector<8x16xf32>
    %c2_243 = arith.constant 2 : index
    %c0_244 = arith.constant 0 : index
    %c0_245 = arith.constant 0 : index
    %495 = vector.load %arg14[%c2_243, %c0_244, %c0_245] : memref<4x8x16xf32, #tpu.memory_space<vmem>>, vector<1x8x16xf32>
    %496 = vector.shape_cast %495 : vector<1x8x16xf32> to vector<8x16xf32>
    %cst_246 = arith.constant dense<0.000000e+00> : vector<8x16xf32>
    %497 = tpu.matmul %484, %496, %cst_246 {dimension_numbers = #tpu.dot_dimension_numbers<[1], [0], [0], [1], [0, 0, 1, 1], [], []>} : vector<8x8xf32>, vector<8x16xf32>, vector<8x16xf32> -> vector<8x16xf32>
    %498 = arith.addf %494, %497 : vector<8x16xf32>
    %499 = vector.extract_strided_slice %498 {offsets = [0, 0], sizes = [8, 8], strides = [1, 1]} : vector<8x16xf32> to vector<8x8xf32>
    %500 = vector.extract_strided_slice %498 {offsets = [0, 8], sizes = [8, 8], strides = [1, 1]} : vector<8x16xf32> to vector<8x8xf32>
    %c0_247 = arith.constant 0 : index
    %c1792 = arith.constant 1792 : index
    %501 = vector.load %arg16[%c0_247, %c1792] : memref<8x2048xf32, #tpu.memory_space<vmem>>, vector<8x256xf32>
    %502 = arith.addf %491, %501 : vector<8x256xf32>
    %cst_248 = arith.constant 0.000000e+00 : f32
    %503 = vector.broadcast %cst_248 : f32 to vector<8x256xf32>
    %504 = arith.maximumf %502, %503 : vector<8x256xf32>
    %505 = arith.truncf %504 : vector<8x256xf32> to vector<8x256xbf16>
    %c7 = arith.constant 7 : index
    %c0_249 = arith.constant 0 : index
    %c0_250 = arith.constant 0 : index
    %506 = vector.load %arg8[%c7, %c0_249, %c0_250] : memref<8x256x16xbf16, #tpu.memory_space<vmem>>, vector<1x256x16xbf16>
    %507 = vector.shape_cast %506 : vector<1x256x16xbf16> to vector<256x16xbf16>
    %cst_251 = arith.constant dense<0.000000e+00> : vector<8x16xf32>
    %508 = tpu.matmul %505, %507, %cst_251 {dimension_numbers = #tpu.dot_dimension_numbers<[1], [0], [0], [1], [0, 0, 1, 1], [], []>} : vector<8x256xbf16>, vector<256x16xbf16>, vector<8x16xf32> -> vector<8x16xf32>
    %c7_252 = arith.constant 7 : index
    %c0_253 = arith.constant 0 : index
    %c0_254 = arith.constant 0 : index
    %509 = vector.load %arg9[%c7_252, %c0_253, %c0_254] : memref<8x1x16xf32, #tpu.memory_space<vmem>>, vector<1x1x16xf32>
    %510 = vector.shape_cast %509 : vector<1x1x16xf32> to vector<1x16xf32>
    %511 = vector.broadcast %510 : vector<1x16xf32> to vector<8x16xf32>
    %512 = arith.addf %508, %511 : vector<8x16xf32>
    %513 = vector.extract_strided_slice %512 {offsets = [0, 0], sizes = [8, 8], strides = [1, 1]} : vector<8x16xf32> to vector<8x8xf32>
    %514 = vector.extract_strided_slice %512 {offsets = [0, 8], sizes = [8, 8], strides = [1, 1]} : vector<8x16xf32> to vector<8x8xf32>
    %cst_255 = arith.constant 0.000000e+00 : f32
    %515 = vector.broadcast %cst_255 : f32 to vector<8x8xf32>
    %516 = arith.cmpf olt, %513, %515 : vector<8x8xf32>
    %cst_256 = arith.constant -1.000000e+00 : f32
    %cst_257 = arith.constant 1.000000e+00 : f32
    %517 = vector.broadcast %cst_256 : f32 to vector<8x8xf32>
    %518 = vector.broadcast %cst_257 : f32 to vector<8x8xf32>
    %519 = arith.select %516, %517, %518 : vector<8x8xi1>, vector<8x8xf32>
    %520 = math.absf %513 : vector<8x8xf32>
    %cst_258 = arith.constant 2.41421366 : f32
    %521 = vector.broadcast %cst_258 : f32 to vector<8x8xf32>
    %522 = arith.cmpf ogt, %520, %521 : vector<8x8xf32>
    %cst_259 = arith.constant dense<true> : vector<8x8xi1>
    %523 = arith.xori %522, %cst_259 : vector<8x8xi1>
    %cst_260 = arith.constant 0.414213568 : f32
    %524 = vector.broadcast %cst_260 : f32 to vector<8x8xf32>
    %525 = arith.cmpf ogt, %520, %524 : vector<8x8xf32>
    %526 = arith.andi %523, %525 : vector<8x8xi1>
    %cst_261 = arith.constant 1.000000e+00 : f32
    %527 = vector.broadcast %cst_261 : f32 to vector<8x8xf32>
    %528 = arith.addf %520, %527 : vector<8x8xf32>
    %529 = arith.select %522, %520, %528 : vector<8x8xi1>, vector<8x8xf32>
    %530 = tpu.reciprocal %529 {approx = true} : vector<8x8xf32> -> vector<8x8xf32>
    %cst_262 = arith.constant 0.000000e+00 : f32
    %531 = vector.broadcast %cst_262 : f32 to vector<8x8xf32>
    %532 = arith.subf %531, %530 : vector<8x8xf32>
    %cst_263 = arith.constant 1.000000e+00 : f32
    %533 = vector.broadcast %cst_263 : f32 to vector<8x8xf32>
    %534 = arith.subf %520, %533 : vector<8x8xf32>
    %535 = arith.mulf %534, %530 : vector<8x8xf32>
    %536 = arith.select %526, %535, %520 : vector<8x8xi1>, vector<8x8xf32>
    %537 = arith.select %522, %532, %536 : vector<8x8xi1>, vector<8x8xf32>
    %cst_264 = arith.constant 0.785398185 : f32
    %cst_265 = arith.constant 0.000000e+00 : f32
    %538 = vector.broadcast %cst_264 : f32 to vector<8x8xf32>
    %539 = vector.broadcast %cst_265 : f32 to vector<8x8xf32>
    %540 = arith.select %526, %538, %539 : vector<8x8xi1>, vector<8x8xf32>
    %cst_266 = arith.constant 1.57079637 : f32
    %541 = vector.broadcast %cst_266 : f32 to vector<8x8xf32>
    %542 = arith.select %522, %541, %540 : vector<8x8xi1>, vector<8x8xf32>
    %543 = arith.mulf %537, %537 : vector<8x8xf32>
    %cst_267 = arith.constant 0.0805374458 : f32
    %544 = vector.broadcast %cst_267 : f32 to vector<8x8xf32>
    %545 = arith.mulf %544, %543 : vector<8x8xf32>
    %cst_268 = arith.constant 0.138776854 : f32
    %546 = vector.broadcast %cst_268 : f32 to vector<8x8xf32>
    %547 = arith.subf %545, %546 : vector<8x8xf32>
    %548 = arith.mulf %547, %543 : vector<8x8xf32>
    %cst_269 = arith.constant 0.199777111 : f32
    %549 = vector.broadcast %cst_269 : f32 to vector<8x8xf32>
    %550 = arith.addf %548, %549 : vector<8x8xf32>
    %551 = arith.mulf %550, %543 : vector<8x8xf32>
    %cst_270 = arith.constant 0.333329499 : f32
    %552 = vector.broadcast %cst_270 : f32 to vector<8x8xf32>
    %553 = arith.subf %551, %552 : vector<8x8xf32>
    %554 = arith.mulf %553, %543 : vector<8x8xf32>
    %555 = arith.mulf %554, %537 : vector<8x8xf32>
    %556 = arith.addf %555, %537 : vector<8x8xf32>
    %557 = arith.addf %542, %556 : vector<8x8xf32>
    %558 = arith.mulf %519, %557 : vector<8x8xf32>
    %cst_271 = arith.constant 0.635999977 : f32
    %559 = vector.broadcast %cst_271 : f32 to vector<8x8xf32>
    %560 = arith.mulf %559, %558 : vector<8x8xf32>
    %cst_272 = arith.constant 2.000000e+00 : f32
    %561 = vector.broadcast %cst_272 : f32 to vector<8x8xf32>
    %562 = arith.mulf %561, %560 : vector<8x8xf32>
    %cst_273 = arith.constant dense<0.000000e+00> : vector<8xf32>
    %563 = vector.multi_reduction <add>, %562, %cst_273 [1] : vector<8x8xf32> to vector<8xf32>
    %564 = vector.shape_cast %563 : vector<8xf32> to vector<8x1xf32>
    %cst_274 = arith.constant 8.000000e+00 : f32
    %565 = vector.broadcast %cst_274 : f32 to vector<8x1xf32>
    %566 = arith.divf %564, %565 : vector<8x1xf32>
    %567 = vector.broadcast %566 : vector<8x1xf32> to vector<8x8xf32>
    %568 = arith.subf %562, %567 : vector<8x8xf32>
    %569 = math.exp %568 : vector<8x8xf32>
    %570 = arith.mulf %569, %499 : vector<8x8xf32>
    %571 = arith.addf %570, %514 : vector<8x8xf32>
    %c3_275 = arith.constant 3 : index
    %c0_276 = arith.constant 0 : index
    %c0_277 = arith.constant 0 : index
    %572 = vector.load %arg5[%c3_275, %c0_276, %c0_277] : memref<4x8x256xf32, #tpu.memory_space<vmem>>, vector<1x8x256xf32>
    %573 = vector.shape_cast %572 : vector<1x8x256xf32> to vector<8x256xf32>
    %cst_278 = arith.constant dense<0.000000e+00> : vector<8x256xf32>
    %574 = tpu.matmul %571, %573, %cst_278 {dimension_numbers = #tpu.dot_dimension_numbers<[1], [0], [0], [1], [0, 0, 1, 1], [], []>} : vector<8x8xf32>, vector<8x256xf32>, vector<8x256xf32> -> vector<8x256xf32>
    %c0_279 = arith.constant 0 : index
    %c1536 = arith.constant 1536 : index
    %575 = vector.load %arg16[%c0_279, %c1536] : memref<8x2048xf32, #tpu.memory_space<vmem>>, vector<8x256xf32>
    %576 = arith.addf %574, %575 : vector<8x256xf32>
    %cst_280 = arith.constant 0.000000e+00 : f32
    %577 = vector.broadcast %cst_280 : f32 to vector<8x256xf32>
    %578 = arith.maximumf %576, %577 : vector<8x256xf32>
    %579 = arith.truncf %578 : vector<8x256xf32> to vector<8x256xbf16>
    %c6 = arith.constant 6 : index
    %c0_281 = arith.constant 0 : index
    %c0_282 = arith.constant 0 : index
    %580 = vector.load %arg8[%c6, %c0_281, %c0_282] : memref<8x256x16xbf16, #tpu.memory_space<vmem>>, vector<1x256x16xbf16>
    %581 = vector.shape_cast %580 : vector<1x256x16xbf16> to vector<256x16xbf16>
    %cst_283 = arith.constant dense<0.000000e+00> : vector<8x16xf32>
    %582 = tpu.matmul %579, %581, %cst_283 {dimension_numbers = #tpu.dot_dimension_numbers<[1], [0], [0], [1], [0, 0, 1, 1], [], []>} : vector<8x256xbf16>, vector<256x16xbf16>, vector<8x16xf32> -> vector<8x16xf32>
    %c6_284 = arith.constant 6 : index
    %c0_285 = arith.constant 0 : index
    %c0_286 = arith.constant 0 : index
    %583 = vector.load %arg9[%c6_284, %c0_285, %c0_286] : memref<8x1x16xf32, #tpu.memory_space<vmem>>, vector<1x1x16xf32>
    %584 = vector.shape_cast %583 : vector<1x1x16xf32> to vector<1x16xf32>
    %585 = vector.broadcast %584 : vector<1x16xf32> to vector<8x16xf32>
    %586 = arith.addf %582, %585 : vector<8x16xf32>
    %587 = vector.extract_strided_slice %586 {offsets = [0, 0], sizes = [8, 8], strides = [1, 1]} : vector<8x16xf32> to vector<8x8xf32>
    %588 = vector.extract_strided_slice %586 {offsets = [0, 8], sizes = [8, 8], strides = [1, 1]} : vector<8x16xf32> to vector<8x8xf32>
    %cst_287 = arith.constant 0.000000e+00 : f32
    %589 = vector.broadcast %cst_287 : f32 to vector<8x8xf32>
    %590 = arith.cmpf olt, %587, %589 : vector<8x8xf32>
    %cst_288 = arith.constant -1.000000e+00 : f32
    %cst_289 = arith.constant 1.000000e+00 : f32
    %591 = vector.broadcast %cst_288 : f32 to vector<8x8xf32>
    %592 = vector.broadcast %cst_289 : f32 to vector<8x8xf32>
    %593 = arith.select %590, %591, %592 : vector<8x8xi1>, vector<8x8xf32>
    %594 = math.absf %587 : vector<8x8xf32>
    %cst_290 = arith.constant 2.41421366 : f32
    %595 = vector.broadcast %cst_290 : f32 to vector<8x8xf32>
    %596 = arith.cmpf ogt, %594, %595 : vector<8x8xf32>
    %cst_291 = arith.constant dense<true> : vector<8x8xi1>
    %597 = arith.xori %596, %cst_291 : vector<8x8xi1>
    %cst_292 = arith.constant 0.414213568 : f32
    %598 = vector.broadcast %cst_292 : f32 to vector<8x8xf32>
    %599 = arith.cmpf ogt, %594, %598 : vector<8x8xf32>
    %600 = arith.andi %597, %599 : vector<8x8xi1>
    %cst_293 = arith.constant 1.000000e+00 : f32
    %601 = vector.broadcast %cst_293 : f32 to vector<8x8xf32>
    %602 = arith.addf %594, %601 : vector<8x8xf32>
    %603 = arith.select %596, %594, %602 : vector<8x8xi1>, vector<8x8xf32>
    %604 = tpu.reciprocal %603 {approx = true} : vector<8x8xf32> -> vector<8x8xf32>
    %cst_294 = arith.constant 0.000000e+00 : f32
    %605 = vector.broadcast %cst_294 : f32 to vector<8x8xf32>
    %606 = arith.subf %605, %604 : vector<8x8xf32>
    %cst_295 = arith.constant 1.000000e+00 : f32
    %607 = vector.broadcast %cst_295 : f32 to vector<8x8xf32>
    %608 = arith.subf %594, %607 : vector<8x8xf32>
    %609 = arith.mulf %608, %604 : vector<8x8xf32>
    %610 = arith.select %600, %609, %594 : vector<8x8xi1>, vector<8x8xf32>
    %611 = arith.select %596, %606, %610 : vector<8x8xi1>, vector<8x8xf32>
    %cst_296 = arith.constant 0.785398185 : f32
    %cst_297 = arith.constant 0.000000e+00 : f32
    %612 = vector.broadcast %cst_296 : f32 to vector<8x8xf32>
    %613 = vector.broadcast %cst_297 : f32 to vector<8x8xf32>
    %614 = arith.select %600, %612, %613 : vector<8x8xi1>, vector<8x8xf32>
    %cst_298 = arith.constant 1.57079637 : f32
    %615 = vector.broadcast %cst_298 : f32 to vector<8x8xf32>
    %616 = arith.select %596, %615, %614 : vector<8x8xi1>, vector<8x8xf32>
    %617 = arith.mulf %611, %611 : vector<8x8xf32>
    %cst_299 = arith.constant 0.0805374458 : f32
    %618 = vector.broadcast %cst_299 : f32 to vector<8x8xf32>
    %619 = arith.mulf %618, %617 : vector<8x8xf32>
    %cst_300 = arith.constant 0.138776854 : f32
    %620 = vector.broadcast %cst_300 : f32 to vector<8x8xf32>
    %621 = arith.subf %619, %620 : vector<8x8xf32>
    %622 = arith.mulf %621, %617 : vector<8x8xf32>
    %cst_301 = arith.constant 0.199777111 : f32
    %623 = vector.broadcast %cst_301 : f32 to vector<8x8xf32>
    %624 = arith.addf %622, %623 : vector<8x8xf32>
    %625 = arith.mulf %624, %617 : vector<8x8xf32>
    %cst_302 = arith.constant 0.333329499 : f32
    %626 = vector.broadcast %cst_302 : f32 to vector<8x8xf32>
    %627 = arith.subf %625, %626 : vector<8x8xf32>
    %628 = arith.mulf %627, %617 : vector<8x8xf32>
    %629 = arith.mulf %628, %611 : vector<8x8xf32>
    %630 = arith.addf %629, %611 : vector<8x8xf32>
    %631 = arith.addf %616, %630 : vector<8x8xf32>
    %632 = arith.mulf %593, %631 : vector<8x8xf32>
    %cst_303 = arith.constant 0.635999977 : f32
    %633 = vector.broadcast %cst_303 : f32 to vector<8x8xf32>
    %634 = arith.mulf %633, %632 : vector<8x8xf32>
    %cst_304 = arith.constant 2.000000e+00 : f32
    %635 = vector.broadcast %cst_304 : f32 to vector<8x8xf32>
    %636 = arith.mulf %635, %634 : vector<8x8xf32>
    %cst_305 = arith.constant dense<0.000000e+00> : vector<8xf32>
    %637 = vector.multi_reduction <add>, %636, %cst_305 [1] : vector<8x8xf32> to vector<8xf32>
    %638 = vector.shape_cast %637 : vector<8xf32> to vector<8x1xf32>
    %cst_306 = arith.constant 8.000000e+00 : f32
    %639 = vector.broadcast %cst_306 : f32 to vector<8x1xf32>
    %640 = arith.divf %638, %639 : vector<8x1xf32>
    %641 = vector.broadcast %640 : vector<8x1xf32> to vector<8x8xf32>
    %642 = arith.subf %636, %641 : vector<8x8xf32>
    %643 = math.exp %642 : vector<8x8xf32>
    %644 = arith.mulf %643, %500 : vector<8x8xf32>
    %645 = arith.addf %644, %588 : vector<8x8xf32>
    %c3_307 = arith.constant 3 : index
    %c0_308 = arith.constant 0 : index
    %c0_309 = arith.constant 0 : index
    %646 = vector.load %arg13[%c3_307, %c0_308, %c0_309] : memref<4x8x16xf32, #tpu.memory_space<vmem>>, vector<1x8x16xf32>
    %647 = vector.shape_cast %646 : vector<1x8x16xf32> to vector<8x16xf32>
    %cst_310 = arith.constant dense<0.000000e+00> : vector<8x16xf32>
    %648 = tpu.matmul %571, %647, %cst_310 {dimension_numbers = #tpu.dot_dimension_numbers<[1], [0], [0], [1], [0, 0, 1, 1], [], []>} : vector<8x8xf32>, vector<8x16xf32>, vector<8x16xf32> -> vector<8x16xf32>
    %c3_311 = arith.constant 3 : index
    %c0_312 = arith.constant 0 : index
    %c0_313 = arith.constant 0 : index
    %649 = vector.load %arg14[%c3_311, %c0_312, %c0_313] : memref<4x8x16xf32, #tpu.memory_space<vmem>>, vector<1x8x16xf32>
    %650 = vector.shape_cast %649 : vector<1x8x16xf32> to vector<8x16xf32>
    %cst_314 = arith.constant dense<0.000000e+00> : vector<8x16xf32>
    %651 = tpu.matmul %645, %650, %cst_314 {dimension_numbers = #tpu.dot_dimension_numbers<[1], [0], [0], [1], [0, 0, 1, 1], [], []>} : vector<8x8xf32>, vector<8x16xf32>, vector<8x16xf32> -> vector<8x16xf32>
    %652 = arith.addf %648, %651 : vector<8x16xf32>
    %653 = arith.addf %652, %0 : vector<8x16xf32>
    %c0_315 = arith.constant 0 : index
    %c0_316 = arith.constant 0 : index
    %654 = vector.load %arg15[%c0_315, %c0_316] : memref<8x16xf32, #tpu.memory_space<vmem>>, vector<8x16xf32>
    tpu.vector_store %arg15[%c0_315, %c0_316], %653 {strides = array<i32>} : memref<8x16xf32, #tpu.memory_space<vmem>>, vector<8x16xf32>,
    return
  }
  func.func @transform_0(%arg0: i32) -> (i32, i32) {
    %c0_i32 = arith.constant 0 : i32
    %c0_i32_0 = arith.constant 0 : i32
    return %arg0, %c0_i32 : i32, i32
  }
  func.func @transform_1(%arg0: i32) -> (i32, i32) {
    %c0_i32 = arith.constant 0 : i32
    %c0_i32_0 = arith.constant 0 : i32
    return %arg0, %c0_i32 : i32, i32
  }
  func.func @transform_2(%arg0: i32) -> (i32, i32) {
    %c0_i32 = arith.constant 0 : i32
    %c0_i32_0 = arith.constant 0 : i32
    return %arg0, %c0_i32 : i32, i32
  }
  func.func @transform_3(%arg0: i32) -> (i32, i32) {
    %c0_i32 = arith.constant 0 : i32
    %c0_i32_0 = arith.constant 0 : i32
    %c0_i32_1 = arith.constant 0 : i32
    return %c0_i32, %c0_i32_0 : i32, i32
  }
  func.func @transform_4(%arg0: i32) -> (i32, i32, i32) {
    %c0_i32 = arith.constant 0 : i32
    %c0_i32_0 = arith.constant 0 : i32
    %c0_i32_1 = arith.constant 0 : i32
    %c0_i32_2 = arith.constant 0 : i32
    return %c0_i32, %c0_i32_0, %c0_i32_1 : i32, i32, i32
  }
  func.func @transform_5(%arg0: i32) -> (i32, i32, i32) {
    %c0_i32 = arith.constant 0 : i32
    %c0_i32_0 = arith.constant 0 : i32
    %c0_i32_1 = arith.constant 0 : i32
    %c0_i32_2 = arith.constant 0 : i32
    return %c0_i32, %c0_i32_0, %c0_i32_1 : i32, i32, i32
  }
  func.func @transform_6(%arg0: i32) -> (i32, i32, i32) {
    %c0_i32 = arith.constant 0 : i32
    %c0_i32_0 = arith.constant 0 : i32
    %c0_i32_1 = arith.constant 0 : i32
    %c0_i32_2 = arith.constant 0 : i32
    return %c0_i32, %c0_i32_0, %c0_i32_1 : i32, i32, i32
  }
  func.func @transform_7(%arg0: i32) -> (i32, i32, i32) {
    %c0_i32 = arith.constant 0 : i32
    %c0_i32_0 = arith.constant 0 : i32
    %c0_i32_1 = arith.constant 0 : i32
    %c0_i32_2 = arith.constant 0 : i32
    return %c0_i32, %c0_i32_0, %c0_i32_1 : i32, i32, i32
  }
  func.func @transform_8(%arg0: i32) -> (i32, i32, i32) {
    %c0_i32 = arith.constant 0 : i32
    %c0_i32_0 = arith.constant 0 : i32
    %c0_i32_1 = arith.constant 0 : i32
    %c0_i32_2 = arith.constant 0 : i32
    return %c0_i32, %c0_i32_0, %c0_i32_1 : i32, i32, i32
  }
  func.func @transform_9(%arg0: i32) -> (i32, i32) {
    %c0_i32 = arith.constant 0 : i32
    %c0_i32_0 = arith.constant 0 : i32
    %c0_i32_1 = arith.constant 0 : i32
    return %c0_i32, %c0_i32_0 : i32, i32
  }
  func.func @transform_10(%arg0: i32) -> (i32, i32) {
    %c0_i32 = arith.constant 0 : i32
    %c0_i32_0 = arith.constant 0 : i32
    %c0_i32_1 = arith.constant 0 : i32
    return %c0_i32, %c0_i32_0 : i32, i32
  }
  func.func @transform_11(%arg0: i32) -> (i32, i32) {
    %c0_i32 = arith.constant 0 : i32
    %c0_i32_0 = arith.constant 0 : i32
    %c0_i32_1 = arith.constant 0 : i32
    return %c0_i32, %c0_i32_0 : i32, i32
  }
  func.func @transform_12(%arg0: i32) -> (i32, i32, i32) {
    %c0_i32 = arith.constant 0 : i32
    %c0_i32_0 = arith.constant 0 : i32
    %c0_i32_1 = arith.constant 0 : i32
    %c0_i32_2 = arith.constant 0 : i32
    return %c0_i32, %c0_i32_0, %c0_i32_1 : i32, i32, i32
  }
  func.func @transform_13(%arg0: i32) -> (i32, i32, i32) {
    %c0_i32 = arith.constant 0 : i32
    %c0_i32_0 = arith.constant 0 : i32
    %c0_i32_1 = arith.constant 0 : i32
    %c0_i32_2 = arith.constant 0 : i32
    return %c0_i32, %c0_i32_0, %c0_i32_1 : i32, i32, i32
  }
  func.func @transform_14(%arg0: i32) -> (i32, i32) {
    %c0_i32 = arith.constant 0 : i32
    %c0_i32_0 = arith.constant 0 : i32
    return %arg0, %c0_i32 : i32, i32
  }
}

</mosaic_0001>

<llo_original>
// kernel: tpu_custom_call.1
$region0: #{tpu_custom_call.1}
  #allocation0 [shape = 'u32[]', space=smem, size = 0x4, offset = 0x4, fixed_abs, tag = 'smem constant byte address 0x4 - core index']
  #allocation1 [shape = 'u32[144,128]{1,0:T(1,128)}', space=vmem, size = 0x12000, scoped, tag = 'internal scratch']
  #allocation2 [shape = 'f32[8,2048]{1,0:T(8,128)}', space=vmem, size = 0x10000, scoped, tag = 'scratch operand']
  %s0 = inlined_call_operand.vmem [shape: f32[32,16], index: 0, kind: input, shape index: {}]
  %s1 = inlined_call_operand.vmem [shape: f32[32,16], index: 1, kind: input, shape index: {}]
  %s2 = inlined_call_operand.vmem [shape: f32[32,4], index: 2, kind: input, shape index: {}]
  %s3 = inlined_call_operand.vmem [shape: f32[16,256], index: 3, kind: input, shape index: {}]
  %s4 = inlined_call_operand.vmem [shape: f32[4,8,256], index: 4, kind: input, shape index: {}]
  %s5 = inlined_call_operand.vmem [shape: f32[3,8,256], index: 5, kind: input, shape index: {}]
  %s6 = inlined_call_operand.vmem [shape: f32[3,8,256], index: 6, kind: input, shape index: {}]
  %s7 = inlined_call_operand.vmem [shape: bf16[8,256,16], index: 7, kind: input, shape index: {}]
  %s8 = inlined_call_operand.vmem [shape: f32[8,1,16], index: 8, kind: input, shape index: {}]
  %s9 = inlined_call_operand.vmem [shape: bf16[16,2048], index: 9, kind: input, shape index: {}]
  %s10 = inlined_call_operand.vmem [shape: bf16[4,2048], index: 10, kind: input, shape index: {}]
  %s11 = inlined_call_operand.vmem [shape: f32[1,2048], index: 11, kind: input, shape index: {}]
  %s12 = inlined_call_operand.vmem [shape: f32[4,8,16], index: 12, kind: input, shape index: {}]
  %s13 = inlined_call_operand.vmem [shape: f32[4,8,16], index: 13, kind: input, shape index: {}]
  %s14 = inlined_call_operand.vmem [shape: f32[32,16], index: 14, kind: output, shape index: {}]
  %s15 = sld [smem:[#allocation0]]
  $region89: #{tpu_custom_call.1} parent=0
    _
  %s17 = ssub.s32 1, %s15
  %s18 = scalar_select 0, %s17, %s15
  loop: start=0, step=1, limit=6
  $region2: #{tpu_custom_call.1} parent=0 // loop_pre_header
    _
  $region3: #{tpu_custom_call.1} parent=0 // loop_header
    %s20 = sphi 0, %s24
    %p21 = scmp.ge.s32.totalorder %s20, 6
    %s30 = sphi 0, %s32
    %s33 = sphi 0, %s30
    %s34 = sphi 0, %s33
    %s50 = sphi 0, %s34
    %s56 = sphi 0, %s58
    %s59 = sphi 0, %s56
    %s60 = sphi 0, %s59
    %s76 = sphi 0, %s60
    %s82 = sphi 0, %s84
    %s85 = sphi 0, %s82
    %s86 = sphi 0, %s85
    %s102 = sphi 0, %s86
    %s106 = sphi 0, %s106
    %s108 = sphi 0, %s106
    %s109 = sphi 0, %s108
    %s123 = sphi 0, %s109
    %s127 = sphi 0, %s127
    %s129 = sphi 0, %s127
    %s130 = sphi 0, %s129
    %s144 = sphi 0, %s130
    %s148 = sphi 0, %s148
    %s150 = sphi 0, %s148
    %s151 = sphi 0, %s150
    %s165 = sphi 0, %s151
    %s169 = sphi 0, %s169
    %s171 = sphi 0, %s169
    %s172 = sphi 0, %s171
    %s186 = sphi 0, %s172
    %s190 = sphi 0, %s190
    %s192 = sphi 0, %s190
    %s193 = sphi 0, %s192
    %s207 = sphi 0, %s193
    %s211 = sphi 0, %s211
    %s213 = sphi 0, %s211
    %s214 = sphi 0, %s213
    %s228 = sphi 0, %s214
    %s232 = sphi 0, %s232
    %s234 = sphi 0, %s232
    %s235 = sphi 0, %s234
    %s249 = sphi 0, %s235
    %s253 = sphi 0, %s253
    %s255 = sphi 0, %s253
    %s256 = sphi 0, %s255
    %s270 = sphi 0, %s256
    %s274 = sphi 0, %s274
    %s276 = sphi 0, %s274
    %s277 = sphi 0, %s276
    %s291 = sphi 0, %s277
    %s295 = sphi 0, %s295
    %s297 = sphi 0, %s295
    %s298 = sphi 0, %s297
    %s312 = sphi 0, %s298
    %s316 = sphi 0, %s316
    %s318 = sphi 0, %s316
    %s319 = sphi 0, %s318
    %s333 = sphi 0, %s319
    %s339 = sphi 0, %s341
    %s342 = sphi 0, %s339
    %s343 = sphi 0, %s342
    %s359 = sphi 0, %s343
  $region4: #{tpu_custom_call.1} parent=0 // loop_header_branch
    %23 = sbr.rel (%p21) target = $region8
  $region5: #{tpu_custom_call.1} parent=0 // loop_body
    %s25 = ssub.s32 %s20, 1
    %s26 = ssub.s32 %s20, 2
    %s27 = sadd.s32 %s20, 1
    %s28 = ssub.s32 %s20, %s27
    %p29 = scmp.eq.s32.totalorder %s28, 0
    %s31 = sadd.s32 %s30, 1
    %s32 = scalar_select %p29, %s30, %s31
    %p35 = pneg %p29
    %p36 = scmp.eq.s32.totalorder %s20, 3
    %p37 = por %p35, %p36
    %p38 = scmp.ne.s32.totalorder %s30, %s33
    %p39 = scmp.eq.s32.totalorder %s20, 0
    %p40 = por %p38, %p39
    %p41 = scmp.ne.s32.totalorder %s30, %s33
    %p42 = scmp.eq.s32.totalorder %s25, 3
    %p43 = por %p41, %p42
    %p44 = scmp.ne.s32.totalorder %s33, %s34
    %p45 = scmp.eq.s32.totalorder %s25, 0
    %p46 = por %p44, %p45
    %p47 = scmp.ne.s32.totalorder %s33, %s34
    %p48 = scmp.eq.s32.totalorder %s26, 3
    %p49 = por %p47, %p48
    %p51 = scmp.ne.s32.totalorder %s34, %s50
    %p52 = scmp.eq.s32.totalorder %s26, 0
    %p53 = por %p51, %p52
    %s54 = ssub.s32 %s20, %s27
    %p55 = scmp.eq.s32.totalorder %s54, 0
    %s57 = sadd.s32 %s56, 1
    %s58 = scalar_select %p55, %s56, %s57
    %p61 = pneg %p55
    %p62 = scmp.eq.s32.totalorder %s20, 3
    %p63 = por %p61, %p62
    %p64 = scmp.ne.s32.totalorder %s56, %s59
    %p65 = scmp.eq.s32.totalorder %s20, 0
    %p66 = por %p64, %p65
    %p67 = scmp.ne.s32.totalorder %s56, %s59
    %p68 = scmp.eq.s32.totalorder %s25, 3
    %p69 = por %p67, %p68
    %p70 = scmp.ne.s32.totalorder %s59, %s60
    %p71 = scmp.eq.s32.totalorder %s25, 0
    %p72 = por %p70, %p71
    %p73 = scmp.ne.s32.totalorder %s59, %s60
    %p74 = scmp.eq.s32.totalorder %s26, 3
    %p75 = por %p73, %p74
    %p77 = scmp.ne.s32.totalorder %s60, %s76
    %p78 = scmp.eq.s32.totalorder %s26, 0
    %p79 = por %p77, %p78
    %s80 = ssub.s32 %s20, %s27
    %p81 = scmp.eq.s32.totalorder %s80, 0
    %s83 = sadd.s32 %s82, 1
    %s84 = scalar_select %p81, %s82, %s83
    %p87 = pneg %p81
    %p88 = scmp.eq.s32.totalorder %s20, 3
    %p89 = por %p87, %p88
    %p90 = scmp.ne.s32.totalorder %s82, %s85
    %p91 = scmp.eq.s32.totalorder %s20, 0
    %p92 = por %p90, %p91
    %p93 = scmp.ne.s32.totalorder %s82, %s85
    %p94 = scmp.eq.s32.totalorder %s25, 3
    %p95 = por %p93, %p94
    %p96 = scmp.ne.s32.totalorder %s85, %s86
    %p97 = scmp.eq.s32.totalorder %s25, 0
    %p98 = por %p96, %p97
    %p99 = scmp.ne.s32.totalorder %s85, %s86
    %p100 = scmp.eq.s32.totalorder %s26, 3
    %p101 = por %p99, %p100
    %p103 = scmp.ne.s32.totalorder %s86, %s102
    %p104 = scmp.eq.s32.totalorder %s26, 0
    %p105 = por %p103, %p104
    %s107 = sadd.s32 %s106, 1
    %p110 = scmp.eq.s32.totalorder %s20, 3
    %p111 = scmp.ne.s32.totalorder %s106, %s108
    %p112 = scmp.eq.s32.totalorder %s20, 0
    %p113 = por %p111, %p112
    %p114 = scmp.ne.s32.totalorder %s106, %s108
    %p115 = scmp.eq.s32.totalorder %s25, 3
    %p116 = por %p114, %p115
    %p117 = scmp.ne.s32.totalorder %s108, %s109
    %p118 = scmp.eq.s32.totalorder %s25, 0
    %p119 = por %p117, %p118
    %p120 = scmp.ne.s32.totalorder %s108, %s109
    %p121 = scmp.eq.s32.totalorder %s26, 3
    %p122 = por %p120, %p121
    %p124 = scmp.ne.s32.totalorder %s109, %s123
    %p125 = scmp.eq.s32.totalorder %s26, 0
    %p126 = por %p124, %p125
    %s128 = sadd.s32 %s127, 1
    %p131 = scmp.eq.s32.totalorder %s20, 3
    %p132 = scmp.ne.s32.totalorder %s127, %s129
    %p133 = scmp.eq.s32.totalorder %s20, 0
    %p134 = por %p132, %p133
    %p135 = scmp.ne.s32.totalorder %s127, %s129
    %p136 = scmp.eq.s32.totalorder %s25, 3
    %p137 = por %p135, %p136
    %p138 = scmp.ne.s32.totalorder %s129, %s130
    %p139 = scmp.eq.s32.totalorder %s25, 0
    %p140 = por %p138, %p139
    %p141 = scmp.ne.s32.totalorder %s129, %s130
    %p142 = scmp.eq.s32.totalorder %s26, 3
    %p143 = por %p141, %p142
    %p145 = scmp.ne.s32.totalorder %s130, %s144
    %p146 = scmp.eq.s32.totalorder %s26, 0
    %p147 = por %p145, %p146
    %s149 = sadd.s32 %s148, 1
    %p152 = scmp.eq.s32.totalorder %s20, 3
    %p153 = scmp.ne.s32.totalorder %s148, %s150
    %p154 = scmp.eq.s32.totalorder %s20, 0
    %p155 = por %p153, %p154
    %p156 = scmp.ne.s32.totalorder %s148, %s150
    %p157 = scmp.eq.s32.totalorder %s25, 3
    %p158 = por %p156, %p157
    %p159 = scmp.ne.s32.totalorder %s150, %s151
    %p160 = scmp.eq.s32.totalorder %s25, 0
    %p161 = por %p159, %p160
    %p162 = scmp.ne.s32.totalorder %s150, %s151
    %p163 = scmp.eq.s32.totalorder %s26, 3
    %p164 = por %p162, %p163
    %p166 = scmp.ne.s32.totalorder %s151, %s165
    %p167 = scmp.eq.s32.totalorder %s26, 0
    %p168 = por %p166, %p167
    %s170 = sadd.s32 %s169, 1
    %p173 = scmp.eq.s32.totalorder %s20, 3
    %p174 = scmp.ne.s32.totalorder %s169, %s171
    %p175 = scmp.eq.s32.totalorder %s20, 0
    %p176 = por %p174, %p175
    %p177 = scmp.ne.s32.totalorder %s169, %s171
    %p178 = scmp.eq.s32.totalorder %s25, 3
    %p179 = por %p177, %p178
    %p180 = scmp.ne.s32.totalorder %s171, %s172
    %p181 = scmp.eq.s32.totalorder %s25, 0
    %p182 = por %p180, %p181
    %p183 = scmp.ne.s32.totalorder %s171, %s172
    %p184 = scmp.eq.s32.totalorder %s26, 3
    %p185 = por %p183, %p184
    %p187 = scmp.ne.s32.totalorder %s172, %s186
    %p188 = scmp.eq.s32.totalorder %s26, 0
    %p189 = por %p187, %p188
    %s191 = sadd.s32 %s190, 1
    %p194 = scmp.eq.s32.totalorder %s20, 3
    %p195 = scmp.ne.s32.totalorder %s190, %s192
    %p196 = scmp.eq.s32.totalorder %s20, 0
    %p197 = por %p195, %p196
    %p198 = scmp.ne.s32.totalorder %s190, %s192
    %p199 = scmp.eq.s32.totalorder %s25, 3
    %p200 = por %p198, %p199
    %p201 = scmp.ne.s32.totalorder %s192, %s193
    %p202 = scmp.eq.s32.totalorder %s25, 0
    %p203 = por %p201, %p202
    %p204 = scmp.ne.s32.totalorder %s192, %s193
    %p205 = scmp.eq.s32.totalorder %s26, 3
    %p206 = por %p204, %p205
    %p208 = scmp.ne.s32.totalorder %s193, %s207
    %p209 = scmp.eq.s32.totalorder %s26, 0
    %p210 = por %p208, %p209
    %s212 = sadd.s32 %s211, 1
    %p215 = scmp.eq.s32.totalorder %s20, 3
    %p216 = scmp.ne.s32.totalorder %s211, %s213
    %p217 = scmp.eq.s32.totalorder %s20, 0
    %p218 = por %p216, %p217
    %p219 = scmp.ne.s32.totalorder %s211, %s213
    %p220 = scmp.eq.s32.totalorder %s25, 3
    %p221 = por %p219, %p220
    %p222 = scmp.ne.s32.totalorder %s213, %s214
    %p223 = scmp.eq.s32.totalorder %s25, 0
    %p224 = por %p222, %p223
    %p225 = scmp.ne.s32.totalorder %s213, %s214
    %p226 = scmp.eq.s32.totalorder %s26, 3
    %p227 = por %p225, %p226
    %p229 = scmp.ne.s32.totalorder %s214, %s228
    %p230 = scmp.eq.s32.totalorder %s26, 0
    %p231 = por %p229, %p230
    %s233 = sadd.s32 %s232, 1
    %p236 = scmp.eq.s32.totalorder %s20, 3
    %p237 = scmp.ne.s32.totalorder %s232, %s234
    %p238 = scmp.eq.s32.totalorder %s20, 0
    %p239 = por %p237, %p238
    %p240 = scmp.ne.s32.totalorder %s232, %s234
    %p241 = scmp.eq.s32.totalorder %s25, 3
    %p242 = por %p240, %p241
    %p243 = scmp.ne.s32.totalorder %s234, %s235
    %p244 = scmp.eq.s32.totalorder %s25, 0
    %p245 = por %p243, %p244
    %p246 = scmp.ne.s32.totalorder %s234, %s235
    %p247 = scmp.eq.s32.totalorder %s26, 3
    %p248 = por %p246, %p247
    %p250 = scmp.ne.s32.totalorder %s235, %s249
    %p251 = scmp.eq.s32.totalorder %s26, 0
    %p252 = por %p250, %p251
    %s254 = sadd.s32 %s253, 1
    %p257 = scmp.eq.s32.totalorder %s20, 3
    %p258 = scmp.ne.s32.totalorder %s253, %s255
    %p259 = scmp.eq.s32.totalorder %s20, 0
    %p260 = por %p258, %p259
    %p261 = scmp.ne.s32.totalorder %s253, %s255
    %p262 = scmp.eq.s32.totalorder %s25, 3
    %p263 = por %p261, %p262
    %p264 = scmp.ne.s32.totalorder %s255, %s256
    %p265 = scmp.eq.s32.totalorder %s25, 0
    %p266 = por %p264, %p265
    %p267 = scmp.ne.s32.totalorder %s255, %s256
    %p268 = scmp.eq.s32.totalorder %s26, 3
    %p269 = por %p267, %p268
    %p271 = scmp.ne.s32.totalorder %s256, %s270
    %p272 = scmp.eq.s32.totalorder %s26, 0
    %p273 = por %p271, %p272
    %s275 = sadd.s32 %s274, 1
    %p278 = scmp.eq.s32.totalorder %s20, 3
    %p279 = scmp.ne.s32.totalorder %s274, %s276
    %p280 = scmp.eq.s32.totalorder %s20, 0
    %p281 = por %p279, %p280
    %p282 = scmp.ne.s32.totalorder %s274, %s276
    %p283 = scmp.eq.s32.totalorder %s25, 3
    %p284 = por %p282, %p283
    %p285 = scmp.ne.s32.totalorder %s276, %s277
    %p286 = scmp.eq.s32.totalorder %s25, 0
    %p287 = por %p285, %p286
    %p288 = scmp.ne.s32.totalorder %s276, %s277
    %p289 = scmp.eq.s32.totalorder %s26, 3
    %p290 = por %p288, %p289
    %p292 = scmp.ne.s32.totalorder %s277, %s291
    %p293 = scmp.eq.s32.totalorder %s26, 0
    %p294 = por %p292, %p293
    %s296 = sadd.s32 %s295, 1
    %p299 = scmp.eq.s32.totalorder %s20, 3
    %p300 = scmp.ne.s32.totalorder %s295, %s297
    %p301 = scmp.eq.s32.totalorder %s20, 0
    %p302 = por %p300, %p301
    %p303 = scmp.ne.s32.totalorder %s295, %s297
    %p304 = scmp.eq.s32.totalorder %s25, 3
    %p305 = por %p303, %p304
    %p306 = scmp.ne.s32.totalorder %s297, %s298
    %p307 = scmp.eq.s32.totalorder %s25, 0
    %p308 = por %p306, %p307
    %p309 = scmp.ne.s32.totalorder %s297, %s298
    %p310 = scmp.eq.s32.totalorder %s26, 3
    %p311 = por %p309, %p310
    %p313 = scmp.ne.s32.totalorder %s298, %s312
    %p314 = scmp.eq.s32.totalorder %s26, 0
    %p315 = por %p313, %p314
    %s317 = sadd.s32 %s316, 1
    %p320 = scmp.eq.s32.totalorder %s20, 3
    %p321 = scmp.ne.s32.totalorder %s316, %s318
    %p322 = scmp.eq.s32.totalorder %s20, 0
    %p323 = por %p321, %p322
    %p324 = scmp.ne.s32.totalorder %s316, %s318
    %p325 = scmp.eq.s32.totalorder %s25, 3
    %p326 = por %p324, %p325
    %p327 = scmp.ne.s32.totalorder %s318, %s319
    %p328 = scmp.eq.s32.totalorder %s25, 0
    %p329 = por %p327, %p328
    %p330 = scmp.ne.s32.totalorder %s318, %s319
    %p331 = scmp.eq.s32.totalorder %s26, 3
    %p332 = por %p330, %p331
    %p334 = scmp.ne.s32.totalorder %s319, %s333
    %p335 = scmp.eq.s32.totalorder %s26, 0
    %p336 = por %p334, %p335
    %s337 = ssub.s32 %s20, %s27
    %p338 = scmp.eq.s32.totalorder %s337, 0
    %s340 = sadd.s32 %s339, 1
    %s341 = scalar_select %p338, %s339, %s340
    %p344 = pneg %p338
    %p345 = scmp.eq.s32.totalorder %s20, 3
    %p346 = por %p344, %p345
    %p347 = scmp.ne.s32.totalorder %s339, %s342
    %p348 = scmp.eq.s32.totalorder %s20, 0
    %p349 = por %p347, %p348
    %p350 = scmp.ne.s32.totalorder %s339, %s342
    %p351 = scmp.eq.s32.totalorder %s25, 3
    %p352 = por %p350, %p351
    %p353 = scmp.ne.s32.totalorder %s342, %s343
    %p354 = scmp.eq.s32.totalorder %s25, 0
    %p355 = por %p353, %p354
    %p356 = scmp.ne.s32.totalorder %s342, %s343
    %p357 = scmp.eq.s32.totalorder %s26, 3
    %p358 = por %p356, %p357
    %p360 = scmp.ne.s32.totalorder %s343, %s359
    %p361 = scmp.eq.s32.totalorder %s26, 0
    %p362 = por %p360, %p361
    %p363 = scmp.le.s32.totalorder 1, %s20
    %p364 = scmp.lt.s32.totalorder %s20, 5
    %p365 = pnand %p363, %p364
    %p366 = pneg %p365
    // Predicated region
    $region9: #{tpu_custom_call.1} parent=5 // pred_check
      _
    $region10: #{tpu_custom_call.1} parent=5 // pred_check_branch
      %368 = sbr.rel (%p365) target = $region12
    $region11: #{tpu_custom_call.1} parent=5 // pred_region
      %s369 = ssub.s32 %s20, 1
      // Predicated region
      $region13: #{tpu_custom_call.1} parent=11 // pred_check
        %p370 = pneg %p119
      $region14: #{tpu_custom_call.1} parent=11 // pred_check_branch
        %372 = sbr.rel (%p370) target = $region16
      $region15: #{tpu_custom_call.1} parent=11 // pred_region
        _
      $region16: #{tpu_custom_call.1} parent=11 // pred_fallthru
        _
      // Predicated region
      $region17: #{tpu_custom_call.1} parent=11 // pred_check
        %p373 = pneg %p140
      $region18: #{tpu_custom_call.1} parent=11 // pred_check_branch
        %375 = sbr.rel (%p373) target = $region20
      $region19: #{tpu_custom_call.1} parent=11 // pred_region
        _
      $region20: #{tpu_custom_call.1} parent=11 // pred_fallthru
        _
      // Predicated region
      $region21: #{tpu_custom_call.1} parent=11 // pred_check
        %p376 = pneg %p161
      $region22: #{tpu_custom_call.1} parent=11 // pred_check_branch
        %378 = sbr.rel (%p376) target = $region24
      $region23: #{tpu_custom_call.1} parent=11 // pred_region
        _
      $region24: #{tpu_custom_call.1} parent=11 // pred_fallthru
        _
      // Predicated region
      $region25: #{tpu_custom_call.1} parent=11 // pred_check
        %p379 = pneg %p182
      $region26: #{tpu_custom_call.1} parent=11 // pred_check_branch
        %381 = sbr.rel (%p379) target = $region28
      $region27: #{tpu_custom_call.1} parent=11 // pred_region
        _
      $region28: #{tpu_custom_call.1} parent=11 // pred_fallthru
        _
      // Predicated region
      $region29: #{tpu_custom_call.1} parent=11 // pred_check
        %p382 = pneg %p203
      $region30: #{tpu_custom_call.1} parent=11 // pred_check_branch
        %384 = sbr.rel (%p382) target = $region32
      $region31: #{tpu_custom_call.1} parent=11 // pred_region
        _
      $region32: #{tpu_custom_call.1} parent=11 // pred_fallthru
        _
      // Predicated region
      $region33: #{tpu_custom_call.1} parent=11 // pred_check
        %p385 = pneg %p224
      $region34: #{tpu_custom_call.1} parent=11 // pred_check_branch
        %387 = sbr.rel (%p385) target = $region36
      $region35: #{tpu_custom_call.1} parent=11 // pred_region
        _
      $region36: #{tpu_custom_call.1} parent=11 // pred_fallthru
        _
      // Predicated region
      $region37: #{tpu_custom_call.1} parent=11 // pred_check
        %p388 = pneg %p245
      $region38: #{tpu_custom_call.1} parent=11 // pred_check_branch
        %390 = sbr.rel (%p388) target = $region40
      $region39: #{tpu_custom_call.1} parent=11 // pred_region
        _
      $region40: #{tpu_custom_call.1} parent=11 // pred_fallthru
        _
      // Predicated region
      $region41: #{tpu_custom_call.1} parent=11 // pred_check
        %p391 = pneg %p266
      $region42: #{tpu_custom_call.1} parent=11 // pred_check_branch
        %393 = sbr.rel (%p391) target = $region44
      $region43: #{tpu_custom_call.1} parent=11 // pred_region
        _
      $region44: #{tpu_custom_call.1} parent=11 // pred_fallthru
        _
      // Predicated region
      $region45: #{tpu_custom_call.1} parent=11 // pred_check
        %p394 = pneg %p287
      $region46: #{tpu_custom_call.1} parent=11 // pred_check_branch
        %396 = sbr.rel (%p394) target = $region48
      $region47: #{tpu_custom_call.1} parent=11 // pred_region
        _
      $region48: #{tpu_custom_call.1} parent=11 // pred_fallthru
        _
      // Predicated region
      $region49: #{tpu_custom_call.1} parent=11 // pred_check
        %p397 = pneg %p308
      $region50: #{tpu_custom_call.1} parent=11 // pred_check_branch
        %399 = sbr.rel (%p397) target = $region52
      $region51: #{tpu_custom_call.1} parent=11 // pred_region
        _
      $region52: #{tpu_custom_call.1} parent=11 // pred_fallthru
        _
      // Predicated region
      $region53: #{tpu_custom_call.1} parent=11 // pred_check
        %p400 = pneg %p329
      $region54: #{tpu_custom_call.1} parent=11 // pred_check_branch
        %402 = sbr.rel (%p400) target = $region56
      $region55: #{tpu_custom_call.1} parent=11 // pred_region
        _
      $region56: #{tpu_custom_call.1} parent=11 // pred_fallthru
        _
    $region12: #{tpu_custom_call.1} parent=5 // pred_fallthru
      _
    %p403 = scmp.lt.s32.totalorder %s20, 4
    // Predicated region
    $region57: #{tpu_custom_call.1} parent=5 // pred_check
      %p404 = pneg %p403
    $region58: #{tpu_custom_call.1} parent=5 // pred_check_branch
      %406 = sbr.rel (%p404) target = $region60
    $region59: #{tpu_custom_call.1} parent=5 // pred_region
      // Predicated region
      $region61: #{tpu_custom_call.1} parent=59 // pred_check
        %p407 = pneg %p40
      $region62: #{tpu_custom_call.1} parent=59 // pred_check_branch
        %409 = sbr.rel (%p407) target = $region64
      $region63: #{tpu_custom_call.1} parent=59 // pred_region
        %p410 = scmp.lt.s32.totalorder %s20, 3
        %s411 = scalar_select %p410, %s20, 3
        %s412 = smul.addr %s411, 8
        %s413 = scalar_lea.vmem %s0, %s412
      $region64: #{tpu_custom_call.1} parent=59 // pred_fallthru
        _
      // Predicated region
      $region65: #{tpu_custom_call.1} parent=59 // pred_check
        %p414 = pneg %p66
      $region66: #{tpu_custom_call.1} parent=59 // pred_check_branch
        %416 = sbr.rel (%p414) target = $region68
      $region67: #{tpu_custom_call.1} parent=59 // pred_region
        %p417 = scmp.lt.s32.totalorder %s20, 3
        %s418 = scalar_select %p417, %s20, 3
        %s419 = smul.addr %s418, 8
        %s420 = scalar_lea.vmem %s1, %s419
      $region68: #{tpu_custom_call.1} parent=59 // pred_fallthru
        _
      // Predicated region
      $region69: #{tpu_custom_call.1} parent=59 // pred_check
        %p421 = pneg %p92
      $region70: #{tpu_custom_call.1} parent=59 // pred_check_branch
        %423 = sbr.rel (%p421) target = $region72
      $region71: #{tpu_custom_call.1} parent=59 // pred_region
        %p424 = scmp.lt.s32.totalorder %s20, 3
        %s425 = scalar_select %p424, %s20, 3
        %s426 = smul.addr %s425, 8
        %s427 = scalar_lea.vmem %s2, %s426
      $region72: #{tpu_custom_call.1} parent=59 // pred_fallthru
        _
    $region60: #{tpu_custom_call.1} parent=5 // pred_fallthru
      _
    %p428 = scmp.le.s32.totalorder 1, %s20
    %p429 = scmp.lt.s32.totalorder %s20, 5
    %p430 = pnand %p428, %p429
    %p431 = pneg %p430
    // Predicated region
    $region73: #{tpu_custom_call.1} parent=5 // pred_check
      _
    $region74: #{tpu_custom_call.1} parent=5 // pred_check_branch
      %433 = sbr.rel (%p430) target = $region76
    $region75: #{tpu_custom_call.1} parent=5 // pred_region
      %s434 = ssub.s32 %s20, 1
      %p435 = scmp.lt.s32.totalorder %s25, 3
      %s436 = scalar_select %p435, %s25, 3
      %s437 = smul.addr %s436, 8
      %s438 = scalar_lea.vmem %s0, %s437
      %p439 = pneg %p46
      %p440 = pneg %p43
      %p441 = scmp.lt.s32.totalorder %s25, 3
      %s442 = scalar_select %p441, %s25, 3
      %s443 = smul.addr %s442, 8
      %s444 = scalar_lea.vmem %s1, %s443
      %p445 = pneg %p72
      %p446 = pneg %p69
      %p447 = scmp.lt.s32.totalorder %s25, 3
      %s448 = scalar_select %p447, %s25, 3
      %s449 = smul.addr %s448, 8
      %s450 = scalar_lea.vmem %s2, %s449
      %p451 = pneg %p98
      %p452 = pneg %p95
      %p453 = pneg %p119
      %p454 = pneg %p116
      %p455 = pneg %p140
      %p456 = pneg %p137
      %p457 = pneg %p161
      %p458 = pneg %p158
      %p459 = pneg %p182
      %p460 = pneg %p179
      %p461 = pneg %p203
      %p462 = pneg %p200
      %p463 = pneg %p224
      %p464 = pneg %p221
      %p465 = pneg %p245
      %p466 = pneg %p242
      %p467 = pneg %p266
      %p468 = pneg %p263
      %p469 = pneg %p287
      %p470 = pneg %p284
      %p471 = pneg %p308
      %p472 = pneg %p305
      %p473 = pneg %p329
      %p474 = pneg %p326
      %p475 = pneg %p355
      %p476 = pneg %p352
      %p477 = scmp.lt.s32.totalorder %s25, 3
      %s478 = scalar_select %p477, %s25, 3
      %s479 = smul.addr %s478, 8
      %s480 = scalar_lea.vmem %s14, %s479
      %p481 = scmp.lt.s32.totalorder %s25, 3
      %s482 = scalar_select %p481, %s25, 3
      %s483 = smul.addr %s482, 8
      %s484 = scalar_lea.vmem %s0, %s483
      %p485 = scmp.lt.s32.totalorder %s25, 3
      %s486 = scalar_select %p485, %s25, 3
      %s487 = smul.addr %s486, 8
      %s488 = scalar_lea.vmem %s1, %s487
      %p489 = scmp.lt.s32.totalorder %s25, 3
      %s490 = scalar_select %p489, %s25, 3
      %s491 = smul.addr %s490, 8
      %s492 = scalar_lea.vmem %s2, %s491
      %p493 = scmp.lt.s32.totalorder %s25, 3
      %s494 = scalar_select %p493, %s25, 3
      %s495 = smul.addr %s494, 8
      %s496 = scalar_lea.vmem %s14, %s495
      %v498 = vld [vmem:[%s488] sm:$0xff]
      %v499 = vld [vmem:[%s492] sm:$0xff]
      %v500 = vpack.c.bf16 %v498, %v498
      %v501 = vld [vmem:[%s9] sm:$0xff]
      %v502 = vld [vmem:[%s9 + $0x8] sm:$0xff]
      %v503 = vld [vmem:[%s9 + $0x10] sm:$0xff]
      %v504 = vld [vmem:[%s9 + $0x18] sm:$0xff]
      %v505 = vld [vmem:[%s9 + $0x20] sm:$0xff]
      %v506 = vld [vmem:[%s9 + $0x28] sm:$0xff]
      %v507 = vld [vmem:[%s9 + $0x30] sm:$0xff]
      %v508 = vld [vmem:[%s9 + $0x38] sm:$0xff]
      %v509 = vld [vmem:[%s9 + $0x40] sm:$0xff]
      %v510 = vld [vmem:[%s9 + $0x48] sm:$0xff]
      %v511 = vld [vmem:[%s9 + $0x50] sm:$0xff]
      %v512 = vld [vmem:[%s9 + $0x58] sm:$0xff]
      %v513 = vld [vmem:[%s9 + $0x60] sm:$0xff]
      %v514 = vld [vmem:[%s9 + $0x68] sm:$0xff]
      %v515 = vld [vmem:[%s9 + $0x70] sm:$0xff]
      %v516 = vld [vmem:[%s9 + $0x78] sm:$0xff]
      %v517 = vpack.c.bf16 %v499, %v499
      %v518 = vld [vmem:[%s10] sm:$0xff]
      %v519 = vld [vmem:[%s10 + $0x8] sm:$0xff]
      %v520 = vld [vmem:[%s10 + $0x10] sm:$0xff]
      %v521 = vld [vmem:[%s10 + $0x18] sm:$0xff]
      %v526 = vcombine.high %v518, %v518
      %v528 = vunpack.c.l.s4 1983009808
      %v529 = vunpack.c.0.s8 %v528
      %v530 = vlaneseq
      %v531 = vshrl.u32 %v530, 7
      %v532 = vsub.s32 %v529, %v531
      %v533 = vrot.slane %v518, %v532
      %v535 = vunpack.c.l.s4 1983009808
      %v536 = vunpack.c.0.s8 %v535
      %v537 = vlaneseq
      %v538 = vshrl.u32 %v537, 7
      %v539 = vsub.s32 %v536, %v538
      %v540 = vrot.slane %v526, %v539
      %v541 = vcombine.high %v533, %v533
      %v542 = vcombine.high %v540, %v540
      %v543 = vcombine.high %v519, %v519
      %v545 = vunpack.c.l.s4 1983009808
      %v546 = vunpack.c.0.s8 %v545
      %v547 = vlaneseq
      %v548 = vshrl.u32 %v547, 7
      %v549 = vsub.s32 %v546, %v548
      %v550 = vrot.slane %v519, %v549
      %v552 = vunpack.c.l.s4 1983009808
      %v553 = vunpack.c.0.s8 %v552
      %v554 = vlaneseq
      %v555 = vshrl.u32 %v554, 7
      %v556 = vsub.s32 %v553, %v555
      %v557 = vrot.slane %v543, %v556
      %v558 = vcombine.high %v550, %v550
      %v559 = vcombine.high %v557, %v557
      %v560 = vcombine.high %v520, %v520
      %v562 = vunpack.c.l.s4 1983009808
      %v563 = vunpack.c.0.s8 %v562
      %v564 = vlaneseq
      %v565 = vshrl.u32 %v564, 7
      %v566 = vsub.s32 %v563, %v565
      %v567 = vrot.slane %v520, %v566
      %v569 = vunpack.c.l.s4 1983009808
      %v570 = vunpack.c.0.s8 %v569
      %v571 = vlaneseq
      %v572 = vshrl.u32 %v571, 7
      %v573 = vsub.s32 %v570, %v572
      %v574 = vrot.slane %v560, %v573
      %v575 = vcombine.high %v567, %v567
      %v576 = vcombine.high %v574, %v574
      %v577 = vcombine.high %v521, %v521
      %v579 = vunpack.c.l.s4 1983009808
      %v580 = vunpack.c.0.s8 %v579
      %v581 = vlaneseq
      %v582 = vshrl.u32 %v581, 7
      %v583 = vsub.s32 %v580, %v582
      %v584 = vrot.slane %v521, %v583
      %v586 = vunpack.c.l.s4 1983009808
      %v587 = vunpack.c.0.s8 %v586
      %v588 = vlaneseq
      %v589 = vshrl.u32 %v588, 7
      %v590 = vsub.s32 %v587, %v589
      %v591 = vrot.slane %v577, %v590
      %v592 = vcombine.high %v584, %v584
      %v593 = vcombine.high %v591, %v591
      %vm594 = vcmask 31744
      %v596 = vsel %vm594, %v517, 0
      %vm598 = vcmask 1041408
      %v600 = vsel %vm598, %v533, 0
      %v603 = vsel %vm598, %v541, 0
      %v606 = vsel %vm598, %v540, 0
      %v609 = vsel %vm598, %v542, 0
      %v612 = vsel %vm598, %v550, 0
      %v615 = vsel %vm598, %v558, 0
      %v618 = vsel %vm598, %v557, 0
      %v621 = vsel %vm598, %v559, 0
      %v624 = vsel %vm598, %v567, 0
      %v627 = vsel %vm598, %v575, 0
      %v630 = vsel %vm598, %v574, 0
      %v633 = vsel %vm598, %v576, 0
      %v636 = vsel %vm598, %v584, 0
      %v639 = vsel %vm598, %v592, 0
      %v642 = vsel %vm598, %v591, 0
      %v645 = vsel %vm598, %v593, 0
      %647 = vmatprep.subr.bf16.mxu0 %v603
      %648 = vmatpush1.bf16.msra.mxu0 %v600
      %649 = vmatprep.subr.bf16.mxu0 0
      %650 = vmatpush1.bf16.msra.mxu0 0
      %651 = vmatprep.subr.bf16.mxu0 0
      %652 = vmatpush1.bf16.msra.mxu0 0
      %653 = vmatprep.subr.bf16.mxu0 0
      %654 = vmatpush1.bf16.msra.mxu0 0
      %655 = vmatprep.subr.bf16.mxu0 0
      %656 = vmatpush1.bf16.msra.mxu0 0
      %657 = vmatprep.subr.bf16.mxu0 0
      %658 = vmatpush1.bf16.msra.mxu0 0
      %659 = vmatprep.subr.bf16.mxu0 0
      %660 = vmatpush1.bf16.msra.mxu0 0
      %661 = vmatprep.subr.bf16.mxu0 0
      %662 = vmatpush1.bf16.msra.mxu0 0
      %663 = vmatprep.subr.bf16.mxu0 0
      %664 = vmatpush1.bf16.msra.mxu0 0
      %665 = vmatprep.subr.bf16.mxu0 0
      %666 = vmatpush1.bf16.msra.mxu0 0
      %667 = vmatprep.subr.bf16.mxu0 0
      %668 = vmatpush1.bf16.msra.mxu0 0
      %669 = vmatprep.subr.bf16.mxu0 0
      %670 = vmatpush1.bf16.msra.mxu0 0
      %671 = vmatprep.subr.bf16.mxu0 0
      %672 = vmatpush1.bf16.msra.mxu0 0
      %673 = vmatprep.subr.bf16.mxu0 0
      %674 = vmatpush1.bf16.msra.mxu0 0
      %675 = vmatprep.subr.bf16.mxu0 0
      %676 = vmatpush1.bf16.msra.mxu0 0
      %677 = vmatprep.subr.bf16.mxu0 0
      %678 = vmatpush1.bf16.msra.mxu0 0
      %679 = vmatprep.mubr.bf16.mxu0 0
      %680 = vmatmul.mubr.bf16.gmra.mrb[0].mxu0 %v596
      %v681 = vpop.f32.mrb[0].mxu0
      %v682 = vadd.f32 0.0, %v681
      %v683 = vpop.f32.mrb[0].mxu0
      %v684 = vadd.f32 0.0, %v683
      %v685 = vpop.f32.mrb[0].mxu0
      %v686 = vpop.f32.mrb[0].mxu0
      %687 = vdwg.mxu0
      %688 = vmatprep.subr.bf16.mxu0 %v609
      %689 = vmatpush1.bf16.msra.mxu0 %v606
      %690 = vmatprep.subr.bf16.mxu0 0
      %691 = vmatpush1.bf16.msra.mxu0 0
      %692 = vmatprep.subr.bf16.mxu0 0
      %693 = vmatpush1.bf16.msra.mxu0 0
      %694 = vmatprep.subr.bf16.mxu0 0
      %695 = vmatpush1.bf16.msra.mxu0 0
      %696 = vmatprep.subr.bf16.mxu0 0
      %697 = vmatpush1.bf16.msra.mxu0 0
      %698 = vmatprep.subr.bf16.mxu0 0
      %699 = vmatpush1.bf16.msra.mxu0 0
      %700 = vmatprep.subr.bf16.mxu0 0
      %701 = vmatpush1.bf16.msra.mxu0 0
      %702 = vmatprep.subr.bf16.mxu0 0
      %703 = vmatpush1.bf16.msra.mxu0 0
      %704 = vmatprep.subr.bf16.mxu0 0
      %705 = vmatpush1.bf16.msra.mxu0 0
      %706 = vmatprep.subr.bf16.mxu0 0
      %707 = vmatpush1.bf16.msra.mxu0 0
      %708 = vmatprep.subr.bf16.mxu0 0
      %709 = vmatpush1.bf16.msra.mxu0 0
      %710 = vmatprep.subr.bf16.mxu0 0
      %711 = vmatpush1.bf16.msra.mxu0 0
      %712 = vmatprep.subr.bf16.mxu0 0
      %713 = vmatpush1.bf16.msra.mxu0 0
      %714 = vmatprep.subr.bf16.mxu0 0
      %715 = vmatpush1.bf16.msra.mxu0 0
      %716 = vmatprep.subr.bf16.mxu0 0
      %717 = vmatpush1.bf16.msra.mxu0 0
      %718 = vmatprep.subr.bf16.mxu0 0
      %719 = vmatpush1.bf16.msra.mxu0 0
      %720 = vmatprep.mubr.bf16.mxu0 0
      %721 = vmatmul.mubr.bf16.gmra.mrb[0].mxu0 %v596
      %v722 = vpop.f32.mrb[0].mxu0
      %v723 = vadd.f32 0.0, %v722
      %v724 = vpop.f32.mrb[0].mxu0
      %v725 = vadd.f32 0.0, %v724
      %v726 = vpop.f32.mrb[0].mxu0
      %v727 = vpop.f32.mrb[0].mxu0
      %728 = vdwg.mxu0
      %729 = vmatprep.subr.bf16.mxu0 %v615
      %730 = vmatpush1.bf16.msra.mxu0 %v612
      %731 = vmatprep.subr.bf16.mxu0 0
      %732 = vmatpush1.bf16.msra.mxu0 0
      %733 = vmatprep.subr.bf16.mxu0 0
      %734 = vmatpush1.bf16.msra.mxu0 0
      %735 = vmatprep.subr.bf16.mxu0 0
      %736 = vmatpush1.bf16.msra.mxu0 0
      %737 = vmatprep.subr.bf16.mxu0 0
      %738 = vmatpush1.bf16.msra.mxu0 0
      %739 = vmatprep.subr.bf16.mxu0 0
      %740 = vmatpush1.bf16.msra.mxu0 0
      %741 = vmatprep.subr.bf16.mxu0 0
      %742 = vmatpush1.bf16.msra.mxu0 0
      %743 = vmatprep.subr.bf16.mxu0 0
      %744 = vmatpush1.bf16.msra.mxu0 0
      %745 = vmatprep.subr.bf16.mxu0 0
      %746 = vmatpush1.bf16.msra.mxu0 0
      %747 = vmatprep.subr.bf16.mxu0 0
      %748 = vmatpush1.bf16.msra.mxu0 0
      %749 = vmatprep.subr.bf16.mxu0 0
      %750 = vmatpush1.bf16.msra.mxu0 0
      %751 = vmatprep.subr.bf16.mxu0 0
      %752 = vmatpush1.bf16.msra.mxu0 0
      %753 = vmatprep.subr.bf16.mxu0 0
      %754 = vmatpush1.bf16.msra.mxu0 0
      %755 = vmatprep.subr.bf16.mxu0 0
      %756 = vmatpush1.bf16.msra.mxu0 0
      %757 = vmatprep.subr.bf16.mxu0 0
      %758 = vmatpush1.bf16.msra.mxu0 0
      %759 = vmatprep.subr.bf16.mxu0 0
      %760 = vmatpush1.bf16.msra.mxu0 0
      %761 = vmatprep.mubr.bf16.mxu0 0
      %762 = vmatmul.mubr.bf16.gmra.mrb[0].mxu0 %v596
      %v763 = vpop.f32.mrb[0].mxu0
      %v764 = vadd.f32 0.0, %v763
      %v765 = vpop.f32.mrb[0].mxu0
      %v766 = vadd.f32 0.0, %v765
      %v767 = vpop.f32.mrb[0].mxu0
      %v768 = vpop.f32.mrb[0].mxu0
      %769 = vdwg.mxu0
      %770 = vmatprep.subr.bf16.mxu0 %v621
      %771 = vmatpush1.bf16.msra.mxu0 %v618
      %772 = vmatprep.subr.bf16.mxu0 0
      %773 = vmatpush1.bf16.msra.mxu0 0
      %774 = vmatprep.subr.bf16.mxu0 0
      %775 = vmatpush1.bf16.msra.mxu0 0
      %776 = vmatprep.subr.bf16.mxu0 0
      %777 = vmatpush1.bf16.msra.mxu0 0
      %778 = vmatprep.subr.bf16.mxu0 0
      %779 = vmatpush1.bf16.msra.mxu0 0
      %780 = vmatprep.subr.bf16.mxu0 0
      %781 = vmatpush1.bf16.msra.mxu0 0
      %782 = vmatprep.subr.bf16.mxu0 0
      %783 = vmatpush1.bf16.msra.mxu0 0
      %784 = vmatprep.subr.bf16.mxu0 0
      %785 = vmatpush1.bf16.msra.mxu0 0
      %786 = vmatprep.subr.bf16.mxu0 0
      %787 = vmatpush1.bf16.msra.mxu0 0
      %788 = vmatprep.subr.bf16.mxu0 0
      %789 = vmatpush1.bf16.msra.mxu0 0
      %790 = vmatprep.subr.bf16.mxu0 0
      %791 = vmatpush1.bf16.msra.mxu0 0
      %792 = vmatprep.subr.bf16.mxu0 0
      %793 = vmatpush1.bf16.msra.mxu0 0
      %794 = vmatprep.subr.bf16.mxu0 0
      %795 = vmatpush1.bf16.msra.mxu0 0
      %796 = vmatprep.subr.bf16.mxu0 0
      %797 = vmatpush1.bf16.msra.mxu0 0
      %798 = vmatprep.subr.bf16.mxu0 0
      %799 = vmatpush1.bf16.msra.mxu0 0
      %800 = vmatprep.subr.bf16.mxu0 0
      %801 = vmatpush1.bf16.msra.mxu0 0
      %802 = vmatprep.mubr.bf16.mxu0 0
      %803 = vmatmul.mubr.bf16.gmra.mrb[0].mxu0 %v596
      %v804 = vpop.f32.mrb[0].mxu0
      %v805 = vadd.f32 0.0, %v804
      %v806 = vpop.f32.mrb[0].mxu0
      %v807 = vadd.f32 0.0, %v806
      %v808 = vpop.f32.mrb[0].mxu0
      %v809 = vpop.f32.mrb[0].mxu0
      %810 = vdwg.mxu0
      %811 = vmatprep.subr.bf16.mxu0 %v627
      %812 = vmatpush1.bf16.msra.mxu0 %v624
      %813 = vmatprep.subr.bf16.mxu0 0
      %814 = vmatpush1.bf16.msra.mxu0 0
      %815 = vmatprep.subr.bf16.mxu0 0
      %816 = vmatpush1.bf16.msra.mxu0 0
      %817 = vmatprep.subr.bf16.mxu0 0
      %818 = vmatpush1.bf16.msra.mxu0 0
      %819 = vmatprep.subr.bf16.mxu0 0
      %820 = vmatpush1.bf16.msra.mxu0 0
      %821 = vmatprep.subr.bf16.mxu0 0
      %822 = vmatpush1.bf16.msra.mxu0 0
      %823 = vmatprep.subr.bf16.mxu0 0
      %824 = vmatpush1.bf16.msra.mxu0 0
      %825 = vmatprep.subr.bf16.mxu0 0
      %826 = vmatpush1.bf16.msra.mxu0 0
      %827 = vmatprep.subr.bf16.mxu0 0
      %828 = vmatpush1.bf16.msra.mxu0 0
      %829 = vmatprep.subr.bf16.mxu0 0
      %830 = vmatpush1.bf16.msra.mxu0 0
      %831 = vmatprep.subr.bf16.mxu0 0
      %832 = vmatpush1.bf16.msra.mxu0 0
      %833 = vmatprep.subr.bf16.mxu0 0
      %834 = vmatpush1.bf16.msra.mxu0 0
      %835 = vmatprep.subr.bf16.mxu0 0
      %836 = vmatpush1.bf16.msra.mxu0 0
      %837 = vmatprep.subr.bf16.mxu0 0
      %838 = vmatpush1.bf16.msra.mxu0 0
      %839 = vmatprep.subr.bf16.mxu0 0
      %840 = vmatpush1.bf16.msra.mxu0 0
      %841 = vmatprep.subr.bf16.mxu0 0
      %842 = vmatpush1.bf16.msra.mxu0 0
      %843 = vmatprep.mubr.bf16.mxu0 0
      %844 = vmatmul.mubr.bf16.gmra.mrb[0].mxu0 %v596
      %v845 = vpop.f32.mrb[0].mxu0
      %v846 = vadd.f32 0.0, %v845
      %v847 = vpop.f32.mrb[0].mxu0
      %v848 = vadd.f32 0.0, %v847
      %v849 = vpop.f32.mrb[0].mxu0
      %v850 = vpop.f32.mrb[0].mxu0
      %851 = vdwg.mxu0
      %852 = vmatprep.subr.bf16.mxu0 %v633
      %853 = vmatpush1.bf16.msra.mxu0 %v630
      %854 = vmatprep.subr.bf16.mxu0 0
      %855 = vmatpush1.bf16.msra.mxu0 0
      %856 = vmatprep.subr.bf16.mxu0 0
      %857 = vmatpush1.bf16.msra.mxu0 0
      %858 = vmatprep.subr.bf16.mxu0 0
      %859 = vmatpush1.bf16.msra.mxu0 0
      %860 = vmatprep.subr.bf16.mxu0 0
      %861 = vmatpush1.bf16.msra.mxu0 0
      %862 = vmatprep.subr.bf16.mxu0 0
      %863 = vmatpush1.bf16.msra.mxu0 0
      %864 = vmatprep.subr.bf16.mxu0 0
      %865 = vmatpush1.bf16.msra.mxu0 0
      %866 = vmatprep.subr.bf16.mxu0 0
      %867 = vmatpush1.bf16.msra.mxu0 0
      %868 = vmatprep.subr.bf16.mxu0 0
      %869 = vmatpush1.bf16.msra.mxu0 0
      %870 = vmatprep.subr.bf16.mxu0 0
      %871 = vmatpush1.bf16.msra.mxu0 0
      %872 = vmatprep.subr.bf16.mxu0 0
      %873 = vmatpush1.bf16.msra.mxu0 0
      %874 = vmatprep.subr.bf16.mxu0 0
      %875 = vmatpush1.bf16.msra.mxu0 0
      %876 = vmatprep.subr.bf16.mxu0 0
      %877 = vmatpush1.bf16.msra.mxu0 0
      %878 = vmatprep.subr.bf16.mxu0 0
      %879 = vmatpush1.bf16.msra.mxu0 0
      %880 = vmatprep.subr.bf16.mxu0 0
      %881 = vmatpush1.bf16.msra.mxu0 0
      %882 = vmatprep.subr.bf16.mxu0 0
      %883 = vmatpush1.bf16.msra.mxu0 0
      %884 = vmatprep.mubr.bf16.mxu0 0
      %885 = vmatmul.mubr.bf16.gmra.mrb[0].mxu0 %v596
      %v886 = vpop.f32.mrb[0].mxu0
      %v887 = vadd.f32 0.0, %v886
      %v888 = vpop.f32.mrb[0].mxu0
      %v889 = vadd.f32 0.0, %v888
      %v890 = vpop.f32.mrb[0].mxu0
      %v891 = vpop.f32.mrb[0].mxu0
      %892 = vdwg.mxu0
      %893 = vmatprep.subr.bf16.mxu0 %v639
      %894 = vmatpush1.bf16.msra.mxu0 %v636
      %895 = vmatprep.subr.bf16.mxu0 0
      %896 = vmatpush1.bf16.msra.mxu0 0
      %897 = vmatprep.subr.bf16.mxu0 0
      %898 = vmatpush1.bf16.msra.mxu0 0
      %899 = vmatprep.subr.bf16.mxu0 0
      %900 = vmatpush1.bf16.msra.mxu0 0
      %901 = vmatprep.subr.bf16.mxu0 0
      %902 = vmatpush1.bf16.msra.mxu0 0
      %903 = vmatprep.subr.bf16.mxu0 0
      %904 = vmatpush1.bf16.msra.mxu0 0
      %905 = vmatprep.subr.bf16.mxu0 0
      %906 = vmatpush1.bf16.msra.mxu0 0
      %907 = vmatprep.subr.bf16.mxu0 0
      %908 = vmatpush1.bf16.msra.mxu0 0
      %909 = vmatprep.subr.bf16.mxu0 0
      %910 = vmatpush1.bf16.msra.mxu0 0
      %911 = vmatprep.subr.bf16.mxu0 0
      %912 = vmatpush1.bf16.msra.mxu0 0
      %913 = vmatprep.subr.bf16.mxu0 0
      %914 = vmatpush1.bf16.msra.mxu0 0
      %915 = vmatprep.subr.bf16.mxu0 0
      %916 = vmatpush1.bf16.msra.mxu0 0
      %917 = vmatprep.subr.bf16.mxu0 0
      %918 = vmatpush1.bf16.msra.mxu0 0
      %919 = vmatprep.subr.bf16.mxu0 0
      %920 = vmatpush1.bf16.msra.mxu0 0
      %921 = vmatprep.subr.bf16.mxu0 0
      %922 = vmatpush1.bf16.msra.mxu0 0
      %923 = vmatprep.subr.bf16.mxu0 0
      %924 = vmatpush1.bf16.msra.mxu0 0
      %925 = vmatprep.mubr.bf16.mxu0 0
      %926 = vmatmul.mubr.bf16.gmra.mrb[0].mxu0 %v596
      %v927 = vpop.f32.mrb[0].mxu0
      %v928 = vadd.f32 0.0, %v927
      %v929 = vpop.f32.mrb[0].mxu0
      %v930 = vadd.f32 0.0, %v929
      %v931 = vpop.f32.mrb[0].mxu0
      %v932 = vpop.f32.mrb[0].mxu0
      %933 = vdwg.mxu0
      %934 = vmatprep.subr.bf16.mxu0 %v645
      %935 = vmatpush1.bf16.msra.mxu0 %v642
      %936 = vmatprep.subr.bf16.mxu0 0
      %937 = vmatpush1.bf16.msra.mxu0 0
      %938 = vmatprep.subr.bf16.mxu0 0
      %939 = vmatpush1.bf16.msra.mxu0 0
      %940 = vmatprep.subr.bf16.mxu0 0
      %941 = vmatpush1.bf16.msra.mxu0 0
      %942 = vmatprep.subr.bf16.mxu0 0
      %943 = vmatpush1.bf16.msra.mxu0 0
      %944 = vmatprep.subr.bf16.mxu0 0
      %945 = vmatpush1.bf16.msra.mxu0 0
      %946 = vmatprep.subr.bf16.mxu0 0
      %947 = vmatpush1.bf16.msra.mxu0 0
      %948 = vmatprep.subr.bf16.mxu0 0
      %949 = vmatpush1.bf16.msra.mxu0 0
      %950 = vmatprep.subr.bf16.mxu0 0
      %951 = vmatpush1.bf16.msra.mxu0 0
      %952 = vmatprep.subr.bf16.mxu0 0
      %953 = vmatpush1.bf16.msra.mxu0 0
      %954 = vmatprep.subr.bf16.mxu0 0
      %955 = vmatpush1.bf16.msra.mxu0 0
      %956 = vmatprep.subr.bf16.mxu0 0
      %957 = vmatpush1.bf16.msra.mxu0 0
      %958 = vmatprep.subr.bf16.mxu0 0
      %959 = vmatpush1.bf16.msra.mxu0 0
      %960 = vmatprep.subr.bf16.mxu0 0
      %961 = vmatpush1.bf16.msra.mxu0 0
      %962 = vmatprep.subr.bf16.mxu0 0
      %963 = vmatpush1.bf16.msra.mxu0 0
      %964 = vmatprep.subr.bf16.mxu0 0
      %965 = vmatpush1.bf16.msra.mxu0 0
      %966 = vmatprep.mubr.bf16.mxu0 0
      %967 = vmatmul.mubr.bf16.gmra.mrb[0].mxu0 %v596
      %v968 = vpop.f32.mrb[0].mxu0
      %v969 = vadd.f32 0.0, %v968
      %v970 = vpop.f32.mrb[0].mxu0
      %v971 = vadd.f32 0.0, %v970
      %v972 = vpop.f32.mrb[0].mxu0
      %v973 = vpop.f32.mrb[0].mxu0
      %974 = vdwg.mxu0
      %v991 = vunpack.c.l.b16 %v501
      %v992 = vunpack.c.h.b16 %v501
      %v993 = vunpack.c.l.b16 %v502
      %v994 = vunpack.c.h.b16 %v502
      %v995 = vunpack.c.l.b16 %v503
      %v996 = vunpack.c.h.b16 %v503
      %v997 = vunpack.c.l.b16 %v504
      %v998 = vunpack.c.h.b16 %v504
      %v999 = vunpack.c.l.b16 %v505
      %v1000 = vunpack.c.h.b16 %v505
      %v1001 = vunpack.c.l.b16 %v506
      %v1002 = vunpack.c.h.b16 %v506
      %v1003 = vunpack.c.l.b16 %v507
      %v1004 = vunpack.c.h.b16 %v507
      %v1005 = vunpack.c.l.b16 %v508
      %v1006 = vunpack.c.h.b16 %v508
      %v1007 = vunpack.c.l.b16 %v509
      %v1008 = vunpack.c.h.b16 %v509
      %v1009 = vunpack.c.l.b16 %v510
      %v1010 = vunpack.c.h.b16 %v510
      %v1011 = vunpack.c.l.b16 %v511
      %v1012 = vunpack.c.h.b16 %v511
      %v1013 = vunpack.c.l.b16 %v512
      %v1014 = vunpack.c.h.b16 %v512
      %v1015 = vunpack.c.l.b16 %v513
      %v1016 = vunpack.c.h.b16 %v513
      %v1017 = vunpack.c.l.b16 %v514
      %v1018 = vunpack.c.h.b16 %v514
      %v1019 = vunpack.c.l.b16 %v515
      %v1020 = vunpack.c.h.b16 %v515
      %v1021 = vunpack.c.l.b16 %v516
      %v1022 = vunpack.c.h.b16 %v516
      %v1023 = vpack.c.b16 %v1007, %v991
      %v1024 = vpack.c.b16 %v1008, %v992
      %v1025 = vpack.c.b16 %v1009, %v993
      %v1026 = vpack.c.b16 %v1010, %v994
      %v1027 = vpack.c.b16 %v1011, %v995
      %v1028 = vpack.c.b16 %v1012, %v996
      %v1029 = vpack.c.b16 %v1013, %v997
      %v1030 = vpack.c.b16 %v1014, %v998
      %v1031 = vpack.c.b16 %v1015, %v999
      %v1032 = vpack.c.b16 %v1016, %v1000
      %v1033 = vpack.c.b16 %v1017, %v1001
      %v1034 = vpack.c.b16 %v1018, %v1002
      %v1035 = vpack.c.b16 %v1019, %v1003
      %v1036 = vpack.c.b16 %v1020, %v1004
      %v1037 = vpack.c.b16 %v1021, %v1005
      %v1038 = vpack.c.b16 %v1022, %v1006
      %vm1055 = vcmask 130048
      %v1057 = vsel %vm1055, %v500, 0
      %1059 = vmatprep.subr.bf16.mxu0 %v1024
      %1060 = vmatpush1.bf16.msra.mxu0 %v1023
      %1061 = vmatprep.subr.bf16.mxu0 0
      %1062 = vmatpush1.bf16.msra.mxu0 0
      %1063 = vmatprep.subr.bf16.mxu0 0
      %1064 = vmatpush1.bf16.msra.mxu0 0
      %1065 = vmatprep.subr.bf16.mxu0 0
      %1066 = vmatpush1.bf16.msra.mxu0 0
      %1067 = vmatprep.subr.bf16.mxu0 0
      %1068 = vmatpush1.bf16.msra.mxu0 0
      %1069 = vmatprep.subr.bf16.mxu0 0
      %1070 = vmatpush1.bf16.msra.mxu0 0
      %1071 = vmatprep.subr.bf16.mxu0 0
      %1072 = vmatpush1.bf16.msra.mxu0 0
      %1073 = vmatprep.subr.bf16.mxu0 0
      %1074 = vmatpush1.bf16.msra.mxu0 0
      %1075 = vmatprep.subr.bf16.mxu0 0
      %1076 = vmatpush1.bf16.msra.mxu0 0
      %1077 = vmatprep.subr.bf16.mxu0 0
      %1078 = vmatpush1.bf16.msra.mxu0 0
      %1079 = vmatprep.subr.bf16.mxu0 0
      %1080 = vmatpush1.bf16.msra.mxu0 0
      %1081 = vmatprep.subr.bf16.mxu0 0
      %1082 = vmatpush1.bf16.msra.mxu0 0
      %1083 = vmatprep.subr.bf16.mxu0 0
      %1084 = vmatpush1.bf16.msra.mxu0 0
      %1085 = vmatprep.subr.bf16.mxu0 0
      %1086 = vmatpush1.bf16.msra.mxu0 0
      %1087 = vmatprep.subr.bf16.mxu0 0
      %1088 = vmatpush1.bf16.msra.mxu0 0
      %1089 = vmatprep.subr.bf16.mxu0 0
      %1090 = vmatpush1.bf16.msra.mxu0 0
      %1091 = vmatprep.mubr.bf16.mxu0 0
      %1092 = vmatmul.mubr.bf16.gmra.mrb[0].mxu0 %v1057
      %v1093 = vpop.f32.mrb[0].mxu0
      %v1094 = vadd.f32 %v682, %v1093
      %v1095 = vpop.f32.mrb[0].mxu0
      %v1096 = vadd.f32 %v684, %v1095
      %v1097 = vpop.f32.mrb[0].mxu0
      %v1098 = vpop.f32.mrb[0].mxu0
      %1099 = vdwg.mxu0
      %1100 = vmatprep.subr.bf16.mxu0 %v1026
      %1101 = vmatpush1.bf16.msra.mxu0 %v1025
      %1102 = vmatprep.subr.bf16.mxu0 0
      %1103 = vmatpush1.bf16.msra.mxu0 0
      %1104 = vmatprep.subr.bf16.mxu0 0
      %1105 = vmatpush1.bf16.msra.mxu0 0
      %1106 = vmatprep.subr.bf16.mxu0 0
      %1107 = vmatpush1.bf16.msra.mxu0 0
      %1108 = vmatprep.subr.bf16.mxu0 0
      %1109 = vmatpush1.bf16.msra.mxu0 0
      %1110 = vmatprep.subr.bf16.mxu0 0
      %1111 = vmatpush1.bf16.msra.mxu0 0
      %1112 = vmatprep.subr.bf16.mxu0 0
      %1113 = vmatpush1.bf16.msra.mxu0 0
      %1114 = vmatprep.subr.bf16.mxu0 0
      %1115 = vmatpush1.bf16.msra.mxu0 0
      %1116 = vmatprep.subr.bf16.mxu0 0
      %1117 = vmatpush1.bf16.msra.mxu0 0
      %1118 = vmatprep.subr.bf16.mxu0 0
      %1119 = vmatpush1.bf16.msra.mxu0 0
      %1120 = vmatprep.subr.bf16.mxu0 0
      %1121 = vmatpush1.bf16.msra.mxu0 0
      %1122 = vmatprep.subr.bf16.mxu0 0
      %1123 = vmatpush1.bf16.msra.mxu0 0
      %1124 = vmatprep.subr.bf16.mxu0 0
      %1125 = vmatpush1.bf16.msra.mxu0 0
      %1126 = vmatprep.subr.bf16.mxu0 0
      %1127 = vmatpush1.bf16.msra.mxu0 0
      %1128 = vmatprep.subr.bf16.mxu0 0
      %1129 = vmatpush1.bf16.msra.mxu0 0
      %1130 = vmatprep.subr.bf16.mxu0 0
      %1131 = vmatpush1.bf16.msra.mxu0 0
      %1132 = vmatprep.mubr.bf16.mxu0 0
      %1133 = vmatmul.mubr.bf16.gmra.mrb[0].mxu0 %v1057
      %v1134 = vpop.f32.mrb[0].mxu0
      %v1135 = vadd.f32 %v723, %v1134
      %v1136 = vpop.f32.mrb[0].mxu0
      %v1137 = vadd.f32 %v725, %v1136
      %v1138 = vpop.f32.mrb[0].mxu0
      %v1139 = vpop.f32.mrb[0].mxu0
      %1140 = vdwg.mxu0
      %1141 = vmatprep.subr.bf16.mxu0 %v1028
      %1142 = vmatpush1.bf16.msra.mxu0 %v1027
      %1143 = vmatprep.subr.bf16.mxu0 0
      %1144 = vmatpush1.bf16.msra.mxu0 0
      %1145 = vmatprep.subr.bf16.mxu0 0
      %1146 = vmatpush1.bf16.msra.mxu0 0
      %1147 = vmatprep.subr.bf16.mxu0 0
      %1148 = vmatpush1.bf16.msra.mxu0 0
      %1149 = vmatprep.subr.bf16.mxu0 0
      %1150 = vmatpush1.bf16.msra.mxu0 0
      %1151 = vmatprep.subr.bf16.mxu0 0
      %1152 = vmatpush1.bf16.msra.mxu0 0
      %1153 = vmatprep.subr.bf16.mxu0 0
      %1154 = vmatpush1.bf16.msra.mxu0 0
      %1155 = vmatprep.subr.bf16.mxu0 0
      %1156 = vmatpush1.bf16.msra.mxu0 0
      %1157 = vmatprep.subr.bf16.mxu0 0
      %1158 = vmatpush1.bf16.msra.mxu0 0
      %1159 = vmatprep.subr.bf16.mxu0 0
      %1160 = vmatpush1.bf16.msra.mxu0 0
      %1161 = vmatprep.subr.bf16.mxu0 0
      %1162 = vmatpush1.bf16.msra.mxu0 0
      %1163 = vmatprep.subr.bf16.mxu0 0
      %1164 = vmatpush1.bf16.msra.mxu0 0
      %1165 = vmatprep.subr.bf16.mxu0 0
      %1166 = vmatpush1.bf16.msra.mxu0 0
      %1167 = vmatprep.subr.bf16.mxu0 0
      %1168 = vmatpush1.bf16.msra.mxu0 0
      %1169 = vmatprep.subr.bf16.mxu0 0
      %1170 = vmatpush1.bf16.msra.mxu0 0
      %1171 = vmatprep.subr.bf16.mxu0 0
      %1172 = vmatpush1.bf16.msra.mxu0 0
      %1173 = vmatprep.mubr.bf16.mxu0 0
      %1174 = vmatmul.mubr.bf16.gmra.mrb[0].mxu0 %v1057
      %v1175 = vpop.f32.mrb[0].mxu0
      %v1176 = vadd.f32 %v764, %v1175
      %v1177 = vpop.f32.mrb[0].mxu0
      %v1178 = vadd.f32 %v766, %v1177
      %v1179 = vpop.f32.mrb[0].mxu0
      %v1180 = vpop.f32.mrb[0].mxu0
      %1181 = vdwg.mxu0
      %1182 = vmatprep.subr.bf16.mxu0 %v1030
      %1183 = vmatpush1.bf16.msra.mxu0 %v1029
      %1184 = vmatprep.subr.bf16.mxu0 0
      %1185 = vmatpush1.bf16.msra.mxu0 0
      %1186 = vmatprep.subr.bf16.mxu0 0
      %1187 = vmatpush1.bf16.msra.mxu0 0
      %1188 = vmatprep.subr.bf16.mxu0 0
      %1189 = vmatpush1.bf16.msra.mxu0 0
      %1190 = vmatprep.subr.bf16.mxu0 0
      %1191 = vmatpush1.bf16.msra.mxu0 0
      %1192 = vmatprep.subr.bf16.mxu0 0
      %1193 = vmatpush1.bf16.msra.mxu0 0
      %1194 = vmatprep.subr.bf16.mxu0 0
      %1195 = vmatpush1.bf16.msra.mxu0 0
      %1196 = vmatprep.subr.bf16.mxu0 0
      %1197 = vmatpush1.bf16.msra.mxu0 0
      %1198 = vmatprep.subr.bf16.mxu0 0
      %1199 = vmatpush1.bf16.msra.mxu0 0
      %1200 = vmatprep.subr.bf16.mxu0 0
      %1201 = vmatpush1.bf16.msra.mxu0 0
      %1202 = vmatprep.subr.bf16.mxu0 0
      %1203 = vmatpush1.bf16.msra.mxu0 0
      %1204 = vmatprep.subr.bf16.mxu0 0
      %1205 = vmatpush1.bf16.msra.mxu0 0
      %1206 = vmatprep.subr.bf16.mxu0 0
      %1207 = vmatpush1.bf16.msra.mxu0 0
      %1208 = vmatprep.subr.bf16.mxu0 0
      %1209 = vmatpush1.bf16.msra.mxu0 0
      %1210 = vmatprep.subr.bf16.mxu0 0
      %1211 = vmatpush1.bf16.msra.mxu0 0
      %1212 = vmatprep.subr.bf16.mxu0 0
      %1213 = vmatpush1.bf16.msra.mxu0 0
      %1214 = vmatprep.mubr.bf16.mxu0 0
      %1215 = vmatmul.mubr.bf16.gmra.mrb[0].mxu0 %v1057
      %v1216 = vpop.f32.mrb[0].mxu0
      %v1217 = vadd.f32 %v805, %v1216
      %v1218 = vpop.f32.mrb[0].mxu0
      %v1219 = vadd.f32 %v807, %v1218
      %v1220 = vpop.f32.mrb[0].mxu0
      %v1221 = vpop.f32.mrb[0].mxu0
      %1222 = vdwg.mxu0
      %1223 = vmatprep.subr.bf16.mxu0 %v1032
      %1224 = vmatpush1.bf16.msra.mxu0 %v1031
      %1225 = vmatprep.subr.bf16.mxu0 0
      %1226 = vmatpush1.bf16.msra.mxu0 0
      %1227 = vmatprep.subr.bf16.mxu0 0
      %1228 = vmatpush1.bf16.msra.mxu0 0
      %1229 = vmatprep.subr.bf16.mxu0 0
      %1230 = vmatpush1.bf16.msra.mxu0 0
      %1231 = vmatprep.subr.bf16.mxu0 0
      %1232 = vmatpush1.bf16.msra.mxu0 0
      %1233 = vmatprep.subr.bf16.mxu0 0
      %1234 = vmatpush1.bf16.msra.mxu0 0
      %1235 = vmatprep.subr.bf16.mxu0 0
      %1236 = vmatpush1.bf16.msra.mxu0 0
      %1237 = vmatprep.subr.bf16.mxu0 0
      %1238 = vmatpush1.bf16.msra.mxu0 0
      %1239 = vmatprep.subr.bf16.mxu0 0
      %1240 = vmatpush1.bf16.msra.mxu0 0
      %1241 = vmatprep.subr.bf16.mxu0 0
      %1242 = vmatpush1.bf16.msra.mxu0 0
      %1243 = vmatprep.subr.bf16.mxu0 0
      %1244 = vmatpush1.bf16.msra.mxu0 0
      %1245 = vmatprep.subr.bf16.mxu0 0
      %1246 = vmatpush1.bf16.msra.mxu0 0
      %1247 = vmatprep.subr.bf16.mxu0 0
      %1248 = vmatpush1.bf16.msra.mxu0 0
      %1249 = vmatprep.subr.bf16.mxu0 0
      %1250 = vmatpush1.bf16.msra.mxu0 0
      %1251 = vmatprep.subr.bf16.mxu0 0
      %1252 = vmatpush1.bf16.msra.mxu0 0
      %1253 = vmatprep.subr.bf16.mxu0 0
      %1254 = vmatpush1.bf16.msra.mxu0 0
      %1255 = vmatprep.mubr.bf16.mxu0 0
      %1256 = vmatmul.mubr.bf16.gmra.mrb[0].mxu0 %v1057
      %v1257 = vpop.f32.mrb[0].mxu0
      %v1258 = vadd.f32 %v846, %v1257
      %v1259 = vpop.f32.mrb[0].mxu0
      %v1260 = vadd.f32 %v848, %v1259
      %v1261 = vpop.f32.mrb[0].mxu0
      %v1262 = vpop.f32.mrb[0].mxu0
      %1263 = vdwg.mxu0
      %1264 = vmatprep.subr.bf16.mxu0 %v1034
      %1265 = vmatpush1.bf16.msra.mxu0 %v1033
      %1266 = vmatprep.subr.bf16.mxu0 0
      %1267 = vmatpush1.bf16.msra.mxu0 0
      %1268 = vmatprep.subr.bf16.mxu0 0
      %1269 = vmatpush1.bf16.msra.mxu0 0
      %1270 = vmatprep.subr.bf16.mxu0 0
      %1271 = vmatpush1.bf16.msra.mxu0 0
      %1272 = vmatprep.subr.bf16.mxu0 0
      %1273 = vmatpush1.bf16.msra.mxu0 0
      %1274 = vmatprep.subr.bf16.mxu0 0
      %1275 = vmatpush1.bf16.msra.mxu0 0
      %1276 = vmatprep.subr.bf16.mxu0 0
      %1277 = vmatpush1.bf16.msra.mxu0 0
      %1278 = vmatprep.subr.bf16.mxu0 0
      %1279 = vmatpush1.bf16.msra.mxu0 0
      %1280 = vmatprep.subr.bf16.mxu0 0
      %1281 = vmatpush1.bf16.msra.mxu0 0
      %1282 = vmatprep.subr.bf16.mxu0 0
      %1283 = vmatpush1.bf16.msra.mxu0 0
      %1284 = vmatprep.subr.bf16.mxu0 0
      %1285 = vmatpush1.bf16.msra.mxu0 0
      %1286 = vmatprep.subr.bf16.mxu0 0
      %1287 = vmatpush1.bf16.msra.mxu0 0
      %1288 = vmatprep.subr.bf16.mxu0 0
      %1289 = vmatpush1.bf16.msra.mxu0 0
      %1290 = vmatprep.subr.bf16.mxu0 0
      %1291 = vmatpush1.bf16.msra.mxu0 0
      %1292 = vmatprep.subr.bf16.mxu0 0
      %1293 = vmatpush1.bf16.msra.mxu0 0
      %1294 = vmatprep.subr.bf16.mxu0 0
      %1295 = vmatpush1.bf16.msra.mxu0 0
      %1296 = vmatprep.mubr.bf16.mxu0 0
      %1297 = vmatmul.mubr.bf16.gmra.mrb[0].mxu0 %v1057
      %v1298 = vpop.f32.mrb[0].mxu0
      %v1299 = vadd.f32 %v887, %v1298
      %v1300 = vpop.f32.mrb[0].mxu0
      %v1301 = vadd.f32 %v889, %v1300
      %v1302 = vpop.f32.mrb[0].mxu0
      %v1303 = vpop.f32.mrb[0].mxu0
      %1304 = vdwg.mxu0
      %1305 = vmatprep.subr.bf16.mxu0 %v1036
      %1306 = vmatpush1.bf16.msra.mxu0 %v1035
      %1307 = vmatprep.subr.bf16.mxu0 0
      %1308 = vmatpush1.bf16.msra.mxu0 0
      %1309 = vmatprep.subr.bf16.mxu0 0
      %1310 = vmatpush1.bf16.msra.mxu0 0
      %1311 = vmatprep.subr.bf16.mxu0 0
      %1312 = vmatpush1.bf16.msra.mxu0 0
      %1313 = vmatprep.subr.bf16.mxu0 0
      %1314 = vmatpush1.bf16.msra.mxu0 0
      %1315 = vmatprep.subr.bf16.mxu0 0
      %1316 = vmatpush1.bf16.msra.mxu0 0
      %1317 = vmatprep.subr.bf16.mxu0 0
      %1318 = vmatpush1.bf16.msra.mxu0 0
      %1319 = vmatprep.subr.bf16.mxu0 0
      %1320 = vmatpush1.bf16.msra.mxu0 0
      %1321 = vmatprep.subr.bf16.mxu0 0
      %1322 = vmatpush1.bf16.msra.mxu0 0
      %1323 = vmatprep.subr.bf16.mxu0 0
      %1324 = vmatpush1.bf16.msra.mxu0 0
      %1325 = vmatprep.subr.bf16.mxu0 0
      %1326 = vmatpush1.bf16.msra.mxu0 0
      %1327 = vmatprep.subr.bf16.mxu0 0
      %1328 = vmatpush1.bf16.msra.mxu0 0
      %1329 = vmatprep.subr.bf16.mxu0 0
      %1330 = vmatpush1.bf16.msra.mxu0 0
      %1331 = vmatprep.subr.bf16.mxu0 0
      %1332 = vmatpush1.bf16.msra.mxu0 0
      %1333 = vmatprep.subr.bf16.mxu0 0
      %1334 = vmatpush1.bf16.msra.mxu0 0
      %1335 = vmatprep.subr.bf16.mxu0 0
      %1336 = vmatpush1.bf16.msra.mxu0 0
      %1337 = vmatprep.mubr.bf16.mxu0 0
      %1338 = vmatmul.mubr.bf16.gmra.mrb[0].mxu0 %v1057
      %v1339 = vpop.f32.mrb[0].mxu0
      %v1340 = vadd.f32 %v928, %v1339
      %v1341 = vpop.f32.mrb[0].mxu0
      %v1342 = vadd.f32 %v930, %v1341
      %v1343 = vpop.f32.mrb[0].mxu0
      %v1344 = vpop.f32.mrb[0].mxu0
      %1345 = vdwg.mxu0
      %1346 = vmatprep.subr.bf16.mxu0 %v1038
      %1347 = vmatpush1.bf16.msra.mxu0 %v1037
      %1348 = vmatprep.subr.bf16.mxu0 0
      %1349 = vmatpush1.bf16.msra.mxu0 0
      %1350 = vmatprep.subr.bf16.mxu0 0
      %1351 = vmatpush1.bf16.msra.mxu0 0
      %1352 = vmatprep.subr.bf16.mxu0 0
      %1353 = vmatpush1.bf16.msra.mxu0 0
      %1354 = vmatprep.subr.bf16.mxu0 0
      %1355 = vmatpush1.bf16.msra.mxu0 0
      %1356 = vmatprep.subr.bf16.mxu0 0
      %1357 = vmatpush1.bf16.msra.mxu0 0
      %1358 = vmatprep.subr.bf16.mxu0 0
      %1359 = vmatpush1.bf16.msra.mxu0 0
      %1360 = vmatprep.subr.bf16.mxu0 0
      %1361 = vmatpush1.bf16.msra.mxu0 0
      %1362 = vmatprep.subr.bf16.mxu0 0
      %1363 = vmatpush1.bf16.msra.mxu0 0
      %1364 = vmatprep.subr.bf16.mxu0 0
      %1365 = vmatpush1.bf16.msra.mxu0 0
      %1366 = vmatprep.subr.bf16.mxu0 0
      %1367 = vmatpush1.bf16.msra.mxu0 0
      %1368 = vmatprep.subr.bf16.mxu0 0
      %1369 = vmatpush1.bf16.msra.mxu0 0
      %1370 = vmatprep.subr.bf16.mxu0 0
      %1371 = vmatpush1.bf16.msra.mxu0 0
      %1372 = vmatprep.subr.bf16.mxu0 0
      %1373 = vmatpush1.bf16.msra.mxu0 0
      %1374 = vmatprep.subr.bf16.mxu0 0
      %1375 = vmatpush1.bf16.msra.mxu0 0
      %1376 = vmatprep.subr.bf16.mxu0 0
      %1377 = vmatpush1.bf16.msra.mxu0 0
      %1378 = vmatprep.mubr.bf16.mxu0 0
      %1379 = vmatmul.mubr.bf16.gmra.mrb[0].mxu0 %v1057
      %v1380 = vpop.f32.mrb[0].mxu0
      %v1381 = vadd.f32 %v969, %v1380
      %v1382 = vpop.f32.mrb[0].mxu0
      %v1383 = vadd.f32 %v971, %v1382
      %v1384 = vpop.f32.mrb[0].mxu0
      %v1385 = vpop.f32.mrb[0].mxu0
      %1386 = vdwg.mxu0
      %v1387 = vld [vmem:[%s11] sm:$0xff]
      %v1388 = vld [vmem:[%s11 + $0x8] sm:$0xff]
      %v1391 = vlaneseq
      %v1392 = vshrl.u32 %v1391, 7
      %v1393 = vsub.s32 0, %v1392
      %v1394 = vrot.slane %v1387, %v1393
      %v1395 = vlaneseq
      %v1396 = vshrl.u32 %v1395, 7
      %v1397 = vsub.s32 1, %v1396
      %v1398 = vrot.slane %v1387, %v1397
      %v1399 = vlaneseq
      %v1400 = vshrl.u32 %v1399, 7
      %v1401 = vsub.s32 2, %v1400
      %v1402 = vrot.slane %v1387, %v1401
      %v1403 = vlaneseq
      %v1404 = vshrl.u32 %v1403, 7
      %v1405 = vsub.s32 3, %v1404
      %v1406 = vrot.slane %v1387, %v1405
      %v1407 = vlaneseq
      %v1408 = vshrl.u32 %v1407, 7
      %v1409 = vsub.s32 4, %v1408
      %v1410 = vrot.slane %v1387, %v1409
      %v1411 = vlaneseq
      %v1412 = vshrl.u32 %v1411, 7
      %v1413 = vsub.s32 5, %v1412
      %v1414 = vrot.slane %v1387, %v1413
      %v1415 = vlaneseq
      %v1416 = vshrl.u32 %v1415, 7
      %v1417 = vsub.s32 6, %v1416
      %v1418 = vrot.slane %v1387, %v1417
      %v1419 = vlaneseq
      %v1420 = vshrl.u32 %v1419, 7
      %v1421 = vsub.s32 7, %v1420
      %v1422 = vrot.slane %v1387, %v1421
      %v1423 = vlaneseq
      %v1424 = vshrl.u32 %v1423, 7
      %v1425 = vsub.s32 0, %v1424
      %v1426 = vrot.slane %v1388, %v1425
      %v1427 = vlaneseq
      %v1428 = vshrl.u32 %v1427, 7
      %v1429 = vsub.s32 1, %v1428
      %v1430 = vrot.slane %v1388, %v1429
      %v1431 = vlaneseq
      %v1432 = vshrl.u32 %v1431, 7
      %v1433 = vsub.s32 2, %v1432
      %v1434 = vrot.slane %v1388, %v1433
      %v1435 = vlaneseq
      %v1436 = vshrl.u32 %v1435, 7
      %v1437 = vsub.s32 3, %v1436
      %v1438 = vrot.slane %v1388, %v1437
      %v1439 = vlaneseq
      %v1440 = vshrl.u32 %v1439, 7
      %v1441 = vsub.s32 4, %v1440
      %v1442 = vrot.slane %v1388, %v1441
      %v1443 = vlaneseq
      %v1444 = vshrl.u32 %v1443, 7
      %v1445 = vsub.s32 5, %v1444
      %v1446 = vrot.slane %v1388, %v1445
      %v1447 = vlaneseq
      %v1448 = vshrl.u32 %v1447, 7
      %v1449 = vsub.s32 6, %v1448
      %v1450 = vrot.slane %v1388, %v1449
      %v1451 = vlaneseq
      %v1452 = vshrl.u32 %v1451, 7
      %v1453 = vsub.s32 7, %v1452
      %v1454 = vrot.slane %v1388, %v1453
      %v1471 = vadd.f32 %v1094, %v1394
      %v1472 = vadd.f32 %v1096, %v1398
      %v1473 = vadd.f32 %v1135, %v1402
      %v1474 = vadd.f32 %v1137, %v1406
      %v1475 = vadd.f32 %v1176, %v1410
      %v1476 = vadd.f32 %v1178, %v1414
      %v1477 = vadd.f32 %v1217, %v1418
      %v1478 = vadd.f32 %v1219, %v1422
      %v1479 = vadd.f32 %v1258, %v1426
      %v1480 = vadd.f32 %v1260, %v1430
      %v1481 = vadd.f32 %v1299, %v1434
      %v1482 = vadd.f32 %v1301, %v1438
      %v1483 = vadd.f32 %v1340, %v1442
      %v1484 = vadd.f32 %v1342, %v1446
      %v1485 = vadd.f32 %v1381, %v1450
      %v1486 = vadd.f32 %v1383, %v1454
      %1487 = vst [vmem:[#allocation2] sm:$0xff] %v1471
      %1488 = vst [vmem:[#allocation2 + $0x8] sm:$0xff] %v1472
      %1489 = vst [vmem:[#allocation2 + $0x10] sm:$0xff] %v1473
      %1490 = vst [vmem:[#allocation2 + $0x18] sm:$0xff] %v1474
      %1491 = vst [vmem:[#allocation2 + $0x20] sm:$0xff] %v1475
      %1492 = vst [vmem:[#allocation2 + $0x28] sm:$0xff] %v1476
      %1493 = vst [vmem:[#allocation2 + $0x30] sm:$0xff] %v1477
      %1494 = vst [vmem:[#allocation2 + $0x38] sm:$0xff] %v1478
      %1495 = vst [vmem:[#allocation2 + $0x40] sm:$0xff] %v1479
      %1496 = vst [vmem:[#allocation2 + $0x48] sm:$0xff] %v1480
      %1497 = vst [vmem:[#allocation2 + $0x50] sm:$0xff] %v1481
      %1498 = vst [vmem:[#allocation2 + $0x58] sm:$0xff] %v1482
      %1499 = vst [vmem:[#allocation2 + $0x60] sm:$0xff] %v1483
      %1500 = vst [vmem:[#allocation2 + $0x68] sm:$0xff] %v1484
      %1501 = vst [vmem:[#allocation2 + $0x70] sm:$0xff] %v1485
      %1502 = vst [vmem:[#allocation2 + $0x78] sm:$0xff] %v1486
      %v1503 = vld [vmem:[%s484] sm:$0xff]
      %v1504 = vld [vmem:[%s3] sm:$0xff]
      %v1505 = vld [vmem:[%s3 + $0x8] sm:$0xff]
      %v1506 = vld [vmem:[%s3 + $0x10] sm:$0xff]
      %v1507 = vld [vmem:[%s3 + $0x18] sm:$0xff]
      %v1508 = vld [vmem:[#allocation2 + $0x10] sm:$0xff]
      %v1509 = vld [vmem:[#allocation2 + $0x18] sm:$0xff]
      %v1511 = vsel %vm1055, %v1503, 0
      %1513 = vmatprep.subr.mxu0 %v1505
      %1514 = vmatpush1.msra.mxu0 %v1504
      %1515 = vmatprep.subr.mxu0 %v1507
      %1516 = vmatpush1.msra.mxu0 %v1506
      %1517 = vmatprep.subr.mxu0 0.0
      %1518 = vmatpush1.msra.mxu0 0.0
      %1519 = vmatprep.subr.mxu0 0.0
      %1520 = vmatpush1.msra.mxu0 0.0
      %1521 = vmatprep.subr.mxu0 0.0
      %1522 = vmatpush1.msra.mxu0 0.0
      %1523 = vmatprep.subr.mxu0 0.0
      %1524 = vmatpush1.msra.mxu0 0.0
      %1525 = vmatprep.subr.mxu0 0.0
      %1526 = vmatpush1.msra.mxu0 0.0
      %1527 = vmatprep.subr.mxu0 0.0
      %1528 = vmatpush1.msra.mxu0 0.0
      %1529 = vmatprep.subr.mxu0 0.0
      %1530 = vmatpush1.msra.mxu0 0.0
      %1531 = vmatprep.subr.mxu0 0.0
      %1532 = vmatpush1.msra.mxu0 0.0
      %1533 = vmatprep.subr.mxu0 0.0
      %1534 = vmatpush1.msra.mxu0 0.0
      %1535 = vmatprep.subr.mxu0 0.0
      %1536 = vmatpush1.msra.mxu0 0.0
      %1537 = vmatprep.subr.mxu0 0.0
      %1538 = vmatpush1.msra.mxu0 0.0
      %1539 = vmatprep.subr.mxu0 0.0
      %1540 = vmatpush1.msra.mxu0 0.0
      %1541 = vmatprep.subr.mxu0 0.0
      %1542 = vmatpush1.msra.mxu0 0.0
      %1543 = vmatprep.subr.mxu0 0.0
      %1544 = vmatpush1.msra.mxu0 0.0
      %1545 = vmatprep.subr.mxu0 0.0
      %1546 = vmatpush1.msra.mxu0 0.0
      %1547 = vmatprep.subr.mxu0 0.0
      %1548 = vmatpush1.msra.mxu0 0.0
      %1549 = vmatprep.subr.mxu0 0.0
      %1550 = vmatpush1.msra.mxu0 0.0
      %1551 = vmatprep.subr.mxu0 0.0
      %1552 = vmatpush1.msra.mxu0 0.0
      %1553 = vmatprep.subr.mxu0 0.0
      %1554 = vmatpush1.msra.mxu0 0.0
      %1555 = vmatprep.subr.mxu0 0.0
      %1556 = vmatpush1.msra.mxu0 0.0
      %1557 = vmatprep.subr.mxu0 0.0
      %1558 = vmatpush1.msra.mxu0 0.0
      %1559 = vmatprep.subr.mxu0 0.0
      %1560 = vmatpush1.msra.mxu0 0.0
      %1561 = vmatprep.subr.mxu0 0.0
      %1562 = vmatpush1.msra.mxu0 0.0
      %1563 = vmatprep.subr.mxu0 0.0
      %1564 = vmatpush1.msra.mxu0 0.0
      %1565 = vmatprep.subr.mxu0 0.0
      %1566 = vmatpush1.msra.mxu0 0.0
      %1567 = vmatprep.subr.mxu0 0.0
      %1568 = vmatpush1.msra.mxu0 0.0
      %1569 = vmatprep.subr.mxu0 0.0
      %1570 = vmatpush1.msra.mxu0 0.0
      %1571 = vmatprep.subr.mxu0 0.0
      %1572 = vmatpush1.msra.mxu0 0.0
      %1573 = vmatprep.subr.mxu0 0.0
      %1574 = vmatpush1.msra.mxu0 0.0
      %1575 = vmatprep.subr.mxu0 0.0
      %1576 = vmatpush1.msra.mxu0 0.0
      %1577 = vmatprep.mubr.f32.mxu0 0.0
      %1578 = vmatmul.mubr.f32.gmra.mrb[0].mxu0 %v1511
      %v1579 = vpop.f32.mrb[0].mxu0
      %v1580 = vadd.f32 %v1508, %v1579
      %v1581 = vpop.f32.mrb[0].mxu0
      %v1582 = vadd.f32 %v1509, %v1581
      %1583 = vdwg.mxu0
      %v1584 = vmax.f32 %v1580, 0.0
      %v1585 = vmax.f32 %v1582, 0.0
      %v1586 = vpack.c.bf16 %v1584, %v1584
      %v1587 = vpack.c.bf16 %v1585, %v1585
      %s1588 = scalar_lea.vmem %s7, 128
      %v1589 = vld [vmem:[%s1588] sm:$0xf]
      %v1590 = vld [vmem:[%s1588 + $0x4] sm:$0xf]
      %v1591 = vld [vmem:[%s1588 + $0x8] sm:$0xf]
      %v1592 = vld [vmem:[%s1588 + $0xc] sm:$0xf]
      %v1593 = vld [vmem:[%s1588 + $0x10] sm:$0xf]
      %v1594 = vld [vmem:[%s1588 + $0x14] sm:$0xf]
      %v1595 = vld [vmem:[%s1588 + $0x18] sm:$0xf]
      %v1596 = vld [vmem:[%s1588 + $0x1c] sm:$0xf]
      %v1597 = vld [vmem:[%s1588 + $0x20] sm:$0xf]
      %v1598 = vld [vmem:[%s1588 + $0x24] sm:$0xf]
      %v1599 = vld [vmem:[%s1588 + $0x28] sm:$0xf]
      %v1600 = vld [vmem:[%s1588 + $0x2c] sm:$0xf]
      %v1601 = vld [vmem:[%s1588 + $0x30] sm:$0xf]
      %v1602 = vld [vmem:[%s1588 + $0x34] sm:$0xf]
      %v1603 = vld [vmem:[%s1588 + $0x38] sm:$0xf]
      %v1604 = vld [vmem:[%s1588 + $0x3c] sm:$0xf]
      %v1605 = vld [vmem:[%s1588 + $0x40] sm:$0xf]
      %v1606 = vld [vmem:[%s1588 + $0x44] sm:$0xf]
      %v1607 = vld [vmem:[%s1588 + $0x48] sm:$0xf]
      %v1608 = vld [vmem:[%s1588 + $0x4c] sm:$0xf]
      %v1609 = vld [vmem:[%s1588 + $0x50] sm:$0xf]
      %v1610 = vld [vmem:[%s1588 + $0x54] sm:$0xf]
      %v1611 = vld [vmem:[%s1588 + $0x58] sm:$0xf]
      %v1612 = vld [vmem:[%s1588 + $0x5c] sm:$0xf]
      %v1613 = vld [vmem:[%s1588 + $0x60] sm:$0xf]
      %v1614 = vld [vmem:[%s1588 + $0x64] sm:$0xf]
      %v1615 = vld [vmem:[%s1588 + $0x68] sm:$0xf]
      %v1616 = vld [vmem:[%s1588 + $0x6c] sm:$0xf]
      %v1617 = vld [vmem:[%s1588 + $0x70] sm:$0xf]
      %v1618 = vld [vmem:[%s1588 + $0x74] sm:$0xf]
      %v1619 = vld [vmem:[%s1588 + $0x78] sm:$0xf]
      %v1620 = vld [vmem:[%s1588 + $0x7c] sm:$0xf]
      %s1621 = scalar_lea.vmem %s8, 1
      %v1622 = vld [vmem:[%s1621] sm:$0x1]
      %v1624 = vlaneseq
      %v1625 = vshrl.u32 %v1624, 7
      %v1626 = vsub.s32 0, %v1625
      %v1627 = vrot.slane %v1622, %v1626
      %v1661 = vunpack.c.l.b16 %v1589
      %v1662 = vunpack.c.l.b16 %v1590
      %v1663 = vunpack.c.l.b16 %v1591
      %v1664 = vunpack.c.l.b16 %v1592
      %v1665 = vunpack.c.l.b16 %v1593
      %v1666 = vunpack.c.l.b16 %v1594
      %v1667 = vunpack.c.l.b16 %v1595
      %v1668 = vunpack.c.l.b16 %v1596
      %v1669 = vunpack.c.l.b16 %v1597
      %v1670 = vunpack.c.l.b16 %v1598
      %v1671 = vunpack.c.l.b16 %v1599
      %v1672 = vunpack.c.l.b16 %v1600
      %v1673 = vunpack.c.l.b16 %v1601
      %v1674 = vunpack.c.l.b16 %v1602
      %v1675 = vunpack.c.l.b16 %v1603
      %v1676 = vunpack.c.l.b16 %v1604
      %v1677 = vunpack.c.l.b16 %v1605
      %v1678 = vunpack.c.l.b16 %v1606
      %v1679 = vunpack.c.l.b16 %v1607
      %v1680 = vunpack.c.l.b16 %v1608
      %v1681 = vunpack.c.l.b16 %v1609
      %v1682 = vunpack.c.l.b16 %v1610
      %v1683 = vunpack.c.l.b16 %v1611
      %v1684 = vunpack.c.l.b16 %v1612
      %v1685 = vunpack.c.l.b16 %v1613
      %v1686 = vunpack.c.l.b16 %v1614
      %v1687 = vunpack.c.l.b16 %v1615
      %v1688 = vunpack.c.l.b16 %v1616
      %v1689 = vunpack.c.l.b16 %v1617
      %v1690 = vunpack.c.l.b16 %v1618
      %v1691 = vunpack.c.l.b16 %v1619
      %v1692 = vunpack.c.l.b16 %v1620
      %v1693 = vpack.c.b16 %v1662, %v1661
      %v1694 = vpack.c.b16 %v1664, %v1663
      %v1695 = vpack.c.b16 %v1666, %v1665
      %v1696 = vpack.c.b16 %v1668, %v1667
      %v1697 = vpack.c.b16 %v1670, %v1669
      %v1698 = vpack.c.b16 %v1672, %v1671
      %v1699 = vpack.c.b16 %v1674, %v1673
      %v1700 = vpack.c.b16 %v1676, %v1675
      %v1701 = vpack.c.b16 %v1678, %v1677
      %v1702 = vpack.c.b16 %v1680, %v1679
      %v1703 = vpack.c.b16 %v1682, %v1681
      %v1704 = vpack.c.b16 %v1684, %v1683
      %v1705 = vpack.c.b16 %v1686, %v1685
      %v1706 = vpack.c.b16 %v1688, %v1687
      %v1707 = vpack.c.b16 %v1690, %v1689
      %v1708 = vpack.c.b16 %v1692, %v1691
      %1725 = vmatprep.subr.bf16.mxu0 0
      %1726 = vmatpush1.bf16.msra.mxu0 %v1693
      %1727 = vmatprep.subr.bf16.mxu0 0
      %1728 = vmatpush1.bf16.msra.mxu0 %v1694
      %1729 = vmatprep.subr.bf16.mxu0 0
      %1730 = vmatpush1.bf16.msra.mxu0 %v1695
      %1731 = vmatprep.subr.bf16.mxu0 0
      %1732 = vmatpush1.bf16.msra.mxu0 %v1696
      %1733 = vmatprep.subr.bf16.mxu0 0
      %1734 = vmatpush1.bf16.msra.mxu0 %v1697
      %1735 = vmatprep.subr.bf16.mxu0 0
      %1736 = vmatpush1.bf16.msra.mxu0 %v1698
      %1737 = vmatprep.subr.bf16.mxu0 0
      %1738 = vmatpush1.bf16.msra.mxu0 %v1699
      %1739 = vmatprep.subr.bf16.mxu0 0
      %1740 = vmatpush1.bf16.msra.mxu0 %v1700
      %1741 = vmatprep.subr.bf16.mxu0 0
      %1742 = vmatpush1.bf16.msra.mxu0 %v1701
      %1743 = vmatprep.subr.bf16.mxu0 0
      %1744 = vmatpush1.bf16.msra.mxu0 %v1702
      %1745 = vmatprep.subr.bf16.mxu0 0
      %1746 = vmatpush1.bf16.msra.mxu0 %v1703
      %1747 = vmatprep.subr.bf16.mxu0 0
      %1748 = vmatpush1.bf16.msra.mxu0 %v1704
      %1749 = vmatprep.subr.bf16.mxu0 0
      %1750 = vmatpush1.bf16.msra.mxu0 %v1705
      %1751 = vmatprep.subr.bf16.mxu0 0
      %1752 = vmatpush1.bf16.msra.mxu0 %v1706
      %1753 = vmatprep.subr.bf16.mxu0 0
      %1754 = vmatpush1.bf16.msra.mxu0 %v1707
      %1755 = vmatprep.subr.bf16.mxu0 0
      %1756 = vmatpush1.bf16.msra.mxu0 %v1708
      %1757 = vmatprep.mubr.bf16.mxu0 %v1587
      %1758 = vmatmul.mubr.bf16.gmra.mrb[0].mxu0 %v1586
      %v1759 = vpop.f32.mrb[0].mxu0
      %v1760 = vadd.f32 %v1627, %v1759
      %v1761 = vpop.f32.mrb[0].mxu0
      %v1762 = vpop.f32.mrb[0].mxu0
      %v1763 = vpop.f32.mrb[0].mxu0
      %1764 = vdwg.mxu0
      %vm1765 = vcmp.lt.f32.partialorder %v1760, 0.0
      %v1766 = vsel %vm1765, -1.0, 1.0
      %v1767 = vand.u32 2147483647, %v1760
      %vm1768 = vcmp.gt.f32.partialorder %v1767, 2.4142137
      %vm1769 = vmxor %vm1768, 1
      %vm1770 = vcmp.gt.f32.partialorder %v1767, 0.41421357
      %vm1771 = vmand %vm1769, %vm1770
      %v1772 = vadd.f32 %v1767, 1.0
      %v1773 = vsel %vm1768, %v1767, %v1772
      %v1774 = vrcp.pop %v1773
      %v1775 = vsub.f32 0.0, %v1774
      %v1776 = vsub.f32 %v1767, 1.0
      %v1777 = vmul.f32 %v1776, %v1774
      %v1778 = vsel %vm1771, %v1777, %v1767
      %v1779 = vsel %vm1768, %v1775, %v1778
      %v1780 = vsel %vm1771, 0.7853982, 0.0
      %v1781 = vsel %vm1768, 1.5707964, %v1780
      %v1782 = vmul.f32 %v1779, %v1779
      %v1783 = vmul.f32 %v1782, 0.080537446
      %v1784 = vsub.f32 %v1783, 0.13877685
      %v1785 = vmul.f32 %v1784, %v1782
      %v1786 = vadd.f32 %v1785, 0.19977711
      %v1787 = vmul.f32 %v1786, %v1782
      %v1788 = vsub.f32 %v1787, 0.3333295
      %v1789 = vmul.f32 %v1788, %v1782
      %v1790 = vmul.f32 %v1789, %v1779
      %v1791 = vadd.f32 %v1790, %v1779
      %v1792 = vadd.f32 %v1781, %v1791
      %v1793 = vmul.f32 %v1766, %v1792
      %v1794 = vmul.f32 %v1793, 0.636
      %v1795 = vmul.f32 %v1794, 2.0
      %vm1796 = vcmask 64512
      %v1797 = vsel %vm1796, %v1795, 0.0
      %1798 = vadd.xlane.f32.xlu0 %v1797
      %v1799 = vpop.xlane.xlu0 %1798
      %v1800 = vrcp.pop 8.0
      %v1801 = vmul.f32 %v1799, %v1800
      %v1802 = vsub.f32 %v1795, %v1801
      %v1803 = vmul.f32 %v1802, 1.442695
      %v1804 = vpow.pop %v1803
      %v1805 = vmul.f32 %v1804, %v1503
      %1807 = vrot.lane.b32.xlu0 %v1760, 120
      %v1808 = vpop.permute.xlu0 %1807
      %v1810 = vadd.f32 %v1805, %v1808
      %v1811 = vld [vmem:[%s4] sm:$0xff]
      %v1812 = vld [vmem:[%s4 + $0x8] sm:$0xff]
      %v1813 = vld [vmem:[#allocation2] sm:$0xff]
      %v1814 = vld [vmem:[#allocation2 + $0x8] sm:$0xff]
      %v1816 = vsel %vm1796, %v1810, 0
      %1818 = vmatprep.subr.mxu0 %v1812
      %1819 = vmatpush1.msra.mxu0 %v1811
      %1820 = vmatprep.subr.mxu0 0.0
      %1821 = vmatpush1.msra.mxu0 0.0
      %1822 = vmatprep.subr.mxu0 0.0
      %1823 = vmatpush1.msra.mxu0 0.0
      %1824 = vmatprep.subr.mxu0 0.0
      %1825 = vmatpush1.msra.mxu0 0.0
      %1826 = vmatprep.subr.mxu0 0.0
      %1827 = vmatpush1.msra.mxu0 0.0
      %1828 = vmatprep.subr.mxu0 0.0
      %1829 = vmatpush1.msra.mxu0 0.0
      %1830 = vmatprep.subr.mxu0 0.0
      %1831 = vmatpush1.msra.mxu0 0.0
      %1832 = vmatprep.subr.mxu0 0.0
      %1833 = vmatpush1.msra.mxu0 0.0
      %1834 = vmatprep.subr.mxu0 0.0
      %1835 = vmatpush1.msra.mxu0 0.0
      %1836 = vmatprep.subr.mxu0 0.0
      %1837 = vmatpush1.msra.mxu0 0.0
      %1838 = vmatprep.subr.mxu0 0.0
      %1839 = vmatpush1.msra.mxu0 0.0
      %1840 = vmatprep.subr.mxu0 0.0
      %1841 = vmatpush1.msra.mxu0 0.0
      %1842 = vmatprep.subr.mxu0 0.0
      %1843 = vmatpush1.msra.mxu0 0.0
      %1844 = vmatprep.subr.mxu0 0.0
      %1845 = vmatpush1.msra.mxu0 0.0
      %1846 = vmatprep.subr.mxu0 0.0
      %1847 = vmatpush1.msra.mxu0 0.0
      %1848 = vmatprep.subr.mxu0 0.0
      %1849 = vmatpush1.msra.mxu0 0.0
      %1850 = vmatprep.subr.mxu0 0.0
      %1851 = vmatpush1.msra.mxu0 0.0
      %1852 = vmatprep.subr.mxu0 0.0
      %1853 = vmatpush1.msra.mxu0 0.0
      %1854 = vmatprep.subr.mxu0 0.0
      %1855 = vmatpush1.msra.mxu0 0.0
      %1856 = vmatprep.subr.mxu0 0.0
      %1857 = vmatpush1.msra.mxu0 0.0
      %1858 = vmatprep.subr.mxu0 0.0
      %1859 = vmatpush1.msra.mxu0 0.0
      %1860 = vmatprep.subr.mxu0 0.0
      %1861 = vmatpush1.msra.mxu0 0.0
      %1862 = vmatprep.subr.mxu0 0.0
      %1863 = vmatpush1.msra.mxu0 0.0
      %1864 = vmatprep.subr.mxu0 0.0
      %1865 = vmatpush1.msra.mxu0 0.0
      %1866 = vmatprep.subr.mxu0 0.0
      %1867 = vmatpush1.msra.mxu0 0.0
      %1868 = vmatprep.subr.mxu0 0.0
      %1869 = vmatpush1.msra.mxu0 0.0
      %1870 = vmatprep.subr.mxu0 0.0
      %1871 = vmatpush1.msra.mxu0 0.0
      %1872 = vmatprep.subr.mxu0 0.0
      %1873 = vmatpush1.msra.mxu0 0.0
      %1874 = vmatprep.subr.mxu0 0.0
      %1875 = vmatpush1.msra.mxu0 0.0
      %1876 = vmatprep.subr.mxu0 0.0
      %1877 = vmatpush1.msra.mxu0 0.0
      %1878 = vmatprep.subr.mxu0 0.0
      %1879 = vmatpush1.msra.mxu0 0.0
      %1880 = vmatprep.subr.mxu0 0.0
      %1881 = vmatpush1.msra.mxu0 0.0
      %1882 = vmatprep.mubr.f32.mxu0 0.0
      %1883 = vmatmul.mubr.f32.gmra.mrb[0].mxu0 %v1816
      %v1884 = vpop.f32.mrb[0].mxu0
      %v1885 = vadd.f32 %v1813, %v1884
      %v1886 = vpop.f32.mrb[0].mxu0
      %v1887 = vadd.f32 %v1814, %v1886
      %1888 = vdwg.mxu0
      %v1889 = vmax.f32 %v1885, 0.0
      %v1890 = vmax.f32 %v1887, 0.0
      %v1891 = vpack.c.bf16 %v1889, %v1889
      %v1892 = vpack.c.bf16 %v1890, %v1890
      %v1893 = vld [vmem:[%s7] sm:$0xf]
      %v1894 = vld [vmem:[%s7 + $0x4] sm:$0xf]
      %v1895 = vld [vmem:[%s7 + $0x8] sm:$0xf]
      %v1896 = vld [vmem:[%s7 + $0xc] sm:$0xf]
      %v1897 = vld [vmem:[%s7 + $0x10] sm:$0xf]
      %v1898 = vld [vmem:[%s7 + $0x14] sm:$0xf]
      %v1899 = vld [vmem:[%s7 + $0x18] sm:$0xf]
      %v1900 = vld [vmem:[%s7 + $0x1c] sm:$0xf]
      %v1901 = vld [vmem:[%s7 + $0x20] sm:$0xf]
      %v1902 = vld [vmem:[%s7 + $0x24] sm:$0xf]
      %v1903 = vld [vmem:[%s7 + $0x28] sm:$0xf]
      %v1904 = vld [vmem:[%s7 + $0x2c] sm:$0xf]
      %v1905 = vld [vmem:[%s7 + $0x30] sm:$0xf]
      %v1906 = vld [vmem:[%s7 + $0x34] sm:$0xf]
      %v1907 = vld [vmem:[%s7 + $0x38] sm:$0xf]
      %v1908 = vld [vmem:[%s7 + $0x3c] sm:$0xf]
      %v1909 = vld [vmem:[%s7 + $0x40] sm:$0xf]
      %v1910 = vld [vmem:[%s7 + $0x44] sm:$0xf]
      %v1911 = vld [vmem:[%s7 + $0x48] sm:$0xf]
      %v1912 = vld [vmem:[%s7 + $0x4c] sm:$0xf]
      %v1913 = vld [vmem:[%s7 + $0x50] sm:$0xf]
      %v1914 = vld [vmem:[%s7 + $0x54] sm:$0xf]
      %v1915 = vld [vmem:[%s7 + $0x58] sm:$0xf]
      %v1916 = vld [vmem:[%s7 + $0x5c] sm:$0xf]
      %v1917 = vld [vmem:[%s7 + $0x60] sm:$0xf]
      %v1918 = vld [vmem:[%s7 + $0x64] sm:$0xf]
      %v1919 = vld [vmem:[%s7 + $0x68] sm:$0xf]
      %v1920 = vld [vmem:[%s7 + $0x6c] sm:$0xf]
      %v1921 = vld [vmem:[%s7 + $0x70] sm:$0xf]
      %v1922 = vld [vmem:[%s7 + $0x74] sm:$0xf]
      %v1923 = vld [vmem:[%s7 + $0x78] sm:$0xf]
      %v1924 = vld [vmem:[%s7 + $0x7c] sm:$0xf]
      %v1925 = vld [vmem:[%s8] sm:$0x1]
      %v1927 = vlaneseq
      %v1928 = vshrl.u32 %v1927, 7
      %v1929 = vsub.s32 0, %v1928
      %v1930 = vrot.slane %v1925, %v1929
      %v1964 = vunpack.c.l.b16 %v1893
      %v1965 = vunpack.c.l.b16 %v1894
      %v1966 = vunpack.c.l.b16 %v1895
      %v1967 = vunpack.c.l.b16 %v1896
      %v1968 = vunpack.c.l.b16 %v1897
      %v1969 = vunpack.c.l.b16 %v1898
      %v1970 = vunpack.c.l.b16 %v1899
      %v1971 = vunpack.c.l.b16 %v1900
      %v1972 = vunpack.c.l.b16 %v1901
      %v1973 = vunpack.c.l.b16 %v1902
      %v1974 = vunpack.c.l.b16 %v1903
      %v1975 = vunpack.c.l.b16 %v1904
      %v1976 = vunpack.c.l.b16 %v1905
      %v1977 = vunpack.c.l.b16 %v1906
      %v1978 = vunpack.c.l.b16 %v1907
      %v1979 = vunpack.c.l.b16 %v1908
      %v1980 = vunpack.c.l.b16 %v1909
      %v1981 = vunpack.c.l.b16 %v1910
      %v1982 = vunpack.c.l.b16 %v1911
      %v1983 = vunpack.c.l.b16 %v1912
      %v1984 = vunpack.c.l.b16 %v1913
      %v1985 = vunpack.c.l.b16 %v1914
      %v1986 = vunpack.c.l.b16 %v1915
      %v1987 = vunpack.c.l.b16 %v1916
      %v1988 = vunpack.c.l.b16 %v1917
      %v1989 = vunpack.c.l.b16 %v1918
      %v1990 = vunpack.c.l.b16 %v1919
      %v1991 = vunpack.c.l.b16 %v1920
      %v1992 = vunpack.c.l.b16 %v1921
      %v1993 = vunpack.c.l.b16 %v1922
      %v1994 = vunpack.c.l.b16 %v1923
      %v1995 = vunpack.c.l.b16 %v1924
      %v1996 = vpack.c.b16 %v1965, %v1964
      %v1997 = vpack.c.b16 %v1967, %v1966
      %v1998 = vpack.c.b16 %v1969, %v1968
      %v1999 = vpack.c.b16 %v1971, %v1970
      %v2000 = vpack.c.b16 %v1973, %v1972
      %v2001 = vpack.c.b16 %v1975, %v1974
      %v2002 = vpack.c.b16 %v1977, %v1976
      %v2003 = vpack.c.b16 %v1979, %v1978
      %v2004 = vpack.c.b16 %v1981, %v1980
      %v2005 = vpack.c.b16 %v1983, %v1982
      %v2006 = vpack.c.b16 %v1985, %v1984
      %v2007 = vpack.c.b16 %v1987, %v1986
      %v2008 = vpack.c.b16 %v1989, %v1988
      %v2009 = vpack.c.b16 %v1991, %v1990
      %v2010 = vpack.c.b16 %v1993, %v1992
      %v2011 = vpack.c.b16 %v1995, %v1994
      %2028 = vmatprep.subr.bf16.mxu0 0
      %2029 = vmatpush1.bf16.msra.mxu0 %v1996
      %2030 = vmatprep.subr.bf16.mxu0 0
      %2031 = vmatpush1.bf16.msra.mxu0 %v1997
      %2032 = vmatprep.subr.bf16.mxu0 0
      %2033 = vmatpush1.bf16.msra.mxu0 %v1998
      %2034 = vmatprep.subr.bf16.mxu0 0
      %2035 = vmatpush1.bf16.msra.mxu0 %v1999
      %2036 = vmatprep.subr.bf16.mxu0 0
      %2037 = vmatpush1.bf16.msra.mxu0 %v2000
      %2038 = vmatprep.subr.bf16.mxu0 0
      %2039 = vmatpush1.bf16.msra.mxu0 %v2001
      %2040 = vmatprep.subr.bf16.mxu0 0
      %2041 = vmatpush1.bf16.msra.mxu0 %v2002
      %2042 = vmatprep.subr.bf16.mxu0 0
      %2043 = vmatpush1.bf16.msra.mxu0 %v2003
      %2044 = vmatprep.subr.bf16.mxu0 0
      %2045 = vmatpush1.bf16.msra.mxu0 %v2004
      %2046 = vmatprep.subr.bf16.mxu0 0
      %2047 = vmatpush1.bf16.msra.mxu0 %v2005
      %2048 = vmatprep.subr.bf16.mxu0 0
      %2049 = vmatpush1.bf16.msra.mxu0 %v2006
      %2050 = vmatprep.subr.bf16.mxu0 0
      %2051 = vmatpush1.bf16.msra.mxu0 %v2007
      %2052 = vmatprep.subr.bf16.mxu0 0
      %2053 = vmatpush1.bf16.msra.mxu0 %v2008
      %2054 = vmatprep.subr.bf16.mxu0 0
      %2055 = vmatpush1.bf16.msra.mxu0 %v2009
      %2056 = vmatprep.subr.bf16.mxu0 0
      %2057 = vmatpush1.bf16.msra.mxu0 %v2010
      %2058 = vmatprep.subr.bf16.mxu0 0
      %2059 = vmatpush1.bf16.msra.mxu0 %v2011
      %2060 = vmatprep.mubr.bf16.mxu0 %v1892
      %2061 = vmatmul.mubr.bf16.gmra.mrb[0].mxu0 %v1891
      %v2062 = vpop.f32.mrb[0].mxu0
      %v2063 = vadd.f32 %v1930, %v2062
      %v2064 = vpop.f32.mrb[0].mxu0
      %v2065 = vpop.f32.mrb[0].mxu0
      %v2066 = vpop.f32.mrb[0].mxu0
      %2067 = vdwg.mxu0
      %vm2068 = vcmp.lt.f32.partialorder %v2063, 0.0
      %v2069 = vsel %vm2068, -1.0, 1.0
      %v2070 = vand.u32 2147483647, %v2063
      %vm2071 = vcmp.gt.f32.partialorder %v2070, 2.4142137
      %vm2072 = vmxor %vm2071, 1
      %vm2073 = vcmp.gt.f32.partialorder %v2070, 0.41421357
      %vm2074 = vmand %vm2072, %vm2073
      %v2075 = vadd.f32 %v2070, 1.0
      %v2076 = vsel %vm2071, %v2070, %v2075
      %v2077 = vrcp.pop %v2076
      %v2078 = vsub.f32 0.0, %v2077
      %v2079 = vsub.f32 %v2070, 1.0
      %v2080 = vmul.f32 %v2079, %v2077
      %v2081 = vsel %vm2074, %v2080, %v2070
      %v2082 = vsel %vm2071, %v2078, %v2081
      %v2083 = vsel %vm2074, 0.7853982, 0.0
      %v2084 = vsel %vm2071, 1.5707964, %v2083
      %v2085 = vmul.f32 %v2082, %v2082
      %v2086 = vmul.f32 %v2085, 0.080537446
      %v2087 = vsub.f32 %v2086, 0.13877685
      %v2088 = vmul.f32 %v2087, %v2085
      %v2089 = vadd.f32 %v2088, 0.19977711
      %v2090 = vmul.f32 %v2089, %v2085
      %v2091 = vsub.f32 %v2090, 0.3333295
      %v2092 = vmul.f32 %v2091, %v2085
      %v2093 = vmul.f32 %v2092, %v2082
      %v2094 = vadd.f32 %v2093, %v2082
      %v2095 = vadd.f32 %v2084, %v2094
      %v2096 = vmul.f32 %v2069, %v2095
      %v2097 = vmul.f32 %v2096, 0.636
      %v2098 = vmul.f32 %v2097, 2.0
      %v2099 = vsel %vm1796, %v2098, 0.0
      %2100 = vadd.xlane.f32.xlu0 %v2099
      %v2101 = vpop.xlane.xlu0 %2100
      %v2102 = vmul.f32 %v2101, %v1800
      %v2103 = vsub.f32 %v2098, %v2102
      %v2104 = vmul.f32 %v2103, 1.442695
      %v2105 = vpow.pop %v2104
      %2106 = vrot.lane.b32.xlu0 %v1503, 120
      %v2107 = vpop.permute.xlu0 %2106
      %v2109 = vmul.f32 %v2105, %v2107
      %2111 = vrot.lane.b32.xlu0 %v2063, 120
      %v2112 = vpop.permute.xlu0 %2111
      %v2114 = vadd.f32 %v2109, %v2112
      %v2115 = vld [vmem:[%s5] sm:$0xff]
      %v2116 = vld [vmem:[%s5 + $0x8] sm:$0xff]
      %v2117 = vld [vmem:[%s6] sm:$0xff]
      %v2118 = vld [vmem:[%s6 + $0x8] sm:$0xff]
      %v2120 = vsel %vm1796, %v2114, 0
      %2122 = vmatprep.subr.mxu0 %v2118
      %2123 = vmatpush1.msra.mxu0 %v2117
      %2124 = vmatprep.subr.mxu0 0.0
      %2125 = vmatpush1.msra.mxu0 0.0
      %2126 = vmatprep.subr.mxu0 0.0
      %2127 = vmatpush1.msra.mxu0 0.0
      %2128 = vmatprep.subr.mxu0 0.0
      %2129 = vmatpush1.msra.mxu0 0.0
      %2130 = vmatprep.subr.mxu0 0.0
      %2131 = vmatpush1.msra.mxu0 0.0
      %2132 = vmatprep.subr.mxu0 0.0
      %2133 = vmatpush1.msra.mxu0 0.0
      %2134 = vmatprep.subr.mxu0 0.0
      %2135 = vmatpush1.msra.mxu0 0.0
      %2136 = vmatprep.subr.mxu0 0.0
      %2137 = vmatpush1.msra.mxu0 0.0
      %2138 = vmatprep.subr.mxu0 0.0
      %2139 = vmatpush1.msra.mxu0 0.0
      %2140 = vmatprep.subr.mxu0 0.0
      %2141 = vmatpush1.msra.mxu0 0.0
      %2142 = vmatprep.subr.mxu0 0.0
      %2143 = vmatpush1.msra.mxu0 0.0
      %2144 = vmatprep.subr.mxu0 0.0
      %2145 = vmatpush1.msra.mxu0 0.0
      %2146 = vmatprep.subr.mxu0 0.0
      %2147 = vmatpush1.msra.mxu0 0.0
      %2148 = vmatprep.subr.mxu0 0.0
      %2149 = vmatpush1.msra.mxu0 0.0
      %2150 = vmatprep.subr.mxu0 0.0
      %2151 = vmatpush1.msra.mxu0 0.0
      %2152 = vmatprep.subr.mxu0 0.0
      %2153 = vmatpush1.msra.mxu0 0.0
      %2154 = vmatprep.subr.mxu0 0.0
      %2155 = vmatpush1.msra.mxu0 0.0
      %2156 = vmatprep.subr.mxu0 0.0
      %2157 = vmatpush1.msra.mxu0 0.0
      %2158 = vmatprep.subr.mxu0 0.0
      %2159 = vmatpush1.msra.mxu0 0.0
      %2160 = vmatprep.subr.mxu0 0.0
      %2161 = vmatpush1.msra.mxu0 0.0
      %2162 = vmatprep.subr.mxu0 0.0
      %2163 = vmatpush1.msra.mxu0 0.0
      %2164 = vmatprep.subr.mxu0 0.0
      %2165 = vmatpush1.msra.mxu0 0.0
      %2166 = vmatprep.subr.mxu0 0.0
      %2167 = vmatpush1.msra.mxu0 0.0
      %2168 = vmatprep.subr.mxu0 0.0
      %2169 = vmatpush1.msra.mxu0 0.0
      %2170 = vmatprep.subr.mxu0 0.0
      %2171 = vmatpush1.msra.mxu0 0.0
      %2172 = vmatprep.subr.mxu0 0.0
      %2173 = vmatpush1.msra.mxu0 0.0
      %2174 = vmatprep.subr.mxu0 0.0
      %2175 = vmatpush1.msra.mxu0 0.0
      %2176 = vmatprep.subr.mxu0 0.0
      %2177 = vmatpush1.msra.mxu0 0.0
      %2178 = vmatprep.subr.mxu0 0.0
      %2179 = vmatpush1.msra.mxu0 0.0
      %2180 = vmatprep.subr.mxu0 0.0
      %2181 = vmatpush1.msra.mxu0 0.0
      %2182 = vmatprep.subr.mxu0 0.0
      %2183 = vmatpush1.msra.mxu0 0.0
      %2184 = vmatprep.subr.mxu0 0.0
      %2185 = vmatpush1.msra.mxu0 0.0
      %2186 = vmatprep.mubr.f32.mxu0 0.0
      %2187 = vmatmul.mubr.f32.gmra.mrb[0].mxu0 %v2120
      %v2188 = vpop.f32.mrb[0].mxu0
      %v2189 = vadd.f32 0.0, %v2188
      %v2190 = vpop.f32.mrb[0].mxu0
      %v2191 = vadd.f32 0.0, %v2190
      %2192 = vdwg.mxu0
      %2193 = vmatprep.subr.mxu0 %v2116
      %2194 = vmatpush1.msra.mxu0 %v2115
      %2195 = vmatprep.subr.mxu0 0.0
      %2196 = vmatpush1.msra.mxu0 0.0
      %2197 = vmatprep.subr.mxu0 0.0
      %2198 = vmatpush1.msra.mxu0 0.0
      %2199 = vmatprep.subr.mxu0 0.0
      %2200 = vmatpush1.msra.mxu0 0.0
      %2201 = vmatprep.subr.mxu0 0.0
      %2202 = vmatpush1.msra.mxu0 0.0
      %2203 = vmatprep.subr.mxu0 0.0
      %2204 = vmatpush1.msra.mxu0 0.0
      %2205 = vmatprep.subr.mxu0 0.0
      %2206 = vmatpush1.msra.mxu0 0.0
      %2207 = vmatprep.subr.mxu0 0.0
      %2208 = vmatpush1.msra.mxu0 0.0
      %2209 = vmatprep.subr.mxu0 0.0
      %2210 = vmatpush1.msra.mxu0 0.0
      %2211 = vmatprep.subr.mxu0 0.0
      %2212 = vmatpush1.msra.mxu0 0.0
      %2213 = vmatprep.subr.mxu0 0.0
      %2214 = vmatpush1.msra.mxu0 0.0
      %2215 = vmatprep.subr.mxu0 0.0
      %2216 = vmatpush1.msra.mxu0 0.0
      %2217 = vmatprep.subr.mxu0 0.0
      %2218 = vmatpush1.msra.mxu0 0.0
      %2219 = vmatprep.subr.mxu0 0.0
      %2220 = vmatpush1.msra.mxu0 0.0
      %2221 = vmatprep.subr.mxu0 0.0
      %2222 = vmatpush1.msra.mxu0 0.0
      %2223 = vmatprep.subr.mxu0 0.0
      %2224 = vmatpush1.msra.mxu0 0.0
      %2225 = vmatprep.subr.mxu0 0.0
      %2226 = vmatpush1.msra.mxu0 0.0
      %2227 = vmatprep.subr.mxu0 0.0
      %2228 = vmatpush1.msra.mxu0 0.0
      %2229 = vmatprep.subr.mxu0 0.0
      %2230 = vmatpush1.msra.mxu0 0.0
      %2231 = vmatprep.subr.mxu0 0.0
      %2232 = vmatpush1.msra.mxu0 0.0
      %2233 = vmatprep.subr.mxu0 0.0
      %2234 = vmatpush1.msra.mxu0 0.0
      %2235 = vmatprep.subr.mxu0 0.0
      %2236 = vmatpush1.msra.mxu0 0.0
      %2237 = vmatprep.subr.mxu0 0.0
      %2238 = vmatpush1.msra.mxu0 0.0
      %2239 = vmatprep.subr.mxu0 0.0
      %2240 = vmatpush1.msra.mxu0 0.0
      %2241 = vmatprep.subr.mxu0 0.0
      %2242 = vmatpush1.msra.mxu0 0.0
      %2243 = vmatprep.subr.mxu0 0.0
      %2244 = vmatpush1.msra.mxu0 0.0
      %2245 = vmatprep.subr.mxu0 0.0
      %2246 = vmatpush1.msra.mxu0 0.0
      %2247 = vmatprep.subr.mxu0 0.0
      %2248 = vmatpush1.msra.mxu0 0.0
      %2249 = vmatprep.subr.mxu0 0.0
      %2250 = vmatpush1.msra.mxu0 0.0
      %2251 = vmatprep.subr.mxu0 0.0
      %2252 = vmatpush1.msra.mxu0 0.0
      %2253 = vmatprep.subr.mxu0 0.0
      %2254 = vmatpush1.msra.mxu0 0.0
      %2255 = vmatprep.subr.mxu0 0.0
      %2256 = vmatpush1.msra.mxu0 0.0
      %2257 = vmatprep.mubr.f32.mxu0 0.0
      %2258 = vmatmul.mubr.f32.gmra.mrb[0].mxu0 %v1816
      %v2259 = vpop.f32.mrb[0].mxu0
      %v2260 = vadd.f32 %v2189, %v2259
      %v2261 = vpop.f32.mrb[0].mxu0
      %v2262 = vadd.f32 %v2191, %v2261
      %2263 = vdwg.mxu0
      %v2264 = vld [vmem:[%s12] sm:$0xff]
      %v2265 = vld [vmem:[%s13] sm:$0xff]
      %2266 = vmatprep.subr.mxu0 0.0
      %2267 = vmatpush1.msra.mxu0 %v2265
      %2268 = vmatprep.subr.mxu0 0.0
      %2269 = vmatpush1.msra.mxu0 0.0
      %2270 = vmatprep.subr.mxu0 0.0
      %2271 = vmatpush1.msra.mxu0 0.0
      %2272 = vmatprep.subr.mxu0 0.0
      %2273 = vmatpush1.msra.mxu0 0.0
      %2274 = vmatprep.subr.mxu0 0.0
      %2275 = vmatpush1.msra.mxu0 0.0
      %2276 = vmatprep.subr.mxu0 0.0
      %2277 = vmatpush1.msra.mxu0 0.0
      %2278 = vmatprep.subr.mxu0 0.0
      %2279 = vmatpush1.msra.mxu0 0.0
      %2280 = vmatprep.subr.mxu0 0.0
      %2281 = vmatpush1.msra.mxu0 0.0
      %2282 = vmatprep.subr.mxu0 0.0
      %2283 = vmatpush1.msra.mxu0 0.0
      %2284 = vmatprep.subr.mxu0 0.0
      %2285 = vmatpush1.msra.mxu0 0.0
      %2286 = vmatprep.subr.mxu0 0.0
      %2287 = vmatpush1.msra.mxu0 0.0
      %2288 = vmatprep.subr.mxu0 0.0
      %2289 = vmatpush1.msra.mxu0 0.0
      %2290 = vmatprep.subr.mxu0 0.0
      %2291 = vmatpush1.msra.mxu0 0.0
      %2292 = vmatprep.subr.mxu0 0.0
      %2293 = vmatpush1.msra.mxu0 0.0
      %2294 = vmatprep.subr.mxu0 0.0
      %2295 = vmatpush1.msra.mxu0 0.0
      %2296 = vmatprep.subr.mxu0 0.0
      %2297 = vmatpush1.msra.mxu0 0.0
      %2298 = vmatprep.subr.mxu0 0.0
      %2299 = vmatpush1.msra.mxu0 0.0
      %2300 = vmatprep.subr.mxu0 0.0
      %2301 = vmatpush1.msra.mxu0 0.0
      %2302 = vmatprep.subr.mxu0 0.0
      %2303 = vmatpush1.msra.mxu0 0.0
      %2304 = vmatprep.subr.mxu0 0.0
      %2305 = vmatpush1.msra.mxu0 0.0
      %2306 = vmatprep.subr.mxu0 0.0
      %2307 = vmatpush1.msra.mxu0 0.0
      %2308 = vmatprep.subr.mxu0 0.0
      %2309 = vmatpush1.msra.mxu0 0.0
      %2310 = vmatprep.subr.mxu0 0.0
      %2311 = vmatpush1.msra.mxu0 0.0
      %2312 = vmatprep.subr.mxu0 0.0
      %2313 = vmatpush1.msra.mxu0 0.0
      %2314 = vmatprep.subr.mxu0 0.0
      %2315 = vmatpush1.msra.mxu0 0.0
      %2316 = vmatprep.subr.mxu0 0.0
      %2317 = vmatpush1.msra.mxu0 0.0
      %2318 = vmatprep.subr.mxu0 0.0
      %2319 = vmatpush1.msra.mxu0 0.0
      %2320 = vmatprep.subr.mxu0 0.0
      %2321 = vmatpush1.msra.mxu0 0.0
      %2322 = vmatprep.subr.mxu0 0.0
      %2323 = vmatpush1.msra.mxu0 0.0
      %2324 = vmatprep.subr.mxu0 0.0
      %2325 = vmatpush1.msra.mxu0 0.0
      %2326 = vmatprep.subr.mxu0 0.0
      %2327 = vmatpush1.msra.mxu0 0.0
      %2328 = vmatprep.subr.mxu0 0.0
      %2329 = vmatpush1.msra.mxu0 0.0
      %2330 = vmatprep.mubr.f32.mxu0 0.0
      %2331 = vmatmul.mubr.f32.gmra.mrb[0].mxu0 %v2120
      %v2332 = vpop.f32.mrb[0].mxu0
      %v2333 = vadd.f32 0.0, %v2332
      %v2334 = vpop.f32.mrb[0].mxu0
      %2335 = vdwg.mxu0
      %2336 = vmatprep.subr.mxu0 0.0
      %2337 = vmatpush1.msra.mxu0 %v2264
      %2338 = vmatprep.subr.mxu0 0.0
      %2339 = vmatpush1.msra.mxu0 0.0
      %2340 = vmatprep.subr.mxu0 0.0
      %2341 = vmatpush1.msra.mxu0 0.0
      %2342 = vmatprep.subr.mxu0 0.0
      %2343 = vmatpush1.msra.mxu0 0.0
      %2344 = vmatprep.subr.mxu0 0.0
      %2345 = vmatpush1.msra.mxu0 0.0
      %2346 = vmatprep.subr.mxu0 0.0
      %2347 = vmatpush1.msra.mxu0 0.0
      %2348 = vmatprep.subr.mxu0 0.0
      %2349 = vmatpush1.msra.mxu0 0.0
      %2350 = vmatprep.subr.mxu0 0.0
      %2351 = vmatpush1.msra.mxu0 0.0
      %2352 = vmatprep.subr.mxu0 0.0
      %2353 = vmatpush1.msra.mxu0 0.0
      %2354 = vmatprep.subr.mxu0 0.0
      %2355 = vmatpush1.msra.mxu0 0.0
      %2356 = vmatprep.subr.mxu0 0.0
      %2357 = vmatpush1.msra.mxu0 0.0
      %2358 = vmatprep.subr.mxu0 0.0
      %2359 = vmatpush1.msra.mxu0 0.0
      %2360 = vmatprep.subr.mxu0 0.0
      %2361 = vmatpush1.msra.mxu0 0.0
      %2362 = vmatprep.subr.mxu0 0.0
      %2363 = vmatpush1.msra.mxu0 0.0
      %2364 = vmatprep.subr.mxu0 0.0
      %2365 = vmatpush1.msra.mxu0 0.0
      %2366 = vmatprep.subr.mxu0 0.0
      %2367 = vmatpush1.msra.mxu0 0.0
      %2368 = vmatprep.subr.mxu0 0.0
      %2369 = vmatpush1.msra.mxu0 0.0
      %2370 = vmatprep.subr.mxu0 0.0
      %2371 = vmatpush1.msra.mxu0 0.0
      %2372 = vmatprep.subr.mxu0 0.0
      %2373 = vmatpush1.msra.mxu0 0.0
      %2374 = vmatprep.subr.mxu0 0.0
      %2375 = vmatpush1.msra.mxu0 0.0
      %2376 = vmatprep.subr.mxu0 0.0
      %2377 = vmatpush1.msra.mxu0 0.0
      %2378 = vmatprep.subr.mxu0 0.0
      %2379 = vmatpush1.msra.mxu0 0.0
      %2380 = vmatprep.subr.mxu0 0.0
      %2381 = vmatpush1.msra.mxu0 0.0
      %2382 = vmatprep.subr.mxu0 0.0
      %2383 = vmatpush1.msra.mxu0 0.0
      %2384 = vmatprep.subr.mxu0 0.0
      %2385 = vmatpush1.msra.mxu0 0.0
      %2386 = vmatprep.subr.mxu0 0.0
      %2387 = vmatpush1.msra.mxu0 0.0
      %2388 = vmatprep.subr.mxu0 0.0
      %2389 = vmatpush1.msra.mxu0 0.0
      %2390 = vmatprep.subr.mxu0 0.0
      %2391 = vmatpush1.msra.mxu0 0.0
      %2392 = vmatprep.subr.mxu0 0.0
      %2393 = vmatpush1.msra.mxu0 0.0
      %2394 = vmatprep.subr.mxu0 0.0
      %2395 = vmatpush1.msra.mxu0 0.0
      %2396 = vmatprep.subr.mxu0 0.0
      %2397 = vmatpush1.msra.mxu0 0.0
      %2398 = vmatprep.subr.mxu0 0.0
      %2399 = vmatpush1.msra.mxu0 0.0
      %2400 = vmatprep.mubr.f32.mxu0 0.0
      %2401 = vmatmul.mubr.f32.gmra.mrb[0].mxu0 %v1816
      %v2402 = vpop.f32.mrb[0].mxu0
      %v2403 = vadd.f32 %v2333, %v2402
      %v2404 = vpop.f32.mrb[0].mxu0
      %2405 = vdwg.mxu0
      %v2406 = vld [vmem:[#allocation2 + $0x30] sm:$0xff]
      %v2407 = vld [vmem:[#allocation2 + $0x38] sm:$0xff]
      %v2408 = vadd.f32 %v2260, %v2406
      %v2409 = vadd.f32 %v2262, %v2407
      %v2410 = vmax.f32 %v2408, 0.0
      %v2411 = vmax.f32 %v2409, 0.0
      %v2412 = vpack.c.bf16 %v2410, %v2410
      %v2413 = vpack.c.bf16 %v2411, %v2411
      %s2414 = scalar_lea.vmem %s7, 384
      %v2415 = vld [vmem:[%s2414] sm:$0xf]
      %v2416 = vld [vmem:[%s2414 + $0x4] sm:$0xf]
      %v2417 = vld [vmem:[%s2414 + $0x8] sm:$0xf]
      %v2418 = vld [vmem:[%s2414 + $0xc] sm:$0xf]
      %v2419 = vld [vmem:[%s2414 + $0x10] sm:$0xf]
      %v2420 = vld [vmem:[%s2414 + $0x14] sm:$0xf]
      %v2421 = vld [vmem:[%s2414 + $0x18] sm:$0xf]
      %v2422 = vld [vmem:[%s2414 + $0x1c] sm:$0xf]
      %v2423 = vld [vmem:[%s2414 + $0x20] sm:$0xf]
      %v2424 = vld [vmem:[%s2414 + $0x24] sm:$0xf]
      %v2425 = vld [vmem:[%s2414 + $0x28] sm:$0xf]
      %v2426 = vld [vmem:[%s2414 + $0x2c] sm:$0xf]
      %v2427 = vld [vmem:[%s2414 + $0x30] sm:$0xf]
      %v2428 = vld [vmem:[%s2414 + $0x34] sm:$0xf]
      %v2429 = vld [vmem:[%s2414 + $0x38] sm:$0xf]
      %v2430 = vld [vmem:[%s2414 + $0x3c] sm:$0xf]
      %v2431 = vld [vmem:[%s2414 + $0x40] sm:$0xf]
      %v2432 = vld [vmem:[%s2414 + $0x44] sm:$0xf]
      %v2433 = vld [vmem:[%s2414 + $0x48] sm:$0xf]
      %v2434 = vld [vmem:[%s2414 + $0x4c] sm:$0xf]
      %v2435 = vld [vmem:[%s2414 + $0x50] sm:$0xf]
      %v2436 = vld [vmem:[%s2414 + $0x54] sm:$0xf]
      %v2437 = vld [vmem:[%s2414 + $0x58] sm:$0xf]
      %v2438 = vld [vmem:[%s2414 + $0x5c] sm:$0xf]
      %v2439 = vld [vmem:[%s2414 + $0x60] sm:$0xf]
      %v2440 = vld [vmem:[%s2414 + $0x64] sm:$0xf]
      %v2441 = vld [vmem:[%s2414 + $0x68] sm:$0xf]
      %v2442 = vld [vmem:[%s2414 + $0x6c] sm:$0xf]
      %v2443 = vld [vmem:[%s2414 + $0x70] sm:$0xf]
      %v2444 = vld [vmem:[%s2414 + $0x74] sm:$0xf]
      %v2445 = vld [vmem:[%s2414 + $0x78] sm:$0xf]
      %v2446 = vld [vmem:[%s2414 + $0x7c] sm:$0xf]
      %s2447 = scalar_lea.vmem %s8, 3
      %v2448 = vld [vmem:[%s2447] sm:$0x1]
      %v2450 = vlaneseq
      %v2451 = vshrl.u32 %v2450, 7
      %v2452 = vsub.s32 0, %v2451
      %v2453 = vrot.slane %v2448, %v2452
      %v2487 = vunpack.c.l.b16 %v2415
      %v2488 = vunpack.c.l.b16 %v2416
      %v2489 = vunpack.c.l.b16 %v2417
      %v2490 = vunpack.c.l.b16 %v2418
      %v2491 = vunpack.c.l.b16 %v2419
      %v2492 = vunpack.c.l.b16 %v2420
      %v2493 = vunpack.c.l.b16 %v2421
      %v2494 = vunpack.c.l.b16 %v2422
      %v2495 = vunpack.c.l.b16 %v2423
      %v2496 = vunpack.c.l.b16 %v2424
      %v2497 = vunpack.c.l.b16 %v2425
      %v2498 = vunpack.c.l.b16 %v2426
      %v2499 = vunpack.c.l.b16 %v2427
      %v2500 = vunpack.c.l.b16 %v2428
      %v2501 = vunpack.c.l.b16 %v2429
      %v2502 = vunpack.c.l.b16 %v2430
      %v2503 = vunpack.c.l.b16 %v2431
      %v2504 = vunpack.c.l.b16 %v2432
      %v2505 = vunpack.c.l.b16 %v2433
      %v2506 = vunpack.c.l.b16 %v2434
      %v2507 = vunpack.c.l.b16 %v2435
      %v2508 = vunpack.c.l.b16 %v2436
      %v2509 = vunpack.c.l.b16 %v2437
      %v2510 = vunpack.c.l.b16 %v2438
      %v2511 = vunpack.c.l.b16 %v2439
      %v2512 = vunpack.c.l.b16 %v2440
      %v2513 = vunpack.c.l.b16 %v2441
      %v2514 = vunpack.c.l.b16 %v2442
      %v2515 = vunpack.c.l.b16 %v2443
      %v2516 = vunpack.c.l.b16 %v2444
      %v2517 = vunpack.c.l.b16 %v2445
      %v2518 = vunpack.c.l.b16 %v2446
      %v2519 = vpack.c.b16 %v2488, %v2487
      %v2520 = vpack.c.b16 %v2490, %v2489
      %v2521 = vpack.c.b16 %v2492, %v2491
      %v2522 = vpack.c.b16 %v2494, %v2493
      %v2523 = vpack.c.b16 %v2496, %v2495
      %v2524 = vpack.c.b16 %v2498, %v2497
      %v2525 = vpack.c.b16 %v2500, %v2499
      %v2526 = vpack.c.b16 %v2502, %v2501
      %v2527 = vpack.c.b16 %v2504, %v2503
      %v2528 = vpack.c.b16 %v2506, %v2505
      %v2529 = vpack.c.b16 %v2508, %v2507
      %v2530 = vpack.c.b16 %v2510, %v2509
      %v2531 = vpack.c.b16 %v2512, %v2511
      %v2532 = vpack.c.b16 %v2514, %v2513
      %v2533 = vpack.c.b16 %v2516, %v2515
      %v2534 = vpack.c.b16 %v2518, %v2517
      %2551 = vmatprep.subr.bf16.mxu0 0
      %2552 = vmatpush1.bf16.msra.mxu0 %v2519
      %2553 = vmatprep.subr.bf16.mxu0 0
      %2554 = vmatpush1.bf16.msra.mxu0 %v2520
      %2555 = vmatprep.subr.bf16.mxu0 0
      %2556 = vmatpush1.bf16.msra.mxu0 %v2521
      %2557 = vmatprep.subr.bf16.mxu0 0
      %2558 = vmatpush1.bf16.msra.mxu0 %v2522
      %2559 = vmatprep.subr.bf16.mxu0 0
      %2560 = vmatpush1.bf16.msra.mxu0 %v2523
      %2561 = vmatprep.subr.bf16.mxu0 0
      %2562 = vmatpush1.bf16.msra.mxu0 %v2524
      %2563 = vmatprep.subr.bf16.mxu0 0
      %2564 = vmatpush1.bf16.msra.mxu0 %v2525
      %2565 = vmatprep.subr.bf16.mxu0 0
      %2566 = vmatpush1.bf16.msra.mxu0 %v2526
      %2567 = vmatprep.subr.bf16.mxu0 0
      %2568 = vmatpush1.bf16.msra.mxu0 %v2527
      %2569 = vmatprep.subr.bf16.mxu0 0
      %2570 = vmatpush1.bf16.msra.mxu0 %v2528
      %2571 = vmatprep.subr.bf16.mxu0 0
      %2572 = vmatpush1.bf16.msra.mxu0 %v2529
      %2573 = vmatprep.subr.bf16.mxu0 0
      %2574 = vmatpush1.bf16.msra.mxu0 %v2530
      %2575 = vmatprep.subr.bf16.mxu0 0
      %2576 = vmatpush1.bf16.msra.mxu0 %v2531
      %2577 = vmatprep.subr.bf16.mxu0 0
      %2578 = vmatpush1.bf16.msra.mxu0 %v2532
      %2579 = vmatprep.subr.bf16.mxu0 0
      %2580 = vmatpush1.bf16.msra.mxu0 %v2533
      %2581 = vmatprep.subr.bf16.mxu0 0
      %2582 = vmatpush1.bf16.msra.mxu0 %v2534
      %2583 = vmatprep.mubr.bf16.mxu0 %v2413
      %2584 = vmatmul.mubr.bf16.gmra.mrb[0].mxu0 %v2412
      %v2585 = vpop.f32.mrb[0].mxu0
      %v2586 = vadd.f32 %v2453, %v2585
      %v2587 = vpop.f32.mrb[0].mxu0
      %v2588 = vpop.f32.mrb[0].mxu0
      %v2589 = vpop.f32.mrb[0].mxu0
      %2590 = vdwg.mxu0
      %vm2591 = vcmp.lt.f32.partialorder %v2586, 0.0
      %v2592 = vsel %vm2591, -1.0, 1.0
      %v2593 = vand.u32 2147483647, %v2586
      %vm2594 = vcmp.gt.f32.partialorder %v2593, 2.4142137
      %vm2595 = vmxor %vm2594, 1
      %vm2596 = vcmp.gt.f32.partialorder %v2593, 0.41421357
      %vm2597 = vmand %vm2595, %vm2596
      %v2598 = vadd.f32 %v2593, 1.0
      %v2599 = vsel %vm2594, %v2593, %v2598
      %v2600 = vrcp.pop %v2599
      %v2601 = vsub.f32 0.0, %v2600
      %v2602 = vsub.f32 %v2593, 1.0
      %v2603 = vmul.f32 %v2602, %v2600
      %v2604 = vsel %vm2597, %v2603, %v2593
      %v2605 = vsel %vm2594, %v2601, %v2604
      %v2606 = vsel %vm2597, 0.7853982, 0.0
      %v2607 = vsel %vm2594, 1.5707964, %v2606
      %v2608 = vmul.f32 %v2605, %v2605
      %v2609 = vmul.f32 %v2608, 0.080537446
      %v2610 = vsub.f32 %v2609, 0.13877685
      %v2611 = vmul.f32 %v2610, %v2608
      %v2612 = vadd.f32 %v2611, 0.19977711
      %v2613 = vmul.f32 %v2612, %v2608
      %v2614 = vsub.f32 %v2613, 0.3333295
      %v2615 = vmul.f32 %v2614, %v2608
      %v2616 = vmul.f32 %v2615, %v2605
      %v2617 = vadd.f32 %v2616, %v2605
      %v2618 = vadd.f32 %v2607, %v2617
      %v2619 = vmul.f32 %v2592, %v2618
      %v2620 = vmul.f32 %v2619, 0.636
      %v2621 = vmul.f32 %v2620, 2.0
      %v2622 = vsel %vm1796, %v2621, 0.0
      %2623 = vadd.xlane.f32.xlu0 %v2622
      %v2624 = vpop.xlane.xlu0 %2623
      %v2625 = vmul.f32 %v2624, %v1800
      %v2626 = vsub.f32 %v2621, %v2625
      %v2627 = vmul.f32 %v2626, 1.442695
      %v2628 = vpow.pop %v2627
      %v2629 = vmul.f32 %v2628, %v2403
      %2631 = vrot.lane.b32.xlu0 %v2586, 120
      %v2632 = vpop.permute.xlu0 %2631
      %v2634 = vadd.f32 %v2629, %v2632
      %s2635 = scalar_lea.vmem %s4, 16
      %v2636 = vld [vmem:[%s2635] sm:$0xff]
      %v2637 = vld [vmem:[%s2635 + $0x8] sm:$0xff]
      %v2638 = vld [vmem:[#allocation2 + $0x20] sm:$0xff]
      %v2639 = vld [vmem:[#allocation2 + $0x28] sm:$0xff]
      %v2641 = vsel %vm1796, %v2634, 0
      %2643 = vmatprep.subr.mxu0 %v2637
      %2644 = vmatpush1.msra.mxu0 %v2636
      %2645 = vmatprep.subr.mxu0 0.0
      %2646 = vmatpush1.msra.mxu0 0.0
      %2647 = vmatprep.subr.mxu0 0.0
      %2648 = vmatpush1.msra.mxu0 0.0
      %2649 = vmatprep.subr.mxu0 0.0
      %2650 = vmatpush1.msra.mxu0 0.0
      %2651 = vmatprep.subr.mxu0 0.0
      %2652 = vmatpush1.msra.mxu0 0.0
      %2653 = vmatprep.subr.mxu0 0.0
      %2654 = vmatpush1.msra.mxu0 0.0
      %2655 = vmatprep.subr.mxu0 0.0
      %2656 = vmatpush1.msra.mxu0 0.0
      %2657 = vmatprep.subr.mxu0 0.0
      %2658 = vmatpush1.msra.mxu0 0.0
      %2659 = vmatprep.subr.mxu0 0.0
      %2660 = vmatpush1.msra.mxu0 0.0
      %2661 = vmatprep.subr.mxu0 0.0
      %2662 = vmatpush1.msra.mxu0 0.0
      %2663 = vmatprep.subr.mxu0 0.0
      %2664 = vmatpush1.msra.mxu0 0.0
      %2665 = vmatprep.subr.mxu0 0.0
      %2666 = vmatpush1.msra.mxu0 0.0
      %2667 = vmatprep.subr.mxu0 0.0
      %2668 = vmatpush1.msra.mxu0 0.0
      %2669 = vmatprep.subr.mxu0 0.0
      %2670 = vmatpush1.msra.mxu0 0.0
      %2671 = vmatprep.subr.mxu0 0.0
      %2672 = vmatpush1.msra.mxu0 0.0
      %2673 = vmatprep.subr.mxu0 0.0
      %2674 = vmatpush1.msra.mxu0 0.0
      %2675 = vmatprep.subr.mxu0 0.0
      %2676 = vmatpush1.msra.mxu0 0.0
      %2677 = vmatprep.subr.mxu0 0.0
      %2678 = vmatpush1.msra.mxu0 0.0
      %2679 = vmatprep.subr.mxu0 0.0
      %2680 = vmatpush1.msra.mxu0 0.0
      %2681 = vmatprep.subr.mxu0 0.0
      %2682 = vmatpush1.msra.mxu0 0.0
      %2683 = vmatprep.subr.mxu0 0.0
      %2684 = vmatpush1.msra.mxu0 0.0
      %2685 = vmatprep.subr.mxu0 0.0
      %2686 = vmatpush1.msra.mxu0 0.0
      %2687 = vmatprep.subr.mxu0 0.0
      %2688 = vmatpush1.msra.mxu0 0.0
      %2689 = vmatprep.subr.mxu0 0.0
      %2690 = vmatpush1.msra.mxu0 0.0
      %2691 = vmatprep.subr.mxu0 0.0
      %2692 = vmatpush1.msra.mxu0 0.0
      %2693 = vmatprep.subr.mxu0 0.0
      %2694 = vmatpush1.msra.mxu0 0.0
      %2695 = vmatprep.subr.mxu0 0.0
      %2696 = vmatpush1.msra.mxu0 0.0
      %2697 = vmatprep.subr.mxu0 0.0
      %2698 = vmatpush1.msra.mxu0 0.0
      %2699 = vmatprep.subr.mxu0 0.0
      %2700 = vmatpush1.msra.mxu0 0.0
      %2701 = vmatprep.subr.mxu0 0.0
      %2702 = vmatpush1.msra.mxu0 0.0
      %2703 = vmatprep.subr.mxu0 0.0
      %2704 = vmatpush1.msra.mxu0 0.0
      %2705 = vmatprep.subr.mxu0 0.0
      %2706 = vmatpush1.msra.mxu0 0.0
      %2707 = vmatprep.mubr.f32.mxu0 0.0
      %2708 = vmatmul.mubr.f32.gmra.mrb[0].mxu0 %v2641
      %v2709 = vpop.f32.mrb[0].mxu0
      %v2710 = vadd.f32 %v2638, %v2709
      %v2711 = vpop.f32.mrb[0].mxu0
      %v2712 = vadd.f32 %v2639, %v2711
      %2713 = vdwg.mxu0
      %v2714 = vmax.f32 %v2710, 0.0
      %v2715 = vmax.f32 %v2712, 0.0
      %v2716 = vpack.c.bf16 %v2714, %v2714
      %v2717 = vpack.c.bf16 %v2715, %v2715
      %s2718 = scalar_lea.vmem %s7, 256
      %v2719 = vld [vmem:[%s2718] sm:$0xf]
      %v2720 = vld [vmem:[%s2718 + $0x4] sm:$0xf]
      %v2721 = vld [vmem:[%s2718 + $0x8] sm:$0xf]
      %v2722 = vld [vmem:[%s2718 + $0xc] sm:$0xf]
      %v2723 = vld [vmem:[%s2718 + $0x10] sm:$0xf]
      %v2724 = vld [vmem:[%s2718 + $0x14] sm:$0xf]
      %v2725 = vld [vmem:[%s2718 + $0x18] sm:$0xf]
      %v2726 = vld [vmem:[%s2718 + $0x1c] sm:$0xf]
      %v2727 = vld [vmem:[%s2718 + $0x20] sm:$0xf]
      %v2728 = vld [vmem:[%s2718 + $0x24] sm:$0xf]
      %v2729 = vld [vmem:[%s2718 + $0x28] sm:$0xf]
      %v2730 = vld [vmem:[%s2718 + $0x2c] sm:$0xf]
      %v2731 = vld [vmem:[%s2718 + $0x30] sm:$0xf]
      %v2732 = vld [vmem:[%s2718 + $0x34] sm:$0xf]
      %v2733 = vld [vmem:[%s2718 + $0x38] sm:$0xf]
      %v2734 = vld [vmem:[%s2718 + $0x3c] sm:$0xf]
      %v2735 = vld [vmem:[%s2718 + $0x40] sm:$0xf]
      %v2736 = vld [vmem:[%s2718 + $0x44] sm:$0xf]
      %v2737 = vld [vmem:[%s2718 + $0x48] sm:$0xf]
      %v2738 = vld [vmem:[%s2718 + $0x4c] sm:$0xf]
      %v2739 = vld [vmem:[%s2718 + $0x50] sm:$0xf]
      %v2740 = vld [vmem:[%s2718 + $0x54] sm:$0xf]
      %v2741 = vld [vmem:[%s2718 + $0x58] sm:$0xf]
      %v2742 = vld [vmem:[%s2718 + $0x5c] sm:$0xf]
      %v2743 = vld [vmem:[%s2718 + $0x60] sm:$0xf]
      %v2744 = vld [vmem:[%s2718 + $0x64] sm:$0xf]
      %v2745 = vld [vmem:[%s2718 + $0x68] sm:$0xf]
      %v2746 = vld [vmem:[%s2718 + $0x6c] sm:$0xf]
      %v2747 = vld [vmem:[%s2718 + $0x70] sm:$0xf]
      %v2748 = vld [vmem:[%s2718 + $0x74] sm:$0xf]
      %v2749 = vld [vmem:[%s2718 + $0x78] sm:$0xf]
      %v2750 = vld [vmem:[%s2718 + $0x7c] sm:$0xf]
      %s2751 = scalar_lea.vmem %s8, 2
      %v2752 = vld [vmem:[%s2751] sm:$0x1]
      %v2754 = vlaneseq
      %v2755 = vshrl.u32 %v2754, 7
      %v2756 = vsub.s32 0, %v2755
      %v2757 = vrot.slane %v2752, %v2756
      %v2791 = vunpack.c.l.b16 %v2719
      %v2792 = vunpack.c.l.b16 %v2720
      %v2793 = vunpack.c.l.b16 %v2721
      %v2794 = vunpack.c.l.b16 %v2722
      %v2795 = vunpack.c.l.b16 %v2723
      %v2796 = vunpack.c.l.b16 %v2724
      %v2797 = vunpack.c.l.b16 %v2725
      %v2798 = vunpack.c.l.b16 %v2726
      %v2799 = vunpack.c.l.b16 %v2727
      %v2800 = vunpack.c.l.b16 %v2728
      %v2801 = vunpack.c.l.b16 %v2729
      %v2802 = vunpack.c.l.b16 %v2730
      %v2803 = vunpack.c.l.b16 %v2731
      %v2804 = vunpack.c.l.b16 %v2732
      %v2805 = vunpack.c.l.b16 %v2733
      %v2806 = vunpack.c.l.b16 %v2734
      %v2807 = vunpack.c.l.b16 %v2735
      %v2808 = vunpack.c.l.b16 %v2736
      %v2809 = vunpack.c.l.b16 %v2737
      %v2810 = vunpack.c.l.b16 %v2738
      %v2811 = vunpack.c.l.b16 %v2739
      %v2812 = vunpack.c.l.b16 %v2740
      %v2813 = vunpack.c.l.b16 %v2741
      %v2814 = vunpack.c.l.b16 %v2742
      %v2815 = vunpack.c.l.b16 %v2743
      %v2816 = vunpack.c.l.b16 %v2744
      %v2817 = vunpack.c.l.b16 %v2745
      %v2818 = vunpack.c.l.b16 %v2746
      %v2819 = vunpack.c.l.b16 %v2747
      %v2820 = vunpack.c.l.b16 %v2748
      %v2821 = vunpack.c.l.b16 %v2749
      %v2822 = vunpack.c.l.b16 %v2750
      %v2823 = vpack.c.b16 %v2792, %v2791
      %v2824 = vpack.c.b16 %v2794, %v2793
      %v2825 = vpack.c.b16 %v2796, %v2795
      %v2826 = vpack.c.b16 %v2798, %v2797
      %v2827 = vpack.c.b16 %v2800, %v2799
      %v2828 = vpack.c.b16 %v2802, %v2801
      %v2829 = vpack.c.b16 %v2804, %v2803
      %v2830 = vpack.c.b16 %v2806, %v2805
      %v2831 = vpack.c.b16 %v2808, %v2807
      %v2832 = vpack.c.b16 %v2810, %v2809
      %v2833 = vpack.c.b16 %v2812, %v2811
      %v2834 = vpack.c.b16 %v2814, %v2813
      %v2835 = vpack.c.b16 %v2816, %v2815
      %v2836 = vpack.c.b16 %v2818, %v2817
      %v2837 = vpack.c.b16 %v2820, %v2819
      %v2838 = vpack.c.b16 %v2822, %v2821
      %2855 = vmatprep.subr.bf16.mxu0 0
      %2856 = vmatpush1.bf16.msra.mxu0 %v2823
      %2857 = vmatprep.subr.bf16.mxu0 0
      %2858 = vmatpush1.bf16.msra.mxu0 %v2824
      %2859 = vmatprep.subr.bf16.mxu0 0
      %2860 = vmatpush1.bf16.msra.mxu0 %v2825
      %2861 = vmatprep.subr.bf16.mxu0 0
      %2862 = vmatpush1.bf16.msra.mxu0 %v2826
      %2863 = vmatprep.subr.bf16.mxu0 0
      %2864 = vmatpush1.bf16.msra.mxu0 %v2827
      %2865 = vmatprep.subr.bf16.mxu0 0
      %2866 = vmatpush1.bf16.msra.mxu0 %v2828
      %2867 = vmatprep.subr.bf16.mxu0 0
      %2868 = vmatpush1.bf16.msra.mxu0 %v2829
      %2869 = vmatprep.subr.bf16.mxu0 0
      %2870 = vmatpush1.bf16.msra.mxu0 %v2830
      %2871 = vmatprep.subr.bf16.mxu0 0
      %2872 = vmatpush1.bf16.msra.mxu0 %v2831
      %2873 = vmatprep.subr.bf16.mxu0 0
      %2874 = vmatpush1.bf16.msra.mxu0 %v2832
      %2875 = vmatprep.subr.bf16.mxu0 0
      %2876 = vmatpush1.bf16.msra.mxu0 %v2833
      %2877 = vmatprep.subr.bf16.mxu0 0
      %2878 = vmatpush1.bf16.msra.mxu0 %v2834
      %2879 = vmatprep.subr.bf16.mxu0 0
      %2880 = vmatpush1.bf16.msra.mxu0 %v2835
      %2881 = vmatprep.subr.bf16.mxu0 0
      %2882 = vmatpush1.bf16.msra.mxu0 %v2836
      %2883 = vmatprep.subr.bf16.mxu0 0
      %2884 = vmatpush1.bf16.msra.mxu0 %v2837
      %2885 = vmatprep.subr.bf16.mxu0 0
      %2886 = vmatpush1.bf16.msra.mxu0 %v2838
      %2887 = vmatprep.mubr.bf16.mxu0 %v2717
      %2888 = vmatmul.mubr.bf16.gmra.mrb[0].mxu0 %v2716
      %v2889 = vpop.f32.mrb[0].mxu0
      %v2890 = vadd.f32 %v2757, %v2889
      %v2891 = vpop.f32.mrb[0].mxu0
      %v2892 = vpop.f32.mrb[0].mxu0
      %v2893 = vpop.f32.mrb[0].mxu0
      %2894 = vdwg.mxu0
      %vm2895 = vcmp.lt.f32.partialorder %v2890, 0.0
      %v2896 = vsel %vm2895, -1.0, 1.0
      %v2897 = vand.u32 2147483647, %v2890
      %vm2898 = vcmp.gt.f32.partialorder %v2897, 2.4142137
      %vm2899 = vmxor %vm2898, 1
      %vm2900 = vcmp.gt.f32.partialorder %v2897, 0.41421357
      %vm2901 = vmand %vm2899, %vm2900
      %v2902 = vadd.f32 %v2897, 1.0
      %v2903 = vsel %vm2898, %v2897, %v2902
      %v2904 = vrcp.pop %v2903
      %v2905 = vsub.f32 0.0, %v2904
      %v2906 = vsub.f32 %v2897, 1.0
      %v2907 = vmul.f32 %v2906, %v2904
      %v2908 = vsel %vm2901, %v2907, %v2897
      %v2909 = vsel %vm2898, %v2905, %v2908
      %v2910 = vsel %vm2901, 0.7853982, 0.0
      %v2911 = vsel %vm2898, 1.5707964, %v2910
      %v2912 = vmul.f32 %v2909, %v2909
      %v2913 = vmul.f32 %v2912, 0.080537446
      %v2914 = vsub.f32 %v2913, 0.13877685
      %v2915 = vmul.f32 %v2914, %v2912
      %v2916 = vadd.f32 %v2915, 0.19977711
      %v2917 = vmul.f32 %v2916, %v2912
      %v2918 = vsub.f32 %v2917, 0.3333295
      %v2919 = vmul.f32 %v2918, %v2912
      %v2920 = vmul.f32 %v2919, %v2909
      %v2921 = vadd.f32 %v2920, %v2909
      %v2922 = vadd.f32 %v2911, %v2921
      %v2923 = vmul.f32 %v2896, %v2922
      %v2924 = vmul.f32 %v2923, 0.636
      %v2925 = vmul.f32 %v2924, 2.0
      %v2926 = vsel %vm1796, %v2925, 0.0
      %2927 = vadd.xlane.f32.xlu0 %v2926
      %v2928 = vpop.xlane.xlu0 %2927
      %v2929 = vmul.f32 %v2928, %v1800
      %v2930 = vsub.f32 %v2925, %v2929
      %v2931 = vmul.f32 %v2930, 1.442695
      %v2932 = vpow.pop %v2931
      %2934 = vrot.lane.b32.xlu0 %v2403, 120
      %v2935 = vpop.permute.xlu0 %2934
      %v2937 = vmul.f32 %v2932, %v2935
      %2939 = vrot.lane.b32.xlu0 %v2890, 120
      %v2940 = vpop.permute.xlu0 %2939
      %v2942 = vadd.f32 %v2937, %v2940
      %s2943 = scalar_lea.vmem %s5, 16
      %v2944 = vld [vmem:[%s2943] sm:$0xff]
      %v2945 = vld [vmem:[%s2943 + $0x8] sm:$0xff]
      %s2946 = scalar_lea.vmem %s6, 16
      %v2947 = vld [vmem:[%s2946] sm:$0xff]
      %v2948 = vld [vmem:[%s2946 + $0x8] sm:$0xff]
      %v2950 = vsel %vm1796, %v2942, 0
      %2952 = vmatprep.subr.mxu0 %v2948
      %2953 = vmatpush1.msra.mxu0 %v2947
      %2954 = vmatprep.subr.mxu0 0.0
      %2955 = vmatpush1.msra.mxu0 0.0
      %2956 = vmatprep.subr.mxu0 0.0
      %2957 = vmatpush1.msra.mxu0 0.0
      %2958 = vmatprep.subr.mxu0 0.0
      %2959 = vmatpush1.msra.mxu0 0.0
      %2960 = vmatprep.subr.mxu0 0.0
      %2961 = vmatpush1.msra.mxu0 0.0
      %2962 = vmatprep.subr.mxu0 0.0
      %2963 = vmatpush1.msra.mxu0 0.0
      %2964 = vmatprep.subr.mxu0 0.0
      %2965 = vmatpush1.msra.mxu0 0.0
      %2966 = vmatprep.subr.mxu0 0.0
      %2967 = vmatpush1.msra.mxu0 0.0
      %2968 = vmatprep.subr.mxu0 0.0
      %2969 = vmatpush1.msra.mxu0 0.0
      %2970 = vmatprep.subr.mxu0 0.0
      %2971 = vmatpush1.msra.mxu0 0.0
      %2972 = vmatprep.subr.mxu0 0.0
      %2973 = vmatpush1.msra.mxu0 0.0
      %2974 = vmatprep.subr.mxu0 0.0
      %2975 = vmatpush1.msra.mxu0 0.0
      %2976 = vmatprep.subr.mxu0 0.0
      %2977 = vmatpush1.msra.mxu0 0.0
      %2978 = vmatprep.subr.mxu0 0.0
      %2979 = vmatpush1.msra.mxu0 0.0
      %2980 = vmatprep.subr.mxu0 0.0
      %2981 = vmatpush1.msra.mxu0 0.0
      %2982 = vmatprep.subr.mxu0 0.0
      %2983 = vmatpush1.msra.mxu0 0.0
      %2984 = vmatprep.subr.mxu0 0.0
      %2985 = vmatpush1.msra.mxu0 0.0
      %2986 = vmatprep.subr.mxu0 0.0
      %2987 = vmatpush1.msra.mxu0 0.0
      %2988 = vmatprep.subr.mxu0 0.0
      %2989 = vmatpush1.msra.mxu0 0.0
      %2990 = vmatprep.subr.mxu0 0.0
      %2991 = vmatpush1.msra.mxu0 0.0
      %2992 = vmatprep.subr.mxu0 0.0
      %2993 = vmatpush1.msra.mxu0 0.0
      %2994 = vmatprep.subr.mxu0 0.0
      %2995 = vmatpush1.msra.mxu0 0.0
      %2996 = vmatprep.subr.mxu0 0.0
      %2997 = vmatpush1.msra.mxu0 0.0
      %2998 = vmatprep.subr.mxu0 0.0
      %2999 = vmatpush1.msra.mxu0 0.0
      %3000 = vmatprep.subr.mxu0 0.0
      %3001 = vmatpush1.msra.mxu0 0.0
      %3002 = vmatprep.subr.mxu0 0.0
      %3003 = vmatpush1.msra.mxu0 0.0
      %3004 = vmatprep.subr.mxu0 0.0
      %3005 = vmatpush1.msra.mxu0 0.0
      %3006 = vmatprep.subr.mxu0 0.0
      %3007 = vmatpush1.msra.mxu0 0.0
      %3008 = vmatprep.subr.mxu0 0.0
      %3009 = vmatpush1.msra.mxu0 0.0
      %3010 = vmatprep.subr.mxu0 0.0
      %3011 = vmatpush1.msra.mxu0 0.0
      %3012 = vmatprep.subr.mxu0 0.0
      %3013 = vmatpush1.msra.mxu0 0.0
      %3014 = vmatprep.subr.mxu0 0.0
      %3015 = vmatpush1.msra.mxu0 0.0
      %3016 = vmatprep.mubr.f32.mxu0 0.0
      %3017 = vmatmul.mubr.f32.gmra.mrb[0].mxu0 %v2950
      %v3018 = vpop.f32.mrb[0].mxu0
      %v3019 = vadd.f32 0.0, %v3018
      %v3020 = vpop.f32.mrb[0].mxu0
      %v3021 = vadd.f32 0.0, %v3020
      %3022 = vdwg.mxu0
      %3023 = vmatprep.subr.mxu0 %v2945
      %3024 = vmatpush1.msra.mxu0 %v2944
      %3025 = vmatprep.subr.mxu0 0.0
      %3026 = vmatpush1.msra.mxu0 0.0
      %3027 = vmatprep.subr.mxu0 0.0
      %3028 = vmatpush1.msra.mxu0 0.0
      %3029 = vmatprep.subr.mxu0 0.0
      %3030 = vmatpush1.msra.mxu0 0.0
      %3031 = vmatprep.subr.mxu0 0.0
      %3032 = vmatpush1.msra.mxu0 0.0
      %3033 = vmatprep.subr.mxu0 0.0
      %3034 = vmatpush1.msra.mxu0 0.0
      %3035 = vmatprep.subr.mxu0 0.0
      %3036 = vmatpush1.msra.mxu0 0.0
      %3037 = vmatprep.subr.mxu0 0.0
      %3038 = vmatpush1.msra.mxu0 0.0
      %3039 = vmatprep.subr.mxu0 0.0
      %3040 = vmatpush1.msra.mxu0 0.0
      %3041 = vmatprep.subr.mxu0 0.0
      %3042 = vmatpush1.msra.mxu0 0.0
      %3043 = vmatprep.subr.mxu0 0.0
      %3044 = vmatpush1.msra.mxu0 0.0
      %3045 = vmatprep.subr.mxu0 0.0
      %3046 = vmatpush1.msra.mxu0 0.0
      %3047 = vmatprep.subr.mxu0 0.0
      %3048 = vmatpush1.msra.mxu0 0.0
      %3049 = vmatprep.subr.mxu0 0.0
      %3050 = vmatpush1.msra.mxu0 0.0
      %3051 = vmatprep.subr.mxu0 0.0
      %3052 = vmatpush1.msra.mxu0 0.0
      %3053 = vmatprep.subr.mxu0 0.0
      %3054 = vmatpush1.msra.mxu0 0.0
      %3055 = vmatprep.subr.mxu0 0.0
      %3056 = vmatpush1.msra.mxu0 0.0
      %3057 = vmatprep.subr.mxu0 0.0
      %3058 = vmatpush1.msra.mxu0 0.0
      %3059 = vmatprep.subr.mxu0 0.0
      %3060 = vmatpush1.msra.mxu0 0.0
      %3061 = vmatprep.subr.mxu0 0.0
      %3062 = vmatpush1.msra.mxu0 0.0
      %3063 = vmatprep.subr.mxu0 0.0
      %3064 = vmatpush1.msra.mxu0 0.0
      %3065 = vmatprep.subr.mxu0 0.0
      %3066 = vmatpush1.msra.mxu0 0.0
      %3067 = vmatprep.subr.mxu0 0.0
      %3068 = vmatpush1.msra.mxu0 0.0
      %3069 = vmatprep.subr.mxu0 0.0
      %3070 = vmatpush1.msra.mxu0 0.0
      %3071 = vmatprep.subr.mxu0 0.0
      %3072 = vmatpush1.msra.mxu0 0.0
      %3073 = vmatprep.subr.mxu0 0.0
      %3074 = vmatpush1.msra.mxu0 0.0
      %3075 = vmatprep.subr.mxu0 0.0
      %3076 = vmatpush1.msra.mxu0 0.0
      %3077 = vmatprep.subr.mxu0 0.0
      %3078 = vmatpush1.msra.mxu0 0.0
      %3079 = vmatprep.subr.mxu0 0.0
      %3080 = vmatpush1.msra.mxu0 0.0
      %3081 = vmatprep.subr.mxu0 0.0
      %3082 = vmatpush1.msra.mxu0 0.0
      %3083 = vmatprep.subr.mxu0 0.0
      %3084 = vmatpush1.msra.mxu0 0.0
      %3085 = vmatprep.subr.mxu0 0.0
      %3086 = vmatpush1.msra.mxu0 0.0
      %3087 = vmatprep.mubr.f32.mxu0 0.0
      %3088 = vmatmul.mubr.f32.gmra.mrb[0].mxu0 %v2641
      %v3089 = vpop.f32.mrb[0].mxu0
      %v3090 = vadd.f32 %v3019, %v3089
      %v3091 = vpop.f32.mrb[0].mxu0
      %v3092 = vadd.f32 %v3021, %v3091
      %3093 = vdwg.mxu0
      %s3094 = scalar_lea.vmem %s12, 8
      %v3095 = vld [vmem:[%s3094] sm:$0xff]
      %s3096 = scalar_lea.vmem %s13, 8
      %v3097 = vld [vmem:[%s3096] sm:$0xff]
      %3098 = vmatprep.subr.mxu0 0.0
      %3099 = vmatpush1.msra.mxu0 %v3097
      %3100 = vmatprep.subr.mxu0 0.0
      %3101 = vmatpush1.msra.mxu0 0.0
      %3102 = vmatprep.subr.mxu0 0.0
      %3103 = vmatpush1.msra.mxu0 0.0
      %3104 = vmatprep.subr.mxu0 0.0
      %3105 = vmatpush1.msra.mxu0 0.0
      %3106 = vmatprep.subr.mxu0 0.0
      %3107 = vmatpush1.msra.mxu0 0.0
      %3108 = vmatprep.subr.mxu0 0.0
      %3109 = vmatpush1.msra.mxu0 0.0
      %3110 = vmatprep.subr.mxu0 0.0
      %3111 = vmatpush1.msra.mxu0 0.0
      %3112 = vmatprep.subr.mxu0 0.0
      %3113 = vmatpush1.msra.mxu0 0.0
      %3114 = vmatprep.subr.mxu0 0.0
      %3115 = vmatpush1.msra.mxu0 0.0
      %3116 = vmatprep.subr.mxu0 0.0
      %3117 = vmatpush1.msra.mxu0 0.0
      %3118 = vmatprep.subr.mxu0 0.0
      %3119 = vmatpush1.msra.mxu0 0.0
      %3120 = vmatprep.subr.mxu0 0.0
      %3121 = vmatpush1.msra.mxu0 0.0
      %3122 = vmatprep.subr.mxu0 0.0
      %3123 = vmatpush1.msra.mxu0 0.0
      %3124 = vmatprep.subr.mxu0 0.0
      %3125 = vmatpush1.msra.mxu0 0.0
      %3126 = vmatprep.subr.mxu0 0.0
      %3127 = vmatpush1.msra.mxu0 0.0
      %3128 = vmatprep.subr.mxu0 0.0
      %3129 = vmatpush1.msra.mxu0 0.0
      %3130 = vmatprep.subr.mxu0 0.0
      %3131 = vmatpush1.msra.mxu0 0.0
      %3132 = vmatprep.subr.mxu0 0.0
      %3133 = vmatpush1.msra.mxu0 0.0
      %3134 = vmatprep.subr.mxu0 0.0
      %3135 = vmatpush1.msra.mxu0 0.0
      %3136 = vmatprep.subr.mxu0 0.0
      %3137 = vmatpush1.msra.mxu0 0.0
      %3138 = vmatprep.subr.mxu0 0.0
      %3139 = vmatpush1.msra.mxu0 0.0
      %3140 = vmatprep.subr.mxu0 0.0
      %3141 = vmatpush1.msra.mxu0 0.0
      %3142 = vmatprep.subr.mxu0 0.0
      %3143 = vmatpush1.msra.mxu0 0.0
      %3144 = vmatprep.subr.mxu0 0.0
      %3145 = vmatpush1.msra.mxu0 0.0
      %3146 = vmatprep.subr.mxu0 0.0
      %3147 = vmatpush1.msra.mxu0 0.0
      %3148 = vmatprep.subr.mxu0 0.0
      %3149 = vmatpush1.msra.mxu0 0.0
      %3150 = vmatprep.subr.mxu0 0.0
      %3151 = vmatpush1.msra.mxu0 0.0
      %3152 = vmatprep.subr.mxu0 0.0
      %3153 = vmatpush1.msra.mxu0 0.0
      %3154 = vmatprep.subr.mxu0 0.0
      %3155 = vmatpush1.msra.mxu0 0.0
      %3156 = vmatprep.subr.mxu0 0.0
      %3157 = vmatpush1.msra.mxu0 0.0
      %3158 = vmatprep.subr.mxu0 0.0
      %3159 = vmatpush1.msra.mxu0 0.0
      %3160 = vmatprep.subr.mxu0 0.0
      %3161 = vmatpush1.msra.mxu0 0.0
      %3162 = vmatprep.mubr.f32.mxu0 0.0
      %3163 = vmatmul.mubr.f32.gmra.mrb[0].mxu0 %v2950
      %v3164 = vpop.f32.mrb[0].mxu0
      %v3165 = vadd.f32 0.0, %v3164
      %v3166 = vpop.f32.mrb[0].mxu0
      %3167 = vdwg.mxu0
      %3168 = vmatprep.subr.mxu0 0.0
      %3169 = vmatpush1.msra.mxu0 %v3095
      %3170 = vmatprep.subr.mxu0 0.0
      %3171 = vmatpush1.msra.mxu0 0.0
      %3172 = vmatprep.subr.mxu0 0.0
      %3173 = vmatpush1.msra.mxu0 0.0
      %3174 = vmatprep.subr.mxu0 0.0
      %3175 = vmatpush1.msra.mxu0 0.0
      %3176 = vmatprep.subr.mxu0 0.0
      %3177 = vmatpush1.msra.mxu0 0.0
      %3178 = vmatprep.subr.mxu0 0.0
      %3179 = vmatpush1.msra.mxu0 0.0
      %3180 = vmatprep.subr.mxu0 0.0
      %3181 = vmatpush1.msra.mxu0 0.0
      %3182 = vmatprep.subr.mxu0 0.0
      %3183 = vmatpush1.msra.mxu0 0.0
      %3184 = vmatprep.subr.mxu0 0.0
      %3185 = vmatpush1.msra.mxu0 0.0
      %3186 = vmatprep.subr.mxu0 0.0
      %3187 = vmatpush1.msra.mxu0 0.0
      %3188 = vmatprep.subr.mxu0 0.0
      %3189 = vmatpush1.msra.mxu0 0.0
      %3190 = vmatprep.subr.mxu0 0.0
      %3191 = vmatpush1.msra.mxu0 0.0
      %3192 = vmatprep.subr.mxu0 0.0
      %3193 = vmatpush1.msra.mxu0 0.0
      %3194 = vmatprep.subr.mxu0 0.0
      %3195 = vmatpush1.msra.mxu0 0.0
      %3196 = vmatprep.subr.mxu0 0.0
      %3197 = vmatpush1.msra.mxu0 0.0
      %3198 = vmatprep.subr.mxu0 0.0
      %3199 = vmatpush1.msra.mxu0 0.0
      %3200 = vmatprep.subr.mxu0 0.0
      %3201 = vmatpush1.msra.mxu0 0.0
      %3202 = vmatprep.subr.mxu0 0.0
      %3203 = vmatpush1.msra.mxu0 0.0
      %3204 = vmatprep.subr.mxu0 0.0
      %3205 = vmatpush1.msra.mxu0 0.0
      %3206 = vmatprep.subr.mxu0 0.0
      %3207 = vmatpush1.msra.mxu0 0.0
      %3208 = vmatprep.subr.mxu0 0.0
      %3209 = vmatpush1.msra.mxu0 0.0
      %3210 = vmatprep.subr.mxu0 0.0
      %3211 = vmatpush1.msra.mxu0 0.0
      %3212 = vmatprep.subr.mxu0 0.0
      %3213 = vmatpush1.msra.mxu0 0.0
      %3214 = vmatprep.subr.mxu0 0.0
      %3215 = vmatpush1.msra.mxu0 0.0
      %3216 = vmatprep.subr.mxu0 0.0
      %3217 = vmatpush1.msra.mxu0 0.0
      %3218 = vmatprep.subr.mxu0 0.0
      %3219 = vmatpush1.msra.mxu0 0.0
      %3220 = vmatprep.subr.mxu0 0.0
      %3221 = vmatpush1.msra.mxu0 0.0
      %3222 = vmatprep.subr.mxu0 0.0
      %3223 = vmatpush1.msra.mxu0 0.0
      %3224 = vmatprep.subr.mxu0 0.0
      %3225 = vmatpush1.msra.mxu0 0.0
      %3226 = vmatprep.subr.mxu0 0.0
      %3227 = vmatpush1.msra.mxu0 0.0
      %3228 = vmatprep.subr.mxu0 0.0
      %3229 = vmatpush1.msra.mxu0 0.0
      %3230 = vmatprep.subr.mxu0 0.0
      %3231 = vmatpush1.msra.mxu0 0.0
      %3232 = vmatprep.mubr.f32.mxu0 0.0
      %3233 = vmatmul.mubr.f32.gmra.mrb[0].mxu0 %v2641
      %v3234 = vpop.f32.mrb[0].mxu0
      %v3235 = vadd.f32 %v3165, %v3234
      %v3236 = vpop.f32.mrb[0].mxu0
      %3237 = vdwg.mxu0
      %v3238 = vld [vmem:[#allocation2 + $0x50] sm:$0xff]
      %v3239 = vld [vmem:[#allocation2 + $0x58] sm:$0xff]
      %v3240 = vadd.f32 %v3090, %v3238
      %v3241 = vadd.f32 %v3092, %v3239
      %v3242 = vmax.f32 %v3240, 0.0
      %v3243 = vmax.f32 %v3241, 0.0
      %v3244 = vpack.c.bf16 %v3242, %v3242
      %v3245 = vpack.c.bf16 %v3243, %v3243
      %s3246 = scalar_lea.vmem %s7, 640
      %v3247 = vld [vmem:[%s3246] sm:$0xf]
      %v3248 = vld [vmem:[%s3246 + $0x4] sm:$0xf]
      %v3249 = vld [vmem:[%s3246 + $0x8] sm:$0xf]
      %v3250 = vld [vmem:[%s3246 + $0xc] sm:$0xf]
      %v3251 = vld [vmem:[%s3246 + $0x10] sm:$0xf]
      %v3252 = vld [vmem:[%s3246 + $0x14] sm:$0xf]
      %v3253 = vld [vmem:[%s3246 + $0x18] sm:$0xf]
      %v3254 = vld [vmem:[%s3246 + $0x1c] sm:$0xf]
      %v3255 = vld [vmem:[%s3246 + $0x20] sm:$0xf]
      %v3256 = vld [vmem:[%s3246 + $0x24] sm:$0xf]
      %v3257 = vld [vmem:[%s3246 + $0x28] sm:$0xf]
      %v3258 = vld [vmem:[%s3246 + $0x2c] sm:$0xf]
      %v3259 = vld [vmem:[%s3246 + $0x30] sm:$0xf]
      %v3260 = vld [vmem:[%s3246 + $0x34] sm:$0xf]
      %v3261 = vld [vmem:[%s3246 + $0x38] sm:$0xf]
      %v3262 = vld [vmem:[%s3246 + $0x3c] sm:$0xf]
      %v3263 = vld [vmem:[%s3246 + $0x40] sm:$0xf]
      %v3264 = vld [vmem:[%s3246 + $0x44] sm:$0xf]
      %v3265 = vld [vmem:[%s3246 + $0x48] sm:$0xf]
      %v3266 = vld [vmem:[%s3246 + $0x4c] sm:$0xf]
      %v3267 = vld [vmem:[%s3246 + $0x50] sm:$0xf]
      %v3268 = vld [vmem:[%s3246 + $0x54] sm:$0xf]
      %v3269 = vld [vmem:[%s3246 + $0x58] sm:$0xf]
      %v3270 = vld [vmem:[%s3246 + $0x5c] sm:$0xf]
      %v3271 = vld [vmem:[%s3246 + $0x60] sm:$0xf]
      %v3272 = vld [vmem:[%s3246 + $0x64] sm:$0xf]
      %v3273 = vld [vmem:[%s3246 + $0x68] sm:$0xf]
      %v3274 = vld [vmem:[%s3246 + $0x6c] sm:$0xf]
      %v3275 = vld [vmem:[%s3246 + $0x70] sm:$0xf]
      %v3276 = vld [vmem:[%s3246 + $0x74] sm:$0xf]
      %v3277 = vld [vmem:[%s3246 + $0x78] sm:$0xf]
      %v3278 = vld [vmem:[%s3246 + $0x7c] sm:$0xf]
      %s3279 = scalar_lea.vmem %s8, 5
      %v3280 = vld [vmem:[%s3279] sm:$0x1]
      %v3282 = vlaneseq
      %v3283 = vshrl.u32 %v3282, 7
      %v3284 = vsub.s32 0, %v3283
      %v3285 = vrot.slane %v3280, %v3284
      %v3319 = vunpack.c.l.b16 %v3247
      %v3320 = vunpack.c.l.b16 %v3248
      %v3321 = vunpack.c.l.b16 %v3249
      %v3322 = vunpack.c.l.b16 %v3250
      %v3323 = vunpack.c.l.b16 %v3251
      %v3324 = vunpack.c.l.b16 %v3252
      %v3325 = vunpack.c.l.b16 %v3253
      %v3326 = vunpack.c.l.b16 %v3254
      %v3327 = vunpack.c.l.b16 %v3255
      %v3328 = vunpack.c.l.b16 %v3256
      %v3329 = vunpack.c.l.b16 %v3257
      %v3330 = vunpack.c.l.b16 %v3258
      %v3331 = vunpack.c.l.b16 %v3259
      %v3332 = vunpack.c.l.b16 %v3260
      %v3333 = vunpack.c.l.b16 %v3261
      %v3334 = vunpack.c.l.b16 %v3262
      %v3335 = vunpack.c.l.b16 %v3263
      %v3336 = vunpack.c.l.b16 %v3264
      %v3337 = vunpack.c.l.b16 %v3265
      %v3338 = vunpack.c.l.b16 %v3266
      %v3339 = vunpack.c.l.b16 %v3267
      %v3340 = vunpack.c.l.b16 %v3268
      %v3341 = vunpack.c.l.b16 %v3269
      %v3342 = vunpack.c.l.b16 %v3270
      %v3343 = vunpack.c.l.b16 %v3271
      %v3344 = vunpack.c.l.b16 %v3272
      %v3345 = vunpack.c.l.b16 %v3273
      %v3346 = vunpack.c.l.b16 %v3274
      %v3347 = vunpack.c.l.b16 %v3275
      %v3348 = vunpack.c.l.b16 %v3276
      %v3349 = vunpack.c.l.b16 %v3277
      %v3350 = vunpack.c.l.b16 %v3278
      %v3351 = vpack.c.b16 %v3320, %v3319
      %v3352 = vpack.c.b16 %v3322, %v3321
      %v3353 = vpack.c.b16 %v3324, %v3323
      %v3354 = vpack.c.b16 %v3326, %v3325
      %v3355 = vpack.c.b16 %v3328, %v3327
      %v3356 = vpack.c.b16 %v3330, %v3329
      %v3357 = vpack.c.b16 %v3332, %v3331
      %v3358 = vpack.c.b16 %v3334, %v3333
      %v3359 = vpack.c.b16 %v3336, %v3335
      %v3360 = vpack.c.b16 %v3338, %v3337
      %v3361 = vpack.c.b16 %v3340, %v3339
      %v3362 = vpack.c.b16 %v3342, %v3341
      %v3363 = vpack.c.b16 %v3344, %v3343
      %v3364 = vpack.c.b16 %v3346, %v3345
      %v3365 = vpack.c.b16 %v3348, %v3347
      %v3366 = vpack.c.b16 %v3350, %v3349
      %3383 = vmatprep.subr.bf16.mxu0 0
      %3384 = vmatpush1.bf16.msra.mxu0 %v3351
      %3385 = vmatprep.subr.bf16.mxu0 0
      %3386 = vmatpush1.bf16.msra.mxu0 %v3352
      %3387 = vmatprep.subr.bf16.mxu0 0
      %3388 = vmatpush1.bf16.msra.mxu0 %v3353
      %3389 = vmatprep.subr.bf16.mxu0 0
      %3390 = vmatpush1.bf16.msra.mxu0 %v3354
      %3391 = vmatprep.subr.bf16.mxu0 0
      %3392 = vmatpush1.bf16.msra.mxu0 %v3355
      %3393 = vmatprep.subr.bf16.mxu0 0
      %3394 = vmatpush1.bf16.msra.mxu0 %v3356
      %3395 = vmatprep.subr.bf16.mxu0 0
      %3396 = vmatpush1.bf16.msra.mxu0 %v3357
      %3397 = vmatprep.subr.bf16.mxu0 0
      %3398 = vmatpush1.bf16.msra.mxu0 %v3358
      %3399 = vmatprep.subr.bf16.mxu0 0
      %3400 = vmatpush1.bf16.msra.mxu0 %v3359
      %3401 = vmatprep.subr.bf16.mxu0 0
      %3402 = vmatpush1.bf16.msra.mxu0 %v3360
      %3403 = vmatprep.subr.bf16.mxu0 0
      %3404 = vmatpush1.bf16.msra.mxu0 %v3361
      %3405 = vmatprep.subr.bf16.mxu0 0
      %3406 = vmatpush1.bf16.msra.mxu0 %v3362
      %3407 = vmatprep.subr.bf16.mxu0 0
      %3408 = vmatpush1.bf16.msra.mxu0 %v3363
      %3409 = vmatprep.subr.bf16.mxu0 0
      %3410 = vmatpush1.bf16.msra.mxu0 %v3364
      %3411 = vmatprep.subr.bf16.mxu0 0
      %3412 = vmatpush1.bf16.msra.mxu0 %v3365
      %3413 = vmatprep.subr.bf16.mxu0 0
      %3414 = vmatpush1.bf16.msra.mxu0 %v3366
      %3415 = vmatprep.mubr.bf16.mxu0 %v3245
      %3416 = vmatmul.mubr.bf16.gmra.mrb[0].mxu0 %v3244
      %v3417 = vpop.f32.mrb[0].mxu0
      %v3418 = vadd.f32 %v3285, %v3417
      %v3419 = vpop.f32.mrb[0].mxu0
      %v3420 = vpop.f32.mrb[0].mxu0
      %v3421 = vpop.f32.mrb[0].mxu0
      %3422 = vdwg.mxu0
      %vm3423 = vcmp.lt.f32.partialorder %v3418, 0.0
      %v3424 = vsel %vm3423, -1.0, 1.0
      %v3425 = vand.u32 2147483647, %v3418
      %vm3426 = vcmp.gt.f32.partialorder %v3425, 2.4142137
      %vm3427 = vmxor %vm3426, 1
      %vm3428 = vcmp.gt.f32.partialorder %v3425, 0.41421357
      %vm3429 = vmand %vm3427, %vm3428
      %v3430 = vadd.f32 %v3425, 1.0
      %v3431 = vsel %vm3426, %v3425, %v3430
      %v3432 = vrcp.pop %v3431
      %v3433 = vsub.f32 0.0, %v3432
      %v3434 = vsub.f32 %v3425, 1.0
      %v3435 = vmul.f32 %v3434, %v3432
      %v3436 = vsel %vm3429, %v3435, %v3425
      %v3437 = vsel %vm3426, %v3433, %v3436
      %v3438 = vsel %vm3429, 0.7853982, 0.0
      %v3439 = vsel %vm3426, 1.5707964, %v3438
      %v3440 = vmul.f32 %v3437, %v3437
      %v3441 = vmul.f32 %v3440, 0.080537446
      %v3442 = vsub.f32 %v3441, 0.13877685
      %v3443 = vmul.f32 %v3442, %v3440
      %v3444 = vadd.f32 %v3443, 0.19977711
      %v3445 = vmul.f32 %v3444, %v3440
      %v3446 = vsub.f32 %v3445, 0.3333295
      %v3447 = vmul.f32 %v3446, %v3440
      %v3448 = vmul.f32 %v3447, %v3437
      %v3449 = vadd.f32 %v3448, %v3437
      %v3450 = vadd.f32 %v3439, %v3449
      %v3451 = vmul.f32 %v3424, %v3450
      %v3452 = vmul.f32 %v3451, 0.636
      %v3453 = vmul.f32 %v3452, 2.0
      %v3454 = vsel %vm1796, %v3453, 0.0
      %3455 = vadd.xlane.f32.xlu0 %v3454
      %v3456 = vpop.xlane.xlu0 %3455
      %v3457 = vmul.f32 %v3456, %v1800
      %v3458 = vsub.f32 %v3453, %v3457
      %v3459 = vmul.f32 %v3458, 1.442695
      %v3460 = vpow.pop %v3459
      %v3461 = vmul.f32 %v3460, %v3235
      %3463 = vrot.lane.b32.xlu0 %v3418, 120
      %v3464 = vpop.permute.xlu0 %3463
      %v3466 = vadd.f32 %v3461, %v3464
      %s3467 = scalar_lea.vmem %s4, 32
      %v3468 = vld [vmem:[%s3467] sm:$0xff]
      %v3469 = vld [vmem:[%s3467 + $0x8] sm:$0xff]
      %v3470 = vld [vmem:[#allocation2 + $0x40] sm:$0xff]
      %v3471 = vld [vmem:[#allocation2 + $0x48] sm:$0xff]
      %v3473 = vsel %vm1796, %v3466, 0
      %3475 = vmatprep.subr.mxu0 %v3469
      %3476 = vmatpush1.msra.mxu0 %v3468
      %3477 = vmatprep.subr.mxu0 0.0
      %3478 = vmatpush1.msra.mxu0 0.0
      %3479 = vmatprep.subr.mxu0 0.0
      %3480 = vmatpush1.msra.mxu0 0.0
      %3481 = vmatprep.subr.mxu0 0.0
      %3482 = vmatpush1.msra.mxu0 0.0
      %3483 = vmatprep.subr.mxu0 0.0
      %3484 = vmatpush1.msra.mxu0 0.0
      %3485 = vmatprep.subr.mxu0 0.0
      %3486 = vmatpush1.msra.mxu0 0.0
      %3487 = vmatprep.subr.mxu0 0.0
      %3488 = vmatpush1.msra.mxu0 0.0
      %3489 = vmatprep.subr.mxu0 0.0
      %3490 = vmatpush1.msra.mxu0 0.0
      %3491 = vmatprep.subr.mxu0 0.0
      %3492 = vmatpush1.msra.mxu0 0.0
      %3493 = vmatprep.subr.mxu0 0.0
      %3494 = vmatpush1.msra.mxu0 0.0
      %3495 = vmatprep.subr.mxu0 0.0
      %3496 = vmatpush1.msra.mxu0 0.0
      %3497 = vmatprep.subr.mxu0 0.0
      %3498 = vmatpush1.msra.mxu0 0.0
      %3499 = vmatprep.subr.mxu0 0.0
      %3500 = vmatpush1.msra.mxu0 0.0
      %3501 = vmatprep.subr.mxu0 0.0
      %3502 = vmatpush1.msra.mxu0 0.0
      %3503 = vmatprep.subr.mxu0 0.0
      %3504 = vmatpush1.msra.mxu0 0.0
      %3505 = vmatprep.subr.mxu0 0.0
      %3506 = vmatpush1.msra.mxu0 0.0
      %3507 = vmatprep.subr.mxu0 0.0
      %3508 = vmatpush1.msra.mxu0 0.0
      %3509 = vmatprep.subr.mxu0 0.0
      %3510 = vmatpush1.msra.mxu0 0.0
      %3511 = vmatprep.subr.mxu0 0.0
      %3512 = vmatpush1.msra.mxu0 0.0
      %3513 = vmatprep.subr.mxu0 0.0
      %3514 = vmatpush1.msra.mxu0 0.0
      %3515 = vmatprep.subr.mxu0 0.0
      %3516 = vmatpush1.msra.mxu0 0.0
      %3517 = vmatprep.subr.mxu0 0.0
      %3518 = vmatpush1.msra.mxu0 0.0
      %3519 = vmatprep.subr.mxu0 0.0
      %3520 = vmatpush1.msra.mxu0 0.0
      %3521 = vmatprep.subr.mxu0 0.0
      %3522 = vmatpush1.msra.mxu0 0.0
      %3523 = vmatprep.subr.mxu0 0.0
      %3524 = vmatpush1.msra.mxu0 0.0
      %3525 = vmatprep.subr.mxu0 0.0
      %3526 = vmatpush1.msra.mxu0 0.0
      %3527 = vmatprep.subr.mxu0 0.0
      %3528 = vmatpush1.msra.mxu0 0.0
      %3529 = vmatprep.subr.mxu0 0.0
      %3530 = vmatpush1.msra.mxu0 0.0
      %3531 = vmatprep.subr.mxu0 0.0
      %3532 = vmatpush1.msra.mxu0 0.0
      %3533 = vmatprep.subr.mxu0 0.0
      %3534 = vmatpush1.msra.mxu0 0.0
      %3535 = vmatprep.subr.mxu0 0.0
      %3536 = vmatpush1.msra.mxu0 0.0
      %3537 = vmatprep.subr.mxu0 0.0
      %3538 = vmatpush1.msra.mxu0 0.0
      %3539 = vmatprep.mubr.f32.mxu0 0.0
      %3540 = vmatmul.mubr.f32.gmra.mrb[0].mxu0 %v3473
      %v3541 = vpop.f32.mrb[0].mxu0
      %v3542 = vadd.f32 %v3470, %v3541
      %v3543 = vpop.f32.mrb[0].mxu0
      %v3544 = vadd.f32 %v3471, %v3543
      %3545 = vdwg.mxu0
      %v3546 = vmax.f32 %v3542, 0.0
      %v3547 = vmax.f32 %v3544, 0.0
      %v3548 = vpack.c.bf16 %v3546, %v3546
      %v3549 = vpack.c.bf16 %v3547, %v3547
      %s3550 = scalar_lea.vmem %s7, 512
      %v3551 = vld [vmem:[%s3550] sm:$0xf]
      %v3552 = vld [vmem:[%s3550 + $0x4] sm:$0xf]
      %v3553 = vld [vmem:[%s3550 + $0x8] sm:$0xf]
      %v3554 = vld [vmem:[%s3550 + $0xc] sm:$0xf]
      %v3555 = vld [vmem:[%s3550 + $0x10] sm:$0xf]
      %v3556 = vld [vmem:[%s3550 + $0x14] sm:$0xf]
      %v3557 = vld [vmem:[%s3550 + $0x18] sm:$0xf]
      %v3558 = vld [vmem:[%s3550 + $0x1c] sm:$0xf]
      %v3559 = vld [vmem:[%s3550 + $0x20] sm:$0xf]
      %v3560 = vld [vmem:[%s3550 + $0x24] sm:$0xf]
      %v3561 = vld [vmem:[%s3550 + $0x28] sm:$0xf]
      %v3562 = vld [vmem:[%s3550 + $0x2c] sm:$0xf]
      %v3563 = vld [vmem:[%s3550 + $0x30] sm:$0xf]
      %v3564 = vld [vmem:[%s3550 + $0x34] sm:$0xf]
      %v3565 = vld [vmem:[%s3550 + $0x38] sm:$0xf]
      %v3566 = vld [vmem:[%s3550 + $0x3c] sm:$0xf]
      %v3567 = vld [vmem:[%s3550 + $0x40] sm:$0xf]
      %v3568 = vld [vmem:[%s3550 + $0x44] sm:$0xf]
      %v3569 = vld [vmem:[%s3550 + $0x48] sm:$0xf]
      %v3570 = vld [vmem:[%s3550 + $0x4c] sm:$0xf]
      %v3571 = vld [vmem:[%s3550 + $0x50] sm:$0xf]
      %v3572 = vld [vmem:[%s3550 + $0x54] sm:$0xf]
      %v3573 = vld [vmem:[%s3550 + $0x58] sm:$0xf]
      %v3574 = vld [vmem:[%s3550 + $0x5c] sm:$0xf]
      %v3575 = vld [vmem:[%s3550 + $0x60] sm:$0xf]
      %v3576 = vld [vmem:[%s3550 + $0x64] sm:$0xf]
      %v3577 = vld [vmem:[%s3550 + $0x68] sm:$0xf]
      %v3578 = vld [vmem:[%s3550 + $0x6c] sm:$0xf]
      %v3579 = vld [vmem:[%s3550 + $0x70] sm:$0xf]
      %v3580 = vld [vmem:[%s3550 + $0x74] sm:$0xf]
      %v3581 = vld [vmem:[%s3550 + $0x78] sm:$0xf]
      %v3582 = vld [vmem:[%s3550 + $0x7c] sm:$0xf]
      %s3583 = scalar_lea.vmem %s8, 4
      %v3584 = vld [vmem:[%s3583] sm:$0x1]
      %v3586 = vlaneseq
      %v3587 = vshrl.u32 %v3586, 7
      %v3588 = vsub.s32 0, %v3587
      %v3589 = vrot.slane %v3584, %v3588
      %v3623 = vunpack.c.l.b16 %v3551
      %v3624 = vunpack.c.l.b16 %v3552
      %v3625 = vunpack.c.l.b16 %v3553
      %v3626 = vunpack.c.l.b16 %v3554
      %v3627 = vunpack.c.l.b16 %v3555
      %v3628 = vunpack.c.l.b16 %v3556
      %v3629 = vunpack.c.l.b16 %v3557
      %v3630 = vunpack.c.l.b16 %v3558
      %v3631 = vunpack.c.l.b16 %v3559
      %v3632 = vunpack.c.l.b16 %v3560
      %v3633 = vunpack.c.l.b16 %v3561
      %v3634 = vunpack.c.l.b16 %v3562
      %v3635 = vunpack.c.l.b16 %v3563
      %v3636 = vunpack.c.l.b16 %v3564
      %v3637 = vunpack.c.l.b16 %v3565
      %v3638 = vunpack.c.l.b16 %v3566
      %v3639 = vunpack.c.l.b16 %v3567
      %v3640 = vunpack.c.l.b16 %v3568
      %v3641 = vunpack.c.l.b16 %v3569
      %v3642 = vunpack.c.l.b16 %v3570
      %v3643 = vunpack.c.l.b16 %v3571
      %v3644 = vunpack.c.l.b16 %v3572
      %v3645 = vunpack.c.l.b16 %v3573
      %v3646 = vunpack.c.l.b16 %v3574
      %v3647 = vunpack.c.l.b16 %v3575
      %v3648 = vunpack.c.l.b16 %v3576
      %v3649 = vunpack.c.l.b16 %v3577
      %v3650 = vunpack.c.l.b16 %v3578
      %v3651 = vunpack.c.l.b16 %v3579
      %v3652 = vunpack.c.l.b16 %v3580
      %v3653 = vunpack.c.l.b16 %v3581
      %v3654 = vunpack.c.l.b16 %v3582
      %v3655 = vpack.c.b16 %v3624, %v3623
      %v3656 = vpack.c.b16 %v3626, %v3625
      %v3657 = vpack.c.b16 %v3628, %v3627
      %v3658 = vpack.c.b16 %v3630, %v3629
      %v3659 = vpack.c.b16 %v3632, %v3631
      %v3660 = vpack.c.b16 %v3634, %v3633
      %v3661 = vpack.c.b16 %v3636, %v3635
      %v3662 = vpack.c.b16 %v3638, %v3637
      %v3663 = vpack.c.b16 %v3640, %v3639
      %v3664 = vpack.c.b16 %v3642, %v3641
      %v3665 = vpack.c.b16 %v3644, %v3643
      %v3666 = vpack.c.b16 %v3646, %v3645
      %v3667 = vpack.c.b16 %v3648, %v3647
      %v3668 = vpack.c.b16 %v3650, %v3649
      %v3669 = vpack.c.b16 %v3652, %v3651
      %v3670 = vpack.c.b16 %v3654, %v3653
      %3687 = vmatprep.subr.bf16.mxu0 0
      %3688 = vmatpush1.bf16.msra.mxu0 %v3655
      %3689 = vmatprep.subr.bf16.mxu0 0
      %3690 = vmatpush1.bf16.msra.mxu0 %v3656
      %3691 = vmatprep.subr.bf16.mxu0 0
      %3692 = vmatpush1.bf16.msra.mxu0 %v3657
      %3693 = vmatprep.subr.bf16.mxu0 0
      %3694 = vmatpush1.bf16.msra.mxu0 %v3658
      %3695 = vmatprep.subr.bf16.mxu0 0
      %3696 = vmatpush1.bf16.msra.mxu0 %v3659
      %3697 = vmatprep.subr.bf16.mxu0 0
      %3698 = vmatpush1.bf16.msra.mxu0 %v3660
      %3699 = vmatprep.subr.bf16.mxu0 0
      %3700 = vmatpush1.bf16.msra.mxu0 %v3661
      %3701 = vmatprep.subr.bf16.mxu0 0
      %3702 = vmatpush1.bf16.msra.mxu0 %v3662
      %3703 = vmatprep.subr.bf16.mxu0 0
      %3704 = vmatpush1.bf16.msra.mxu0 %v3663
      %3705 = vmatprep.subr.bf16.mxu0 0
      %3706 = vmatpush1.bf16.msra.mxu0 %v3664
      %3707 = vmatprep.subr.bf16.mxu0 0
      %3708 = vmatpush1.bf16.msra.mxu0 %v3665
      %3709 = vmatprep.subr.bf16.mxu0 0
      %3710 = vmatpush1.bf16.msra.mxu0 %v3666
      %3711 = vmatprep.subr.bf16.mxu0 0
      %3712 = vmatpush1.bf16.msra.mxu0 %v3667
      %3713 = vmatprep.subr.bf16.mxu0 0
      %3714 = vmatpush1.bf16.msra.mxu0 %v3668
      %3715 = vmatprep.subr.bf16.mxu0 0
      %3716 = vmatpush1.bf16.msra.mxu0 %v3669
      %3717 = vmatprep.subr.bf16.mxu0 0
      %3718 = vmatpush1.bf16.msra.mxu0 %v3670
      %3719 = vmatprep.mubr.bf16.mxu0 %v3549
      %3720 = vmatmul.mubr.bf16.gmra.mrb[0].mxu0 %v3548
      %v3721 = vpop.f32.mrb[0].mxu0
      %v3722 = vadd.f32 %v3589, %v3721
      %v3723 = vpop.f32.mrb[0].mxu0
      %v3724 = vpop.f32.mrb[0].mxu0
      %v3725 = vpop.f32.mrb[0].mxu0
      %3726 = vdwg.mxu0
      %vm3727 = vcmp.lt.f32.partialorder %v3722, 0.0
      %v3728 = vsel %vm3727, -1.0, 1.0
      %v3729 = vand.u32 2147483647, %v3722
      %vm3730 = vcmp.gt.f32.partialorder %v3729, 2.4142137
      %vm3731 = vmxor %vm3730, 1
      %vm3732 = vcmp.gt.f32.partialorder %v3729, 0.41421357
      %vm3733 = vmand %vm3731, %vm3732
      %v3734 = vadd.f32 %v3729, 1.0
      %v3735 = vsel %vm3730, %v3729, %v3734
      %v3736 = vrcp.pop %v3735
      %v3737 = vsub.f32 0.0, %v3736
      %v3738 = vsub.f32 %v3729, 1.0
      %v3739 = vmul.f32 %v3738, %v3736
      %v3740 = vsel %vm3733, %v3739, %v3729
      %v3741 = vsel %vm3730, %v3737, %v3740
      %v3742 = vsel %vm3733, 0.7853982, 0.0
      %v3743 = vsel %vm3730, 1.5707964, %v3742
      %v3744 = vmul.f32 %v3741, %v3741
      %v3745 = vmul.f32 %v3744, 0.080537446
      %v3746 = vsub.f32 %v3745, 0.13877685
      %v3747 = vmul.f32 %v3746, %v3744
      %v3748 = vadd.f32 %v3747, 0.19977711
      %v3749 = vmul.f32 %v3748, %v3744
      %v3750 = vsub.f32 %v3749, 0.3333295
      %v3751 = vmul.f32 %v3750, %v3744
      %v3752 = vmul.f32 %v3751, %v3741
      %v3753 = vadd.f32 %v3752, %v3741
      %v3754 = vadd.f32 %v3743, %v3753
      %v3755 = vmul.f32 %v3728, %v3754
      %v3756 = vmul.f32 %v3755, 0.636
      %v3757 = vmul.f32 %v3756, 2.0
      %v3758 = vsel %vm1796, %v3757, 0.0
      %3759 = vadd.xlane.f32.xlu0 %v3758
      %v3760 = vpop.xlane.xlu0 %3759
      %v3761 = vmul.f32 %v3760, %v1800
      %v3762 = vsub.f32 %v3757, %v3761
      %v3763 = vmul.f32 %v3762, 1.442695
      %v3764 = vpow.pop %v3763
      %3766 = vrot.lane.b32.xlu0 %v3235, 120
      %v3767 = vpop.permute.xlu0 %3766
      %v3769 = vmul.f32 %v3764, %v3767
      %3771 = vrot.lane.b32.xlu0 %v3722, 120
      %v3772 = vpop.permute.xlu0 %3771
      %v3774 = vadd.f32 %v3769, %v3772
      %s3775 = scalar_lea.vmem %s5, 32
      %v3776 = vld [vmem:[%s3775] sm:$0xff]
      %v3777 = vld [vmem:[%s3775 + $0x8] sm:$0xff]
      %s3778 = scalar_lea.vmem %s6, 32
      %v3779 = vld [vmem:[%s3778] sm:$0xff]
      %v3780 = vld [vmem:[%s3778 + $0x8] sm:$0xff]
      %v3782 = vsel %vm1796, %v3774, 0
      %3784 = vmatprep.subr.mxu0 %v3780
      %3785 = vmatpush1.msra.mxu0 %v3779
      %3786 = vmatprep.subr.mxu0 0.0
      %3787 = vmatpush1.msra.mxu0 0.0
      %3788 = vmatprep.subr.mxu0 0.0
      %3789 = vmatpush1.msra.mxu0 0.0
      %3790 = vmatprep.subr.mxu0 0.0
      %3791 = vmatpush1.msra.mxu0 0.0
      %3792 = vmatprep.subr.mxu0 0.0
      %3793 = vmatpush1.msra.mxu0 0.0
      %3794 = vmatprep.subr.mxu0 0.0
      %3795 = vmatpush1.msra.mxu0 0.0
      %3796 = vmatprep.subr.mxu0 0.0
      %3797 = vmatpush1.msra.mxu0 0.0
      %3798 = vmatprep.subr.mxu0 0.0
      %3799 = vmatpush1.msra.mxu0 0.0
      %3800 = vmatprep.subr.mxu0 0.0
      %3801 = vmatpush1.msra.mxu0 0.0
      %3802 = vmatprep.subr.mxu0 0.0
      %3803 = vmatpush1.msra.mxu0 0.0
      %3804 = vmatprep.subr.mxu0 0.0
      %3805 = vmatpush1.msra.mxu0 0.0
      %3806 = vmatprep.subr.mxu0 0.0
      %3807 = vmatpush1.msra.mxu0 0.0
      %3808 = vmatprep.subr.mxu0 0.0
      %3809 = vmatpush1.msra.mxu0 0.0
      %3810 = vmatprep.subr.mxu0 0.0
      %3811 = vmatpush1.msra.mxu0 0.0
      %3812 = vmatprep.subr.mxu0 0.0
      %3813 = vmatpush1.msra.mxu0 0.0
      %3814 = vmatprep.subr.mxu0 0.0
      %3815 = vmatpush1.msra.mxu0 0.0
      %3816 = vmatprep.subr.mxu0 0.0
      %3817 = vmatpush1.msra.mxu0 0.0
      %3818 = vmatprep.subr.mxu0 0.0
      %3819 = vmatpush1.msra.mxu0 0.0
      %3820 = vmatprep.subr.mxu0 0.0
      %3821 = vmatpush1.msra.mxu0 0.0
      %3822 = vmatprep.subr.mxu0 0.0
      %3823 = vmatpush1.msra.mxu0 0.0
      %3824 = vmatprep.subr.mxu0 0.0
      %3825 = vmatpush1.msra.mxu0 0.0
      %3826 = vmatprep.subr.mxu0 0.0
      %3827 = vmatpush1.msra.mxu0 0.0
      %3828 = vmatprep.subr.mxu0 0.0
      %3829 = vmatpush1.msra.mxu0 0.0
      %3830 = vmatprep.subr.mxu0 0.0
      %3831 = vmatpush1.msra.mxu0 0.0
      %3832 = vmatprep.subr.mxu0 0.0
      %3833 = vmatpush1.msra.mxu0 0.0
      %3834 = vmatprep.subr.mxu0 0.0
      %3835 = vmatpush1.msra.mxu0 0.0
      %3836 = vmatprep.subr.mxu0 0.0
      %3837 = vmatpush1.msra.mxu0 0.0
      %3838 = vmatprep.subr.mxu0 0.0
      %3839 = vmatpush1.msra.mxu0 0.0
      %3840 = vmatprep.subr.mxu0 0.0
      %3841 = vmatpush1.msra.mxu0 0.0
      %3842 = vmatprep.subr.mxu0 0.0
      %3843 = vmatpush1.msra.mxu0 0.0
      %3844 = vmatprep.subr.mxu0 0.0
      %3845 = vmatpush1.msra.mxu0 0.0
      %3846 = vmatprep.subr.mxu0 0.0
      %3847 = vmatpush1.msra.mxu0 0.0
      %3848 = vmatprep.mubr.f32.mxu0 0.0
      %3849 = vmatmul.mubr.f32.gmra.mrb[0].mxu0 %v3782
      %v3850 = vpop.f32.mrb[0].mxu0
      %v3851 = vadd.f32 0.0, %v3850
      %v3852 = vpop.f32.mrb[0].mxu0
      %v3853 = vadd.f32 0.0, %v3852
      %3854 = vdwg.mxu0
      %3855 = vmatprep.subr.mxu0 %v3777
      %3856 = vmatpush1.msra.mxu0 %v3776
      %3857 = vmatprep.subr.mxu0 0.0
      %3858 = vmatpush1.msra.mxu0 0.0
      %3859 = vmatprep.subr.mxu0 0.0
      %3860 = vmatpush1.msra.mxu0 0.0
      %3861 = vmatprep.subr.mxu0 0.0
      %3862 = vmatpush1.msra.mxu0 0.0
      %3863 = vmatprep.subr.mxu0 0.0
      %3864 = vmatpush1.msra.mxu0 0.0
      %3865 = vmatprep.subr.mxu0 0.0
      %3866 = vmatpush1.msra.mxu0 0.0
      %3867 = vmatprep.subr.mxu0 0.0
      %3868 = vmatpush1.msra.mxu0 0.0
      %3869 = vmatprep.subr.mxu0 0.0
      %3870 = vmatpush1.msra.mxu0 0.0
      %3871 = vmatprep.subr.mxu0 0.0
      %3872 = vmatpush1.msra.mxu0 0.0
      %3873 = vmatprep.subr.mxu0 0.0
      %3874 = vmatpush1.msra.mxu0 0.0
      %3875 = vmatprep.subr.mxu0 0.0
      %3876 = vmatpush1.msra.mxu0 0.0
      %3877 = vmatprep.subr.mxu0 0.0
      %3878 = vmatpush1.msra.mxu0 0.0
      %3879 = vmatprep.subr.mxu0 0.0
      %3880 = vmatpush1.msra.mxu0 0.0
      %3881 = vmatprep.subr.mxu0 0.0
      %3882 = vmatpush1.msra.mxu0 0.0
      %3883 = vmatprep.subr.mxu0 0.0
      %3884 = vmatpush1.msra.mxu0 0.0
      %3885 = vmatprep.subr.mxu0 0.0
      %3886 = vmatpush1.msra.mxu0 0.0
      %3887 = vmatprep.subr.mxu0 0.0
      %3888 = vmatpush1.msra.mxu0 0.0
      %3889 = vmatprep.subr.mxu0 0.0
      %3890 = vmatpush1.msra.mxu0 0.0
      %3891 = vmatprep.subr.mxu0 0.0
      %3892 = vmatpush1.msra.mxu0 0.0
      %3893 = vmatprep.subr.mxu0 0.0
      %3894 = vmatpush1.msra.mxu0 0.0
      %3895 = vmatprep.subr.mxu0 0.0
      %3896 = vmatpush1.msra.mxu0 0.0
      %3897 = vmatprep.subr.mxu0 0.0
      %3898 = vmatpush1.msra.mxu0 0.0
      %3899 = vmatprep.subr.mxu0 0.0
      %3900 = vmatpush1.msra.mxu0 0.0
      %3901 = vmatprep.subr.mxu0 0.0
      %3902 = vmatpush1.msra.mxu0 0.0
      %3903 = vmatprep.subr.mxu0 0.0
      %3904 = vmatpush1.msra.mxu0 0.0
      %3905 = vmatprep.subr.mxu0 0.0
      %3906 = vmatpush1.msra.mxu0 0.0
      %3907 = vmatprep.subr.mxu0 0.0
      %3908 = vmatpush1.msra.mxu0 0.0
      %3909 = vmatprep.subr.mxu0 0.0
      %3910 = vmatpush1.msra.mxu0 0.0
      %3911 = vmatprep.subr.mxu0 0.0
      %3912 = vmatpush1.msra.mxu0 0.0
      %3913 = vmatprep.subr.mxu0 0.0
      %3914 = vmatpush1.msra.mxu0 0.0
      %3915 = vmatprep.subr.mxu0 0.0
      %3916 = vmatpush1.msra.mxu0 0.0
      %3917 = vmatprep.subr.mxu0 0.0
      %3918 = vmatpush1.msra.mxu0 0.0
      %3919 = vmatprep.mubr.f32.mxu0 0.0
      %3920 = vmatmul.mubr.f32.gmra.mrb[0].mxu0 %v3473
      %v3921 = vpop.f32.mrb[0].mxu0
      %v3922 = vadd.f32 %v3851, %v3921
      %v3923 = vpop.f32.mrb[0].mxu0
      %v3924 = vadd.f32 %v3853, %v3923
      %3925 = vdwg.mxu0
      %s3926 = scalar_lea.vmem %s12, 16
      %v3927 = vld [vmem:[%s3926] sm:$0xff]
      %s3928 = scalar_lea.vmem %s13, 16
      %v3929 = vld [vmem:[%s3928] sm:$0xff]
      %3930 = vmatprep.subr.mxu0 0.0
      %3931 = vmatpush1.msra.mxu0 %v3929
      %3932 = vmatprep.subr.mxu0 0.0
      %3933 = vmatpush1.msra.mxu0 0.0
      %3934 = vmatprep.subr.mxu0 0.0
      %3935 = vmatpush1.msra.mxu0 0.0
      %3936 = vmatprep.subr.mxu0 0.0
      %3937 = vmatpush1.msra.mxu0 0.0
      %3938 = vmatprep.subr.mxu0 0.0
      %3939 = vmatpush1.msra.mxu0 0.0
      %3940 = vmatprep.subr.mxu0 0.0
      %3941 = vmatpush1.msra.mxu0 0.0
      %3942 = vmatprep.subr.mxu0 0.0
      %3943 = vmatpush1.msra.mxu0 0.0
      %3944 = vmatprep.subr.mxu0 0.0
      %3945 = vmatpush1.msra.mxu0 0.0
      %3946 = vmatprep.subr.mxu0 0.0
      %3947 = vmatpush1.msra.mxu0 0.0
      %3948 = vmatprep.subr.mxu0 0.0
      %3949 = vmatpush1.msra.mxu0 0.0
      %3950 = vmatprep.subr.mxu0 0.0
      %3951 = vmatpush1.msra.mxu0 0.0
      %3952 = vmatprep.subr.mxu0 0.0
      %3953 = vmatpush1.msra.mxu0 0.0
      %3954 = vmatprep.subr.mxu0 0.0
      %3955 = vmatpush1.msra.mxu0 0.0
      %3956 = vmatprep.subr.mxu0 0.0
      %3957 = vmatpush1.msra.mxu0 0.0
      %3958 = vmatprep.subr.mxu0 0.0
      %3959 = vmatpush1.msra.mxu0 0.0
      %3960 = vmatprep.subr.mxu0 0.0
      %3961 = vmatpush1.msra.mxu0 0.0
      %3962 = vmatprep.subr.mxu0 0.0
      %3963 = vmatpush1.msra.mxu0 0.0
      %3964 = vmatprep.subr.mxu0 0.0
      %3965 = vmatpush1.msra.mxu0 0.0
      %3966 = vmatprep.subr.mxu0 0.0
      %3967 = vmatpush1.msra.mxu0 0.0
      %3968 = vmatprep.subr.mxu0 0.0
      %3969 = vmatpush1.msra.mxu0 0.0
      %3970 = vmatprep.subr.mxu0 0.0
      %3971 = vmatpush1.msra.mxu0 0.0
      %3972 = vmatprep.subr.mxu0 0.0
      %3973 = vmatpush1.msra.mxu0 0.0
      %3974 = vmatprep.subr.mxu0 0.0
      %3975 = vmatpush1.msra.mxu0 0.0
      %3976 = vmatprep.subr.mxu0 0.0
      %3977 = vmatpush1.msra.mxu0 0.0
      %3978 = vmatprep.subr.mxu0 0.0
      %3979 = vmatpush1.msra.mxu0 0.0
      %3980 = vmatprep.subr.mxu0 0.0
      %3981 = vmatpush1.msra.mxu0 0.0
      %3982 = vmatprep.subr.mxu0 0.0
      %3983 = vmatpush1.msra.mxu0 0.0
      %3984 = vmatprep.subr.mxu0 0.0
      %3985 = vmatpush1.msra.mxu0 0.0
      %3986 = vmatprep.subr.mxu0 0.0
      %3987 = vmatpush1.msra.mxu0 0.0
      %3988 = vmatprep.subr.mxu0 0.0
      %3989 = vmatpush1.msra.mxu0 0.0
      %3990 = vmatprep.subr.mxu0 0.0
      %3991 = vmatpush1.msra.mxu0 0.0
      %3992 = vmatprep.subr.mxu0 0.0
      %3993 = vmatpush1.msra.mxu0 0.0
      %3994 = vmatprep.mubr.f32.mxu0 0.0
      %3995 = vmatmul.mubr.f32.gmra.mrb[0].mxu0 %v3782
      %v3996 = vpop.f32.mrb[0].mxu0
      %v3997 = vadd.f32 0.0, %v3996
      %v3998 = vpop.f32.mrb[0].mxu0
      %3999 = vdwg.mxu0
      %4000 = vmatprep.subr.mxu0 0.0
      %4001 = vmatpush1.msra.mxu0 %v3927
      %4002 = vmatprep.subr.mxu0 0.0
      %4003 = vmatpush1.msra.mxu0 0.0
      %4004 = vmatprep.subr.mxu0 0.0
      %4005 = vmatpush1.msra.mxu0 0.0
      %4006 = vmatprep.subr.mxu0 0.0
      %4007 = vmatpush1.msra.mxu0 0.0
      %4008 = vmatprep.subr.mxu0 0.0
      %4009 = vmatpush1.msra.mxu0 0.0
      %4010 = vmatprep.subr.mxu0 0.0
      %4011 = vmatpush1.msra.mxu0 0.0
      %4012 = vmatprep.subr.mxu0 0.0
      %4013 = vmatpush1.msra.mxu0 0.0
      %4014 = vmatprep.subr.mxu0 0.0
      %4015 = vmatpush1.msra.mxu0 0.0
      %4016 = vmatprep.subr.mxu0 0.0
      %4017 = vmatpush1.msra.mxu0 0.0
      %4018 = vmatprep.subr.mxu0 0.0
      %4019 = vmatpush1.msra.mxu0 0.0
      %4020 = vmatprep.subr.mxu0 0.0
      %4021 = vmatpush1.msra.mxu0 0.0
      %4022 = vmatprep.subr.mxu0 0.0
      %4023 = vmatpush1.msra.mxu0 0.0
      %4024 = vmatprep.subr.mxu0 0.0
      %4025 = vmatpush1.msra.mxu0 0.0
      %4026 = vmatprep.subr.mxu0 0.0
      %4027 = vmatpush1.msra.mxu0 0.0
      %4028 = vmatprep.subr.mxu0 0.0
      %4029 = vmatpush1.msra.mxu0 0.0
      %4030 = vmatprep.subr.mxu0 0.0
      %4031 = vmatpush1.msra.mxu0 0.0
      %4032 = vmatprep.subr.mxu0 0.0
      %4033 = vmatpush1.msra.mxu0 0.0
      %4034 = vmatprep.subr.mxu0 0.0
      %4035 = vmatpush1.msra.mxu0 0.0
      %4036 = vmatprep.subr.mxu0 0.0
      %4037 = vmatpush1.msra.mxu0 0.0
      %4038 = vmatprep.subr.mxu0 0.0
      %4039 = vmatpush1.msra.mxu0 0.0
      %4040 = vmatprep.subr.mxu0 0.0
      %4041 = vmatpush1.msra.mxu0 0.0
      %4042 = vmatprep.subr.mxu0 0.0
      %4043 = vmatpush1.msra.mxu0 0.0
      %4044 = vmatprep.subr.mxu0 0.0
      %4045 = vmatpush1.msra.mxu0 0.0
      %4046 = vmatprep.subr.mxu0 0.0
      %4047 = vmatpush1.msra.mxu0 0.0
      %4048 = vmatprep.subr.mxu0 0.0
      %4049 = vmatpush1.msra.mxu0 0.0
      %4050 = vmatprep.subr.mxu0 0.0
      %4051 = vmatpush1.msra.mxu0 0.0
      %4052 = vmatprep.subr.mxu0 0.0
      %4053 = vmatpush1.msra.mxu0 0.0
      %4054 = vmatprep.subr.mxu0 0.0
      %4055 = vmatpush1.msra.mxu0 0.0
      %4056 = vmatprep.subr.mxu0 0.0
      %4057 = vmatpush1.msra.mxu0 0.0
      %4058 = vmatprep.subr.mxu0 0.0
      %4059 = vmatpush1.msra.mxu0 0.0
      %4060 = vmatprep.subr.mxu0 0.0
      %4061 = vmatpush1.msra.mxu0 0.0
      %4062 = vmatprep.subr.mxu0 0.0
      %4063 = vmatpush1.msra.mxu0 0.0
      %4064 = vmatprep.mubr.f32.mxu0 0.0
      %4065 = vmatmul.mubr.f32.gmra.mrb[0].mxu0 %v3473
      %v4066 = vpop.f32.mrb[0].mxu0
      %v4067 = vadd.f32 %v3997, %v4066
      %v4068 = vpop.f32.mrb[0].mxu0
      %4069 = vdwg.mxu0
      %v4070 = vld [vmem:[#allocation2 + $0x70] sm:$0xff]
      %v4071 = vld [vmem:[#allocation2 + $0x78] sm:$0xff]
      %v4072 = vadd.f32 %v3922, %v4070
      %v4073 = vadd.f32 %v3924, %v4071
      %v4074 = vmax.f32 %v4072, 0.0
      %v4075 = vmax.f32 %v4073, 0.0
      %v4076 = vpack.c.bf16 %v4074, %v4074
      %v4077 = vpack.c.bf16 %v4075, %v4075
      %s4078 = scalar_lea.vmem %s7, 896
      %v4079 = vld [vmem:[%s4078] sm:$0xf]
      %v4080 = vld [vmem:[%s4078 + $0x4] sm:$0xf]
      %v4081 = vld [vmem:[%s4078 + $0x8] sm:$0xf]
      %v4082 = vld [vmem:[%s4078 + $0xc] sm:$0xf]
      %v4083 = vld [vmem:[%s4078 + $0x10] sm:$0xf]
      %v4084 = vld [vmem:[%s4078 + $0x14] sm:$0xf]
      %v4085 = vld [vmem:[%s4078 + $0x18] sm:$0xf]
      %v4086 = vld [vmem:[%s4078 + $0x1c] sm:$0xf]
      %v4087 = vld [vmem:[%s4078 + $0x20] sm:$0xf]
      %v4088 = vld [vmem:[%s4078 + $0x24] sm:$0xf]
      %v4089 = vld [vmem:[%s4078 + $0x28] sm:$0xf]
      %v4090 = vld [vmem:[%s4078 + $0x2c] sm:$0xf]
      %v4091 = vld [vmem:[%s4078 + $0x30] sm:$0xf]
      %v4092 = vld [vmem:[%s4078 + $0x34] sm:$0xf]
      %v4093 = vld [vmem:[%s4078 + $0x38] sm:$0xf]
      %v4094 = vld [vmem:[%s4078 + $0x3c] sm:$0xf]
      %v4095 = vld [vmem:[%s4078 + $0x40] sm:$0xf]
      %v4096 = vld [vmem:[%s4078 + $0x44] sm:$0xf]
      %v4097 = vld [vmem:[%s4078 + $0x48] sm:$0xf]
      %v4098 = vld [vmem:[%s4078 + $0x4c] sm:$0xf]
      %v4099 = vld [vmem:[%s4078 + $0x50] sm:$0xf]
      %v4100 = vld [vmem:[%s4078 + $0x54] sm:$0xf]
      %v4101 = vld [vmem:[%s4078 + $0x58] sm:$0xf]
      %v4102 = vld [vmem:[%s4078 + $0x5c] sm:$0xf]
      %v4103 = vld [vmem:[%s4078 + $0x60] sm:$0xf]
      %v4104 = vld [vmem:[%s4078 + $0x64] sm:$0xf]
      %v4105 = vld [vmem:[%s4078 + $0x68] sm:$0xf]
      %v4106 = vld [vmem:[%s4078 + $0x6c] sm:$0xf]
      %v4107 = vld [vmem:[%s4078 + $0x70] sm:$0xf]
      %v4108 = vld [vmem:[%s4078 + $0x74] sm:$0xf]
      %v4109 = vld [vmem:[%s4078 + $0x78] sm:$0xf]
      %v4110 = vld [vmem:[%s4078 + $0x7c] sm:$0xf]
      %s4111 = scalar_lea.vmem %s8, 7
      %v4112 = vld [vmem:[%s4111] sm:$0x1]
      %v4114 = vlaneseq
      %v4115 = vshrl.u32 %v4114, 7
      %v4116 = vsub.s32 0, %v4115
      %v4117 = vrot.slane %v4112, %v4116
      %v4151 = vunpack.c.l.b16 %v4079
      %v4152 = vunpack.c.l.b16 %v4080
      %v4153 = vunpack.c.l.b16 %v4081
      %v4154 = vunpack.c.l.b16 %v4082
      %v4155 = vunpack.c.l.b16 %v4083
      %v4156 = vunpack.c.l.b16 %v4084
      %v4157 = vunpack.c.l.b16 %v4085
      %v4158 = vunpack.c.l.b16 %v4086
      %v4159 = vunpack.c.l.b16 %v4087
      %v4160 = vunpack.c.l.b16 %v4088
      %v4161 = vunpack.c.l.b16 %v4089
      %v4162 = vunpack.c.l.b16 %v4090
      %v4163 = vunpack.c.l.b16 %v4091
      %v4164 = vunpack.c.l.b16 %v4092
      %v4165 = vunpack.c.l.b16 %v4093
      %v4166 = vunpack.c.l.b16 %v4094
      %v4167 = vunpack.c.l.b16 %v4095
      %v4168 = vunpack.c.l.b16 %v4096
      %v4169 = vunpack.c.l.b16 %v4097
      %v4170 = vunpack.c.l.b16 %v4098
      %v4171 = vunpack.c.l.b16 %v4099
      %v4172 = vunpack.c.l.b16 %v4100
      %v4173 = vunpack.c.l.b16 %v4101
      %v4174 = vunpack.c.l.b16 %v4102
      %v4175 = vunpack.c.l.b16 %v4103
      %v4176 = vunpack.c.l.b16 %v4104
      %v4177 = vunpack.c.l.b16 %v4105
      %v4178 = vunpack.c.l.b16 %v4106
      %v4179 = vunpack.c.l.b16 %v4107
      %v4180 = vunpack.c.l.b16 %v4108
      %v4181 = vunpack.c.l.b16 %v4109
      %v4182 = vunpack.c.l.b16 %v4110
      %v4183 = vpack.c.b16 %v4152, %v4151
      %v4184 = vpack.c.b16 %v4154, %v4153
      %v4185 = vpack.c.b16 %v4156, %v4155
      %v4186 = vpack.c.b16 %v4158, %v4157
      %v4187 = vpack.c.b16 %v4160, %v4159
      %v4188 = vpack.c.b16 %v4162, %v4161
      %v4189 = vpack.c.b16 %v4164, %v4163
      %v4190 = vpack.c.b16 %v4166, %v4165
      %v4191 = vpack.c.b16 %v4168, %v4167
      %v4192 = vpack.c.b16 %v4170, %v4169
      %v4193 = vpack.c.b16 %v4172, %v4171
      %v4194 = vpack.c.b16 %v4174, %v4173
      %v4195 = vpack.c.b16 %v4176, %v4175
      %v4196 = vpack.c.b16 %v4178, %v4177
      %v4197 = vpack.c.b16 %v4180, %v4179
      %v4198 = vpack.c.b16 %v4182, %v4181
      %4215 = vmatprep.subr.bf16.mxu0 0
      %4216 = vmatpush1.bf16.msra.mxu0 %v4183
      %4217 = vmatprep.subr.bf16.mxu0 0
      %4218 = vmatpush1.bf16.msra.mxu0 %v4184
      %4219 = vmatprep.subr.bf16.mxu0 0
      %4220 = vmatpush1.bf16.msra.mxu0 %v4185
      %4221 = vmatprep.subr.bf16.mxu0 0
      %4222 = vmatpush1.bf16.msra.mxu0 %v4186
      %4223 = vmatprep.subr.bf16.mxu0 0
      %4224 = vmatpush1.bf16.msra.mxu0 %v4187
      %4225 = vmatprep.subr.bf16.mxu0 0
      %4226 = vmatpush1.bf16.msra.mxu0 %v4188
      %4227 = vmatprep.subr.bf16.mxu0 0
      %4228 = vmatpush1.bf16.msra.mxu0 %v4189
      %4229 = vmatprep.subr.bf16.mxu0 0
      %4230 = vmatpush1.bf16.msra.mxu0 %v4190
      %4231 = vmatprep.subr.bf16.mxu0 0
      %4232 = vmatpush1.bf16.msra.mxu0 %v4191
      %4233 = vmatprep.subr.bf16.mxu0 0
      %4234 = vmatpush1.bf16.msra.mxu0 %v4192
      %4235 = vmatprep.subr.bf16.mxu0 0
      %4236 = vmatpush1.bf16.msra.mxu0 %v4193
      %4237 = vmatprep.subr.bf16.mxu0 0
      %4238 = vmatpush1.bf16.msra.mxu0 %v4194
      %4239 = vmatprep.subr.bf16.mxu0 0
      %4240 = vmatpush1.bf16.msra.mxu0 %v4195
      %4241 = vmatprep.subr.bf16.mxu0 0
      %4242 = vmatpush1.bf16.msra.mxu0 %v4196
      %4243 = vmatprep.subr.bf16.mxu0 0
      %4244 = vmatpush1.bf16.msra.mxu0 %v4197
      %4245 = vmatprep.subr.bf16.mxu0 0
      %4246 = vmatpush1.bf16.msra.mxu0 %v4198
      %4247 = vmatprep.mubr.bf16.mxu0 %v4077
      %4248 = vmatmul.mubr.bf16.gmra.mrb[0].mxu0 %v4076
      %v4249 = vpop.f32.mrb[0].mxu0
      %v4250 = vadd.f32 %v4117, %v4249
      %v4251 = vpop.f32.mrb[0].mxu0
      %v4252 = vpop.f32.mrb[0].mxu0
      %v4253 = vpop.f32.mrb[0].mxu0
      %4254 = vdwg.mxu0
      %vm4255 = vcmp.lt.f32.partialorder %v4250, 0.0
      %v4256 = vsel %vm4255, -1.0, 1.0
      %v4257 = vand.u32 2147483647, %v4250
      %vm4258 = vcmp.gt.f32.partialorder %v4257, 2.4142137
      %vm4259 = vmxor %vm4258, 1
      %vm4260 = vcmp.gt.f32.partialorder %v4257, 0.41421357
      %vm4261 = vmand %vm4259, %vm4260
      %v4262 = vadd.f32 %v4257, 1.0
      %v4263 = vsel %vm4258, %v4257, %v4262
      %v4264 = vrcp.pop %v4263
      %v4265 = vsub.f32 0.0, %v4264
      %v4266 = vsub.f32 %v4257, 1.0
      %v4267 = vmul.f32 %v4266, %v4264
      %v4268 = vsel %vm4261, %v4267, %v4257
      %v4269 = vsel %vm4258, %v4265, %v4268
      %v4270 = vsel %vm4261, 0.7853982, 0.0
      %v4271 = vsel %vm4258, 1.5707964, %v4270
      %v4272 = vmul.f32 %v4269, %v4269
      %v4273 = vmul.f32 %v4272, 0.080537446
      %v4274 = vsub.f32 %v4273, 0.13877685
      %v4275 = vmul.f32 %v4274, %v4272
      %v4276 = vadd.f32 %v4275, 0.19977711
      %v4277 = vmul.f32 %v4276, %v4272
      %v4278 = vsub.f32 %v4277, 0.3333295
      %v4279 = vmul.f32 %v4278, %v4272
      %v4280 = vmul.f32 %v4279, %v4269
      %v4281 = vadd.f32 %v4280, %v4269
      %v4282 = vadd.f32 %v4271, %v4281
      %v4283 = vmul.f32 %v4256, %v4282
      %v4284 = vmul.f32 %v4283, 0.636
      %v4285 = vmul.f32 %v4284, 2.0
      %v4286 = vsel %vm1796, %v4285, 0.0
      %4287 = vadd.xlane.f32.xlu0 %v4286
      %v4288 = vpop.xlane.xlu0 %4287
      %v4289 = vmul.f32 %v4288, %v1800
      %v4290 = vsub.f32 %v4285, %v4289
      %v4291 = vmul.f32 %v4290, 1.442695
      %v4292 = vpow.pop %v4291
      %v4293 = vmul.f32 %v4292, %v4067
      %4295 = vrot.lane.b32.xlu0 %v4250, 120
      %v4296 = vpop.permute.xlu0 %4295
      %v4298 = vadd.f32 %v4293, %v4296
      %s4299 = scalar_lea.vmem %s4, 48
      %v4300 = vld [vmem:[%s4299] sm:$0xff]
      %v4301 = vld [vmem:[%s4299 + $0x8] sm:$0xff]
      %v4302 = vld [vmem:[#allocation2 + $0x60] sm:$0xff]
      %v4303 = vld [vmem:[#allocation2 + $0x68] sm:$0xff]
      %v4305 = vsel %vm1796, %v4298, 0
      %4307 = vmatprep.subr.mxu0 %v4301
      %4308 = vmatpush1.msra.mxu0 %v4300
      %4309 = vmatprep.subr.mxu0 0.0
      %4310 = vmatpush1.msra.mxu0 0.0
      %4311 = vmatprep.subr.mxu0 0.0
      %4312 = vmatpush1.msra.mxu0 0.0
      %4313 = vmatprep.subr.mxu0 0.0
      %4314 = vmatpush1.msra.mxu0 0.0
      %4315 = vmatprep.subr.mxu0 0.0
      %4316 = vmatpush1.msra.mxu0 0.0
      %4317 = vmatprep.subr.mxu0 0.0
      %4318 = vmatpush1.msra.mxu0 0.0
      %4319 = vmatprep.subr.mxu0 0.0
      %4320 = vmatpush1.msra.mxu0 0.0
      %4321 = vmatprep.subr.mxu0 0.0
      %4322 = vmatpush1.msra.mxu0 0.0
      %4323 = vmatprep.subr.mxu0 0.0
      %4324 = vmatpush1.msra.mxu0 0.0
      %4325 = vmatprep.subr.mxu0 0.0
      %4326 = vmatpush1.msra.mxu0 0.0
      %4327 = vmatprep.subr.mxu0 0.0
      %4328 = vmatpush1.msra.mxu0 0.0
      %4329 = vmatprep.subr.mxu0 0.0
      %4330 = vmatpush1.msra.mxu0 0.0
      %4331 = vmatprep.subr.mxu0 0.0
      %4332 = vmatpush1.msra.mxu0 0.0
      %4333 = vmatprep.subr.mxu0 0.0
      %4334 = vmatpush1.msra.mxu0 0.0
      %4335 = vmatprep.subr.mxu0 0.0
      %4336 = vmatpush1.msra.mxu0 0.0
      %4337 = vmatprep.subr.mxu0 0.0
      %4338 = vmatpush1.msra.mxu0 0.0
      %4339 = vmatprep.subr.mxu0 0.0
      %4340 = vmatpush1.msra.mxu0 0.0
      %4341 = vmatprep.subr.mxu0 0.0
      %4342 = vmatpush1.msra.mxu0 0.0
      %4343 = vmatprep.subr.mxu0 0.0
      %4344 = vmatpush1.msra.mxu0 0.0
      %4345 = vmatprep.subr.mxu0 0.0
      %4346 = vmatpush1.msra.mxu0 0.0
      %4347 = vmatprep.subr.mxu0 0.0
      %4348 = vmatpush1.msra.mxu0 0.0
      %4349 = vmatprep.subr.mxu0 0.0
      %4350 = vmatpush1.msra.mxu0 0.0
      %4351 = vmatprep.subr.mxu0 0.0
      %4352 = vmatpush1.msra.mxu0 0.0
      %4353 = vmatprep.subr.mxu0 0.0
      %4354 = vmatpush1.msra.mxu0 0.0
      %4355 = vmatprep.subr.mxu0 0.0
      %4356 = vmatpush1.msra.mxu0 0.0
      %4357 = vmatprep.subr.mxu0 0.0
      %4358 = vmatpush1.msra.mxu0 0.0
      %4359 = vmatprep.subr.mxu0 0.0
      %4360 = vmatpush1.msra.mxu0 0.0
      %4361 = vmatprep.subr.mxu0 0.0
      %4362 = vmatpush1.msra.mxu0 0.0
      %4363 = vmatprep.subr.mxu0 0.0
      %4364 = vmatpush1.msra.mxu0 0.0
      %4365 = vmatprep.subr.mxu0 0.0
      %4366 = vmatpush1.msra.mxu0 0.0
      %4367 = vmatprep.subr.mxu0 0.0
      %4368 = vmatpush1.msra.mxu0 0.0
      %4369 = vmatprep.subr.mxu0 0.0
      %4370 = vmatpush1.msra.mxu0 0.0
      %4371 = vmatprep.mubr.f32.mxu0 0.0
      %4372 = vmatmul.mubr.f32.gmra.mrb[0].mxu0 %v4305
      %v4373 = vpop.f32.mrb[0].mxu0
      %v4374 = vadd.f32 %v4302, %v4373
      %v4375 = vpop.f32.mrb[0].mxu0
      %v4376 = vadd.f32 %v4303, %v4375
      %4377 = vdwg.mxu0
      %v4378 = vmax.f32 %v4374, 0.0
      %v4379 = vmax.f32 %v4376, 0.0
      %v4380 = vpack.c.bf16 %v4378, %v4378
      %v4381 = vpack.c.bf16 %v4379, %v4379
      %s4382 = scalar_lea.vmem %s7, 768
      %v4383 = vld [vmem:[%s4382] sm:$0xf]
      %v4384 = vld [vmem:[%s4382 + $0x4] sm:$0xf]
      %v4385 = vld [vmem:[%s4382 + $0x8] sm:$0xf]
      %v4386 = vld [vmem:[%s4382 + $0xc] sm:$0xf]
      %v4387 = vld [vmem:[%s4382 + $0x10] sm:$0xf]
      %v4388 = vld [vmem:[%s4382 + $0x14] sm:$0xf]
      %v4389 = vld [vmem:[%s4382 + $0x18] sm:$0xf]
      %v4390 = vld [vmem:[%s4382 + $0x1c] sm:$0xf]
      %v4391 = vld [vmem:[%s4382 + $0x20] sm:$0xf]
      %v4392 = vld [vmem:[%s4382 + $0x24] sm:$0xf]
      %v4393 = vld [vmem:[%s4382 + $0x28] sm:$0xf]
      %v4394 = vld [vmem:[%s4382 + $0x2c] sm:$0xf]
      %v4395 = vld [vmem:[%s4382 + $0x30] sm:$0xf]
      %v4396 = vld [vmem:[%s4382 + $0x34] sm:$0xf]
      %v4397 = vld [vmem:[%s4382 + $0x38] sm:$0xf]
      %v4398 = vld [vmem:[%s4382 + $0x3c] sm:$0xf]
      %v4399 = vld [vmem:[%s4382 + $0x40] sm:$0xf]
      %v4400 = vld [vmem:[%s4382 + $0x44] sm:$0xf]
      %v4401 = vld [vmem:[%s4382 + $0x48] sm:$0xf]
      %v4402 = vld [vmem:[%s4382 + $0x4c] sm:$0xf]
      %v4403 = vld [vmem:[%s4382 + $0x50] sm:$0xf]
      %v4404 = vld [vmem:[%s4382 + $0x54] sm:$0xf]
      %v4405 = vld [vmem:[%s4382 + $0x58] sm:$0xf]
      %v4406 = vld [vmem:[%s4382 + $0x5c] sm:$0xf]
      %v4407 = vld [vmem:[%s4382 + $0x60] sm:$0xf]
      %v4408 = vld [vmem:[%s4382 + $0x64] sm:$0xf]
      %v4409 = vld [vmem:[%s4382 + $0x68] sm:$0xf]
      %v4410 = vld [vmem:[%s4382 + $0x6c] sm:$0xf]
      %v4411 = vld [vmem:[%s4382 + $0x70] sm:$0xf]
      %v4412 = vld [vmem:[%s4382 + $0x74] sm:$0xf]
      %v4413 = vld [vmem:[%s4382 + $0x78] sm:$0xf]
      %v4414 = vld [vmem:[%s4382 + $0x7c] sm:$0xf]
      %s4415 = scalar_lea.vmem %s8, 6
      %v4416 = vld [vmem:[%s4415] sm:$0x1]
      %v4418 = vlaneseq
      %v4419 = vshrl.u32 %v4418, 7
      %v4420 = vsub.s32 0, %v4419
      %v4421 = vrot.slane %v4416, %v4420
      %v4455 = vunpack.c.l.b16 %v4383
      %v4456 = vunpack.c.l.b16 %v4384
      %v4457 = vunpack.c.l.b16 %v4385
      %v4458 = vunpack.c.l.b16 %v4386
      %v4459 = vunpack.c.l.b16 %v4387
      %v4460 = vunpack.c.l.b16 %v4388
      %v4461 = vunpack.c.l.b16 %v4389
      %v4462 = vunpack.c.l.b16 %v4390
      %v4463 = vunpack.c.l.b16 %v4391
      %v4464 = vunpack.c.l.b16 %v4392
      %v4465 = vunpack.c.l.b16 %v4393
      %v4466 = vunpack.c.l.b16 %v4394
      %v4467 = vunpack.c.l.b16 %v4395
      %v4468 = vunpack.c.l.b16 %v4396
      %v4469 = vunpack.c.l.b16 %v4397
      %v4470 = vunpack.c.l.b16 %v4398
      %v4471 = vunpack.c.l.b16 %v4399
      %v4472 = vunpack.c.l.b16 %v4400
      %v4473 = vunpack.c.l.b16 %v4401
      %v4474 = vunpack.c.l.b16 %v4402
      %v4475 = vunpack.c.l.b16 %v4403
      %v4476 = vunpack.c.l.b16 %v4404
      %v4477 = vunpack.c.l.b16 %v4405
      %v4478 = vunpack.c.l.b16 %v4406
      %v4479 = vunpack.c.l.b16 %v4407
      %v4480 = vunpack.c.l.b16 %v4408
      %v4481 = vunpack.c.l.b16 %v4409
      %v4482 = vunpack.c.l.b16 %v4410
      %v4483 = vunpack.c.l.b16 %v4411
      %v4484 = vunpack.c.l.b16 %v4412
      %v4485 = vunpack.c.l.b16 %v4413
      %v4486 = vunpack.c.l.b16 %v4414
      %v4487 = vpack.c.b16 %v4456, %v4455
      %v4488 = vpack.c.b16 %v4458, %v4457
      %v4489 = vpack.c.b16 %v4460, %v4459
      %v4490 = vpack.c.b16 %v4462, %v4461
      %v4491 = vpack.c.b16 %v4464, %v4463
      %v4492 = vpack.c.b16 %v4466, %v4465
      %v4493 = vpack.c.b16 %v4468, %v4467
      %v4494 = vpack.c.b16 %v4470, %v4469
      %v4495 = vpack.c.b16 %v4472, %v4471
      %v4496 = vpack.c.b16 %v4474, %v4473
      %v4497 = vpack.c.b16 %v4476, %v4475
      %v4498 = vpack.c.b16 %v4478, %v4477
      %v4499 = vpack.c.b16 %v4480, %v4479
      %v4500 = vpack.c.b16 %v4482, %v4481
      %v4501 = vpack.c.b16 %v4484, %v4483
      %v4502 = vpack.c.b16 %v4486, %v4485
      %4519 = vmatprep.subr.bf16.mxu0 0
      %4520 = vmatpush1.bf16.msra.mxu0 %v4487
      %4521 = vmatprep.subr.bf16.mxu0 0
      %4522 = vmatpush1.bf16.msra.mxu0 %v4488
      %4523 = vmatprep.subr.bf16.mxu0 0
      %4524 = vmatpush1.bf16.msra.mxu0 %v4489
      %4525 = vmatprep.subr.bf16.mxu0 0
      %4526 = vmatpush1.bf16.msra.mxu0 %v4490
      %4527 = vmatprep.subr.bf16.mxu0 0
      %4528 = vmatpush1.bf16.msra.mxu0 %v4491
      %4529 = vmatprep.subr.bf16.mxu0 0
      %4530 = vmatpush1.bf16.msra.mxu0 %v4492
      %4531 = vmatprep.subr.bf16.mxu0 0
      %4532 = vmatpush1.bf16.msra.mxu0 %v4493
      %4533 = vmatprep.subr.bf16.mxu0 0
      %4534 = vmatpush1.bf16.msra.mxu0 %v4494
      %4535 = vmatprep.subr.bf16.mxu0 0
      %4536 = vmatpush1.bf16.msra.mxu0 %v4495
      %4537 = vmatprep.subr.bf16.mxu0 0
      %4538 = vmatpush1.bf16.msra.mxu0 %v4496
      %4539 = vmatprep.subr.bf16.mxu0 0
      %4540 = vmatpush1.bf16.msra.mxu0 %v4497
      %4541 = vmatprep.subr.bf16.mxu0 0
      %4542 = vmatpush1.bf16.msra.mxu0 %v4498
      %4543 = vmatprep.subr.bf16.mxu0 0
      %4544 = vmatpush1.bf16.msra.mxu0 %v4499
      %4545 = vmatprep.subr.bf16.mxu0 0
      %4546 = vmatpush1.bf16.msra.mxu0 %v4500
      %4547 = vmatprep.subr.bf16.mxu0 0
      %4548 = vmatpush1.bf16.msra.mxu0 %v4501
      %4549 = vmatprep.subr.bf16.mxu0 0
      %4550 = vmatpush1.bf16.msra.mxu0 %v4502
      %4551 = vmatprep.mubr.bf16.mxu0 %v4381
      %4552 = vmatmul.mubr.bf16.gmra.mrb[0].mxu0 %v4380
      %v4553 = vpop.f32.mrb[0].mxu0
      %v4554 = vadd.f32 %v4421, %v4553
      %v4555 = vpop.f32.mrb[0].mxu0
      %v4556 = vpop.f32.mrb[0].mxu0
      %v4557 = vpop.f32.mrb[0].mxu0
      %4558 = vdwg.mxu0
      %vm4559 = vcmp.lt.f32.partialorder %v4554, 0.0
      %v4560 = vsel %vm4559, -1.0, 1.0
      %v4561 = vand.u32 2147483647, %v4554
      %vm4562 = vcmp.gt.f32.partialorder %v4561, 2.4142137
      %vm4563 = vmxor %vm4562, 1
      %vm4564 = vcmp.gt.f32.partialorder %v4561, 0.41421357
      %vm4565 = vmand %vm4563, %vm4564
      %v4566 = vadd.f32 %v4561, 1.0
      %v4567 = vsel %vm4562, %v4561, %v4566
      %v4568 = vrcp.pop %v4567
      %v4569 = vsub.f32 0.0, %v4568
      %v4570 = vsub.f32 %v4561, 1.0
      %v4571 = vmul.f32 %v4570, %v4568
      %v4572 = vsel %vm4565, %v4571, %v4561
      %v4573 = vsel %vm4562, %v4569, %v4572
      %v4574 = vsel %vm4565, 0.7853982, 0.0
      %v4575 = vsel %vm4562, 1.5707964, %v4574
      %v4576 = vmul.f32 %v4573, %v4573
      %v4577 = vmul.f32 %v4576, 0.080537446
      %v4578 = vsub.f32 %v4577, 0.13877685
      %v4579 = vmul.f32 %v4578, %v4576
      %v4580 = vadd.f32 %v4579, 0.19977711
      %v4581 = vmul.f32 %v4580, %v4576
      %v4582 = vsub.f32 %v4581, 0.3333295
      %v4583 = vmul.f32 %v4582, %v4576
      %v4584 = vmul.f32 %v4583, %v4573
      %v4585 = vadd.f32 %v4584, %v4573
      %v4586 = vadd.f32 %v4575, %v4585
      %v4587 = vmul.f32 %v4560, %v4586
      %v4588 = vmul.f32 %v4587, 0.636
      %v4589 = vmul.f32 %v4588, 2.0
      %v4590 = vsel %vm1796, %v4589, 0.0
      %4591 = vadd.xlane.f32.xlu0 %v4590
      %v4592 = vpop.xlane.xlu0 %4591
      %v4593 = vmul.f32 %v4592, %v1800
      %v4594 = vsub.f32 %v4589, %v4593
      %v4595 = vmul.f32 %v4594, 1.442695
      %v4596 = vpow.pop %v4595
      %4598 = vrot.lane.b32.xlu0 %v4067, 120
      %v4599 = vpop.permute.xlu0 %4598
      %v4601 = vmul.f32 %v4596, %v4599
      %4603 = vrot.lane.b32.xlu0 %v4554, 120
      %v4604 = vpop.permute.xlu0 %4603
      %v4606 = vadd.f32 %v4601, %v4604
      %s4607 = scalar_lea.vmem %s12, 24
      %v4608 = vld [vmem:[%s4607] sm:$0xff]
      %s4609 = scalar_lea.vmem %s13, 24
      %v4610 = vld [vmem:[%s4609] sm:$0xff]
      %v4612 = vsel %vm1796, %v4606, 0
      %4614 = vmatprep.subr.mxu0 0.0
      %4615 = vmatpush1.msra.mxu0 %v4610
      %4616 = vmatprep.subr.mxu0 0.0
      %4617 = vmatpush1.msra.mxu0 0.0
      %4618 = vmatprep.subr.mxu0 0.0
      %4619 = vmatpush1.msra.mxu0 0.0
      %4620 = vmatprep.subr.mxu0 0.0
      %4621 = vmatpush1.msra.mxu0 0.0
      %4622 = vmatprep.subr.mxu0 0.0
      %4623 = vmatpush1.msra.mxu0 0.0
      %4624 = vmatprep.subr.mxu0 0.0
      %4625 = vmatpush1.msra.mxu0 0.0
      %4626 = vmatprep.subr.mxu0 0.0
      %4627 = vmatpush1.msra.mxu0 0.0
      %4628 = vmatprep.subr.mxu0 0.0
      %4629 = vmatpush1.msra.mxu0 0.0
      %4630 = vmatprep.subr.mxu0 0.0
      %4631 = vmatpush1.msra.mxu0 0.0
      %4632 = vmatprep.subr.mxu0 0.0
      %4633 = vmatpush1.msra.mxu0 0.0
      %4634 = vmatprep.subr.mxu0 0.0
      %4635 = vmatpush1.msra.mxu0 0.0
      %4636 = vmatprep.subr.mxu0 0.0
      %4637 = vmatpush1.msra.mxu0 0.0
      %4638 = vmatprep.subr.mxu0 0.0
      %4639 = vmatpush1.msra.mxu0 0.0
      %4640 = vmatprep.subr.mxu0 0.0
      %4641 = vmatpush1.msra.mxu0 0.0
      %4642 = vmatprep.subr.mxu0 0.0
      %4643 = vmatpush1.msra.mxu0 0.0
      %4644 = vmatprep.subr.mxu0 0.0
      %4645 = vmatpush1.msra.mxu0 0.0
      %4646 = vmatprep.subr.mxu0 0.0
      %4647 = vmatpush1.msra.mxu0 0.0
      %4648 = vmatprep.subr.mxu0 0.0
      %4649 = vmatpush1.msra.mxu0 0.0
      %4650 = vmatprep.subr.mxu0 0.0
      %4651 = vmatpush1.msra.mxu0 0.0
      %4652 = vmatprep.subr.mxu0 0.0
      %4653 = vmatpush1.msra.mxu0 0.0
      %4654 = vmatprep.subr.mxu0 0.0
      %4655 = vmatpush1.msra.mxu0 0.0
      %4656 = vmatprep.subr.mxu0 0.0
      %4657 = vmatpush1.msra.mxu0 0.0
      %4658 = vmatprep.subr.mxu0 0.0
      %4659 = vmatpush1.msra.mxu0 0.0
      %4660 = vmatprep.subr.mxu0 0.0
      %4661 = vmatpush1.msra.mxu0 0.0
      %4662 = vmatprep.subr.mxu0 0.0
      %4663 = vmatpush1.msra.mxu0 0.0
      %4664 = vmatprep.subr.mxu0 0.0
      %4665 = vmatpush1.msra.mxu0 0.0
      %4666 = vmatprep.subr.mxu0 0.0
      %4667 = vmatpush1.msra.mxu0 0.0
      %4668 = vmatprep.subr.mxu0 0.0
      %4669 = vmatpush1.msra.mxu0 0.0
      %4670 = vmatprep.subr.mxu0 0.0
      %4671 = vmatpush1.msra.mxu0 0.0
      %4672 = vmatprep.subr.mxu0 0.0
      %4673 = vmatpush1.msra.mxu0 0.0
      %4674 = vmatprep.subr.mxu0 0.0
      %4675 = vmatpush1.msra.mxu0 0.0
      %4676 = vmatprep.subr.mxu0 0.0
      %4677 = vmatpush1.msra.mxu0 0.0
      %4678 = vmatprep.mubr.f32.mxu0 0.0
      %4679 = vmatmul.mubr.f32.gmra.mrb[0].mxu0 %v4612
      %v4680 = vpop.f32.mrb[0].mxu0
      %v4681 = vadd.f32 0.0, %v4680
      %v4682 = vpop.f32.mrb[0].mxu0
      %4683 = vdwg.mxu0
      %4684 = vmatprep.subr.mxu0 0.0
      %4685 = vmatpush1.msra.mxu0 %v4608
      %4686 = vmatprep.subr.mxu0 0.0
      %4687 = vmatpush1.msra.mxu0 0.0
      %4688 = vmatprep.subr.mxu0 0.0
      %4689 = vmatpush1.msra.mxu0 0.0
      %4690 = vmatprep.subr.mxu0 0.0
      %4691 = vmatpush1.msra.mxu0 0.0
      %4692 = vmatprep.subr.mxu0 0.0
      %4693 = vmatpush1.msra.mxu0 0.0
      %4694 = vmatprep.subr.mxu0 0.0
      %4695 = vmatpush1.msra.mxu0 0.0
      %4696 = vmatprep.subr.mxu0 0.0
      %4697 = vmatpush1.msra.mxu0 0.0
      %4698 = vmatprep.subr.mxu0 0.0
      %4699 = vmatpush1.msra.mxu0 0.0
      %4700 = vmatprep.subr.mxu0 0.0
      %4701 = vmatpush1.msra.mxu0 0.0
      %4702 = vmatprep.subr.mxu0 0.0
      %4703 = vmatpush1.msra.mxu0 0.0
      %4704 = vmatprep.subr.mxu0 0.0
      %4705 = vmatpush1.msra.mxu0 0.0
      %4706 = vmatprep.subr.mxu0 0.0
      %4707 = vmatpush1.msra.mxu0 0.0
      %4708 = vmatprep.subr.mxu0 0.0
      %4709 = vmatpush1.msra.mxu0 0.0
      %4710 = vmatprep.subr.mxu0 0.0
      %4711 = vmatpush1.msra.mxu0 0.0
      %4712 = vmatprep.subr.mxu0 0.0
      %4713 = vmatpush1.msra.mxu0 0.0
      %4714 = vmatprep.subr.mxu0 0.0
      %4715 = vmatpush1.msra.mxu0 0.0
      %4716 = vmatprep.subr.mxu0 0.0
      %4717 = vmatpush1.msra.mxu0 0.0
      %4718 = vmatprep.subr.mxu0 0.0
      %4719 = vmatpush1.msra.mxu0 0.0
      %4720 = vmatprep.subr.mxu0 0.0
      %4721 = vmatpush1.msra.mxu0 0.0
      %4722 = vmatprep.subr.mxu0 0.0
      %4723 = vmatpush1.msra.mxu0 0.0
      %4724 = vmatprep.subr.mxu0 0.0
      %4725 = vmatpush1.msra.mxu0 0.0
      %4726 = vmatprep.subr.mxu0 0.0
      %4727 = vmatpush1.msra.mxu0 0.0
      %4728 = vmatprep.subr.mxu0 0.0
      %4729 = vmatpush1.msra.mxu0 0.0
      %4730 = vmatprep.subr.mxu0 0.0
      %4731 = vmatpush1.msra.mxu0 0.0
      %4732 = vmatprep.subr.mxu0 0.0
      %4733 = vmatpush1.msra.mxu0 0.0
      %4734 = vmatprep.subr.mxu0 0.0
      %4735 = vmatpush1.msra.mxu0 0.0
      %4736 = vmatprep.subr.mxu0 0.0
      %4737 = vmatpush1.msra.mxu0 0.0
      %4738 = vmatprep.subr.mxu0 0.0
      %4739 = vmatpush1.msra.mxu0 0.0
      %4740 = vmatprep.subr.mxu0 0.0
      %4741 = vmatpush1.msra.mxu0 0.0
      %4742 = vmatprep.subr.mxu0 0.0
      %4743 = vmatpush1.msra.mxu0 0.0
      %4744 = vmatprep.subr.mxu0 0.0
      %4745 = vmatpush1.msra.mxu0 0.0
      %4746 = vmatprep.subr.mxu0 0.0
      %4747 = vmatpush1.msra.mxu0 0.0
      %4748 = vmatprep.mubr.f32.mxu0 0.0
      %4749 = vmatmul.mubr.f32.gmra.mrb[0].mxu0 %v4305
      %v4750 = vpop.f32.mrb[0].mxu0
      %v4751 = vadd.f32 %v4681, %v4750
      %v4752 = vpop.f32.mrb[0].mxu0
      %4753 = vdwg.mxu0
      %v4754 = vadd.f32 %v4751, %v498
      %4755 = vst.msk [vmem:[%s496] sm:$0xff] %vm1055, %v4754
      %p4756 = scmp.lt.s32.totalorder %s25, 3
      %s4757 = scalar_select %p4756, %s25, 3
      %s4758 = smul.addr %s4757, 8
      %s4759 = scalar_lea.vmem %s14, %s4758
      // Predicated region
      $region77: #{tpu_custom_call.1} parent=75 // pred_check
        %p4760 = pneg %p352
      $region78: #{tpu_custom_call.1} parent=75 // pred_check_branch
        %4762 = sbr.rel (%p4760) target = $region80
      $region79: #{tpu_custom_call.1} parent=75 // pred_region
        _
      $region80: #{tpu_custom_call.1} parent=75 // pred_fallthru
        _
    $region76: #{tpu_custom_call.1} parent=5 // pred_fallthru
      _
    %p4763 = scmp.le.s32.totalorder 2, %s20
    // Predicated region
    $region81: #{tpu_custom_call.1} parent=5 // pred_check
      %p4764 = pneg %p4763
    $region82: #{tpu_custom_call.1} parent=5 // pred_check_branch
      %4766 = sbr.rel (%p4764) target = $region84
    $region83: #{tpu_custom_call.1} parent=5 // pred_region
      %s4767 = ssub.s32 %s20, 2
      // Predicated region
      $region85: #{tpu_custom_call.1} parent=83 // pred_check
        %p4768 = pneg %p358
      $region86: #{tpu_custom_call.1} parent=83 // pred_check_branch
        %4770 = sbr.rel (%p4768) target = $region88
      $region87: #{tpu_custom_call.1} parent=83 // pred_region
        %p4771 = scmp.lt.s32.totalorder %s26, 3
        %s4772 = scalar_select %p4771, %s26, 3
        %s4773 = smul.addr %s4772, 8
        %s4774 = scalar_lea.vmem %s14, %s4773
      $region88: #{tpu_custom_call.1} parent=83 // pred_fallthru
        _
    $region84: #{tpu_custom_call.1} parent=5 // pred_fallthru
      _
  $region6: #{tpu_custom_call.1} parent=0 // loop_footer
    %s24 = sadd.s32 1, %s20
  $region7: #{tpu_custom_call.1} parent=0 // loop_footer_branch
    %19 = sbr.rel target = $region3
  $region8: #{tpu_custom_call.1} parent=0 // loop_exit
    _

</llo_original>
